<compile_context>
chip_gen: v7x
topology: tpu7x:2x2x1
jax: 0.10.0
libtpu: 0.0.40
codegen_flags: <defaults>
</compile_context>

<pallas_src>
import jax
import jax.numpy as jnp
from jax import lax
from jax.experimental import pallas as pl
from jax.experimental.pallas import tpu as pltpu


def basic_block_kernel(x_ref, w1_ref, b1_ref, w2_ref, b2_ref, o_ref, h1_pad_ref):
    """One batch element: conv1 -> relu -> conv2 -> relu -> 2x2 maxpool."""
    _, Hp, Wp, Cin = x_ref.shape          # input block is zero-padded (+1 each side)
    H, W = Hp - 2, Wp - 2
    Ch = w1_ref.shape[-1]
    Cout = w2_ref.shape[-1]

    # ---- conv1 (3x3, pad=1) + ReLU: single im2col matmul (H*W, 9*Cin)@(9*Cin, Ch) ----
    # Patch column order is (kh, kw, cin), matching the wrapper's weight reshape.
    cols1 = [x_ref[0, kh:kh + H, kw:kw + W, :]
             for kh in range(3) for kw in range(3)]
    patches1 = jnp.concatenate(cols1, axis=-1).reshape(H * W, 9 * Cin)
    h1 = jnp.maximum(
        jnp.dot(patches1, w1_ref[...], preferred_element_type=jnp.float32)
        + b1_ref[...], 0.0)                                        # (H*W, Ch)

    # ---- SAME padding for conv2: zero only the 1-element halo, then store interior ----
    h1_pad_ref[0:1, :, :] = jnp.zeros((1, Wp, Ch), jnp.float32)
    h1_pad_ref[Hp - 1:Hp, :, :] = jnp.zeros((1, Wp, Ch), jnp.float32)
    h1_pad_ref[:, 0:1, :] = jnp.zeros((Hp, 1, Ch), jnp.float32)
    h1_pad_ref[:, Wp - 1:Wp, :] = jnp.zeros((Hp, 1, Ch), jnp.float32)
    h1_pad_ref[1:H + 1, 1:W + 1, :] = h1.reshape(H, W, Ch)

    # ---- conv2 (3x3, pad=1) + ReLU: single im2col matmul (H*W, 9*Ch)@(9*Ch, Cout) ----
    cols2 = [h1_pad_ref[kh:kh + H, kw:kw + W, :]
             for kh in range(3) for kw in range(3)]
    patches2 = jnp.concatenate(cols2, axis=-1).reshape(H * W, 9 * Ch)
    h2 = jnp.maximum(
        jnp.dot(patches2, w2_ref[...], preferred_element_type=jnp.float32)
        + b2_ref[...], 0.0)                                        # (H*W, Cout)

    # ---- 2x2 max pool, stride 2, entirely in registers ----
    # All reshapes keep the channel (lane) dim fixed; pooling pairs are taken by
    # integer-index slices + elementwise max (no strided slices, no scratch round trip).
    t = h2.reshape(H // 2, 2, W, Cout)                 # split row pairs
    v = jnp.maximum(t[:, 0, :, :], t[:, 1, :, :])      # (H/2, W, Cout)
    t = v.reshape(H // 2, W // 2, 2, Cout)             # split col pairs
    p = jnp.maximum(t[:, :, 0, :], t[:, :, 1, :])      # (H/2, W/2, Cout)

    # ---- pack pooled result into the lane-dense output slab ----
    lane = (W // 2) * Cout
    # (H/2, (W/2)*Cout): lane index = w_out*Cout + c  (built via last-axis concats so the
    # channel dim never has to be re-laid-out across sublanes).
    d = jnp.concatenate([p[:, j, :] for j in range(W // 2)], axis=-1)
    g = o_ref.shape[-1] // lane                        # pooled rows packed per slab row
    if g > 1:
        e = d.reshape((H // 2) // g, g, lane)
        d = jnp.concatenate([e[:, t2, :] for t2 in range(g)], axis=-1)
    o_ref[...] = d.reshape(o_ref.shape)


def basic_block_nhwc(x, w1, b1, w2, b2):
    """x: (N,H,W,Cin) f32; w1: (3,3,Cin,Ch); w2: (3,3,Ch,Cout); b*: (C,)."""
    N, H, W, Cin = x.shape
    Ch = w1.shape[-1]
    Cout = w2.shape[-1]
    assert H % 2 == 0 and W % 2 == 0, "2x2 maxpool needs even spatial dims"

    # Glue done once in plain JAX: SAME padding of the input, weight/bias re-layout.
    xp = jnp.pad(x, ((0, 0), (1, 1), (1, 1), (0, 0)))
    w1f = w1.reshape(9 * Cin, Ch)        # row order (kh, kw, cin) == patch column order
    w2f = w2.reshape(9 * Ch, Cout)
    b1r = b1.reshape(1, Ch)
    b2r = b2.reshape(1, Cout)

    # Lane-dense output slab: pack pooled rows so the last dim is a multiple of 128
    # whenever the sizes allow (here (H/2)*(W/2)*Cout = 512 -> slab (4, 128) per sample).
    lane = (W // 2) * Cout
    if 128 % lane == 0 and (H // 2) % (128 // lane) == 0:
        g = 128 // lane
    else:
        g = 1
    out_tail = ((H // 2) // g, g * lane)

    out = pl.pallas_call(
        basic_block_kernel,
        out_shape=jax.ShapeDtypeStruct((N,) + out_tail, jnp.float32),
        grid_spec=pltpu.PrefetchScalarGridSpec(
            num_scalar_prefetch=0,
            grid=(N,),
            in_specs=[
                pl.BlockSpec((1, H + 2, W + 2, Cin), lambda n: (n, 0, 0, 0)),
                pl.BlockSpec((9 * Cin, Ch), lambda n: (0, 0)),   # weights stay resident
                pl.BlockSpec((1, Ch), lambda n: (0, 0)),
                pl.BlockSpec((9 * Ch, Cout), lambda n: (0, 0)),
                pl.BlockSpec((1, Cout), lambda n: (0, 0)),
            ],
            out_specs=pl.BlockSpec((1,) + out_tail, lambda n: (n, 0, 0)),
            scratch_shapes=[
                pltpu.VMEM((H + 2, W + 2, Ch), jnp.float32),     # padded conv1 output
            ],
        ),
        compiler_params=pltpu.CompilerParams(
            dimension_semantics=("parallel",)),
    )(xp, w1f, b1r, w2f, b2r)

    return out.reshape(N, H // 2, W // 2, Cout)


def basic_block(x_nchw, w1_oihw, b1, w2_oihw, b2):
    """PyTorch-layout entry point: x (N,Cin,H,W); conv weights (Cout,Cin,3,3); bias (C,)."""
    x = jnp.transpose(x_nchw, (0, 2, 3, 1))            # NCHW -> NHWC
    w1 = jnp.transpose(w1_oihw, (2, 3, 1, 0))          # OIHW -> HWIO
    w2 = jnp.transpose(w2_oihw, (2, 3, 1, 0))
    y = basic_block_nhwc(x, w1, b1, w2, b2)
    return jnp.transpose(y, (0, 3, 1, 2))               # NHWC -> NCHW


def reference(x, w1, b1, w2, b2):
    """Pure-JAX NCHW reference matching the PyTorch forward."""
    def dn(lhs, rhs):
        return lax.conv_dimension_numbers(lhs.shape, rhs.shape,
                                          ("NCHW", "OIHW", "NCHW"))
    h = lax.conv_general_dilated(x, w1, (1, 1), "SAME", dimension_numbers=dn(x, w1))
    h = jnp.maximum(h + b1.reshape(1, -1, 1, 1), 0.0)
    h = lax.conv_general_dilated(h, w2, (1, 1), "SAME", dimension_numbers=dn(h, w2))
    h = jnp.maximum(h + b2.reshape(1, -1, 1, 1), 0.0)
    return lax.reduce_window(h, -jnp.inf, lax.max,
                             (1, 1, 2, 2), (1, 1, 2, 2), "VALID")


if __name__ == "__main__":
    N, H, W = 2, 16, 16
    Cin, Ch, Cout = 4, 8, 8   # in_channels=4, hidden_dim=8, out_channels=8

    key = jax.random.PRNGKey(0)
    kx, kw1, kb1, kw2, kb2 = jax.random.split(key, 5)

    x = jax.random.normal(kx, (N, Cin, H, W), jnp.float32)

    # deterministic, PyTorch-Conv2d-style uniform(-1/sqrt(fan_in), 1/sqrt(fan_in)) init
    bound1 = 1.0 / (Cin * 9) ** 0.5
    w1 = jax.random.uniform(kw1, (Ch, Cin, 3, 3), jnp.float32, -bound1, bound1)
    b1 = jax.random.uniform(kb1, (Ch,), jnp.float32, -bound1, bound1)
    bound2 = 1.0 / (Ch * 9) ** 0.5
    w2 = jax.random.uniform(kw2, (Cout, Ch, 3, 3), jnp.float32, -bound2, bound2)
    b2 = jax.random.uniform(kb2, (Cout,), jnp.float32, -bound2, bound2)

    out = jax.block_until_ready(basic_block(x, w1, b1, w2, b2))
    ref = reference(x, w1, b1, w2, b2)

    assert out.shape == (N, Cout, H // 2, W // 2), out.shape
    err = float(jnp.max(jnp.abs(out - ref)))
    assert jnp.allclose(out, ref, atol=1e-4, rtol=1e-4), err
    print("KERNEL_OK")
</pallas_src>

<mosaic_0001>
module attributes {stable_mosaic.version = 11 : i64} {
  func.func @basic_block_kernel(%arg0: i32, %arg1: memref<1x18x18x4xf32, #tpu.memory_space<vmem>>, %arg2: memref<36x8xf32, #tpu.memory_space<vmem>>, %arg3: memref<1x8xf32, #tpu.memory_space<vmem>>, %arg4: memref<72x8xf32, #tpu.memory_space<vmem>>, %arg5: memref<1x8xf32, #tpu.memory_space<vmem>>, %arg6: memref<1x4x128xf32, #tpu.memory_space<vmem>>, %arg7: memref<18x18x8xf32, #tpu.memory_space<vmem>>) attributes {dimension_semantics = [#tpu.dimension_semantics<parallel>], iteration_bounds = array<i64: 2>, scalar_prefetch = 0 : i64, scratch_operands = 1 : i64, tpu.core_type = #tpu.core_type<tc>, window_params = [{transform_indices = @transform_0, window_bounds = array<i64: 1, 18, 18, 4>}, {pipeline_mode = #tpu.pipeline_mode<synchronous>, transform_indices = @transform_1, window_bounds = array<i64: 36, 8>}, {pipeline_mode = #tpu.pipeline_mode<synchronous>, transform_indices = @transform_2, window_bounds = array<i64: 1, 8>}, {pipeline_mode = #tpu.pipeline_mode<synchronous>, transform_indices = @transform_3, window_bounds = array<i64: 72, 8>}, {pipeline_mode = #tpu.pipeline_mode<synchronous>, transform_indices = @transform_4, window_bounds = array<i64: 1, 8>}, {transform_indices = @transform_5, window_bounds = array<i64: 1, 4, 128>}]} {
    %c0 = arith.constant 0 : index
    %c0_0 = arith.constant 0 : index
    %c0_1 = arith.constant 0 : index
    %c0_2 = arith.constant 0 : index
    %0 = vector.load %arg1[%c0, %c0_0, %c0_1, %c0_2] : memref<1x18x18x4xf32, #tpu.memory_space<vmem>>, vector<1x16x16x4xf32>
    %1 = vector.shape_cast %0 : vector<1x16x16x4xf32> to vector<16x16x4xf32>
    %c0_3 = arith.constant 0 : index
    %c0_4 = arith.constant 0 : index
    %c1 = arith.constant 1 : index
    %c0_5 = arith.constant 0 : index
    %2 = vector.load %arg1[%c0_3, %c0_4, %c1, %c0_5] : memref<1x18x18x4xf32, #tpu.memory_space<vmem>>, vector<1x16x16x4xf32>
    %3 = vector.shape_cast %2 : vector<1x16x16x4xf32> to vector<16x16x4xf32>
    %c0_6 = arith.constant 0 : index
    %c0_7 = arith.constant 0 : index
    %c2 = arith.constant 2 : index
    %c0_8 = arith.constant 0 : index
    %4 = vector.load %arg1[%c0_6, %c0_7, %c2, %c0_8] : memref<1x18x18x4xf32, #tpu.memory_space<vmem>>, vector<1x16x16x4xf32>
    %5 = vector.shape_cast %4 : vector<1x16x16x4xf32> to vector<16x16x4xf32>
    %c0_9 = arith.constant 0 : index
    %c1_10 = arith.constant 1 : index
    %c0_11 = arith.constant 0 : index
    %c0_12 = arith.constant 0 : index
    %6 = vector.load %arg1[%c0_9, %c1_10, %c0_11, %c0_12] : memref<1x18x18x4xf32, #tpu.memory_space<vmem>>, vector<1x16x16x4xf32>
    %7 = vector.shape_cast %6 : vector<1x16x16x4xf32> to vector<16x16x4xf32>
    %c0_13 = arith.constant 0 : index
    %c1_14 = arith.constant 1 : index
    %c1_15 = arith.constant 1 : index
    %c0_16 = arith.constant 0 : index
    %8 = vector.load %arg1[%c0_13, %c1_14, %c1_15, %c0_16] : memref<1x18x18x4xf32, #tpu.memory_space<vmem>>, vector<1x16x16x4xf32>
    %9 = vector.shape_cast %8 : vector<1x16x16x4xf32> to vector<16x16x4xf32>
    %c0_17 = arith.constant 0 : index
    %c1_18 = arith.constant 1 : index
    %c2_19 = arith.constant 2 : index
    %c0_20 = arith.constant 0 : index
    %10 = vector.load %arg1[%c0_17, %c1_18, %c2_19, %c0_20] : memref<1x18x18x4xf32, #tpu.memory_space<vmem>>, vector<1x16x16x4xf32>
    %11 = vector.shape_cast %10 : vector<1x16x16x4xf32> to vector<16x16x4xf32>
    %c0_21 = arith.constant 0 : index
    %c2_22 = arith.constant 2 : index
    %c0_23 = arith.constant 0 : index
    %c0_24 = arith.constant 0 : index
    %12 = vector.load %arg1[%c0_21, %c2_22, %c0_23, %c0_24] : memref<1x18x18x4xf32, #tpu.memory_space<vmem>>, vector<1x16x16x4xf32>
    %13 = vector.shape_cast %12 : vector<1x16x16x4xf32> to vector<16x16x4xf32>
    %c0_25 = arith.constant 0 : index
    %c2_26 = arith.constant 2 : index
    %c1_27 = arith.constant 1 : index
    %c0_28 = arith.constant 0 : index
    %14 = vector.load %arg1[%c0_25, %c2_26, %c1_27, %c0_28] : memref<1x18x18x4xf32, #tpu.memory_space<vmem>>, vector<1x16x16x4xf32>
    %15 = vector.shape_cast %14 : vector<1x16x16x4xf32> to vector<16x16x4xf32>
    %c0_29 = arith.constant 0 : index
    %c2_30 = arith.constant 2 : index
    %c2_31 = arith.constant 2 : index
    %c0_32 = arith.constant 0 : index
    %16 = vector.load %arg1[%c0_29, %c2_30, %c2_31, %c0_32] : memref<1x18x18x4xf32, #tpu.memory_space<vmem>>, vector<1x16x16x4xf32>
    %17 = vector.shape_cast %16 : vector<1x16x16x4xf32> to vector<16x16x4xf32>
    %18 = tpu.concatenate %1, %3, %5, %7, %9, %11, %13, %15, %17 in 2 : vector<16x16x4xf32>, vector<16x16x4xf32>, vector<16x16x4xf32>, vector<16x16x4xf32>, vector<16x16x4xf32>, vector<16x16x4xf32>, vector<16x16x4xf32>, vector<16x16x4xf32>, vector<16x16x4xf32> -> vector<16x16x36xf32>
    %19 = vector.shape_cast %18 : vector<16x16x36xf32> to vector<256x36xf32>
    %c0_33 = arith.constant 0 : index
    %c0_34 = arith.constant 0 : index
    %20 = vector.load %arg2[%c0_33, %c0_34] : memref<36x8xf32, #tpu.memory_space<vmem>>, vector<36x8xf32>
    %cst = arith.constant dense<0.000000e+00> : vector<256x8xf32>
    %21 = tpu.matmul %19, %20, %cst {dimension_numbers = #tpu.dot_dimension_numbers<[1], [0], [0], [1], [0, 0, 1, 1], [], []>} : vector<256x36xf32>, vector<36x8xf32>, vector<256x8xf32> -> vector<256x8xf32>
    %c0_35 = arith.constant 0 : index
    %c0_36 = arith.constant 0 : index
    %22 = vector.load %arg3[%c0_35, %c0_36] : memref<1x8xf32, #tpu.memory_space<vmem>>, vector<1x8xf32>
    %23 = vector.broadcast %22 : vector<1x8xf32> to vector<256x8xf32>
    %24 = arith.addf %21, %23 : vector<256x8xf32>
    %cst_37 = arith.constant 0.000000e+00 : f32
    %25 = vector.broadcast %cst_37 : f32 to vector<256x8xf32>
    %26 = arith.maximumf %24, %25 : vector<256x8xf32>
    %cst_38 = arith.constant 0.000000e+00 : f32
    %27 = vector.broadcast %cst_38 : f32 to vector<1x18x8xf32>
    %c0_39 = arith.constant 0 : index
    %c0_40 = arith.constant 0 : index
    %c0_41 = arith.constant 0 : index
    %28 = vector.load %arg7[%c0_39, %c0_40, %c0_41] : memref<18x18x8xf32, #tpu.memory_space<vmem>>, vector<1x18x8xf32>
    tpu.vector_store %arg7[%c0_39, %c0_40, %c0_41], %27 {strides = array<i32>} : memref<18x18x8xf32, #tpu.memory_space<vmem>>, vector<1x18x8xf32>,
    %cst_42 = arith.constant 0.000000e+00 : f32
    %29 = vector.broadcast %cst_42 : f32 to vector<1x18x8xf32>
    %c17 = arith.constant 17 : index
    %c0_43 = arith.constant 0 : index
    %c0_44 = arith.constant 0 : index
    %30 = vector.load %arg7[%c17, %c0_43, %c0_44] : memref<18x18x8xf32, #tpu.memory_space<vmem>>, vector<1x18x8xf32>
    tpu.vector_store %arg7[%c17, %c0_43, %c0_44], %29 {strides = array<i32>} : memref<18x18x8xf32, #tpu.memory_space<vmem>>, vector<1x18x8xf32>,
    %cst_45 = arith.constant 0.000000e+00 : f32
    %31 = vector.broadcast %cst_45 : f32 to vector<18x1x8xf32>
    %c0_46 = arith.constant 0 : index
    %c0_47 = arith.constant 0 : index
    %c0_48 = arith.constant 0 : index
    %32 = vector.load %arg7[%c0_46, %c0_47, %c0_48] : memref<18x18x8xf32, #tpu.memory_space<vmem>>, vector<18x1x8xf32>
    tpu.vector_store %arg7[%c0_46, %c0_47, %c0_48], %31 {strides = array<i32>} : memref<18x18x8xf32, #tpu.memory_space<vmem>>, vector<18x1x8xf32>,
    %cst_49 = arith.constant 0.000000e+00 : f32
    %33 = vector.broadcast %cst_49 : f32 to vector<18x1x8xf32>
    %c0_50 = arith.constant 0 : index
    %c17_51 = arith.constant 17 : index
    %c0_52 = arith.constant 0 : index
    %34 = vector.load %arg7[%c0_50, %c17_51, %c0_52] : memref<18x18x8xf32, #tpu.memory_space<vmem>>, vector<18x1x8xf32>
    tpu.vector_store %arg7[%c0_50, %c17_51, %c0_52], %33 {strides = array<i32>} : memref<18x18x8xf32, #tpu.memory_space<vmem>>, vector<18x1x8xf32>,
    %35 = vector.shape_cast %26 : vector<256x8xf32> to vector<16x16x8xf32>
    %c1_53 = arith.constant 1 : index
    %c1_54 = arith.constant 1 : index
    %c0_55 = arith.constant 0 : index
    %36 = vector.load %arg7[%c1_53, %c1_54, %c0_55] : memref<18x18x8xf32, #tpu.memory_space<vmem>>, vector<16x16x8xf32>
    tpu.vector_store %arg7[%c1_53, %c1_54, %c0_55], %35 {strides = array<i32>} : memref<18x18x8xf32, #tpu.memory_space<vmem>>, vector<16x16x8xf32>,
    %c0_56 = arith.constant 0 : index
    %c0_57 = arith.constant 0 : index
    %c0_58 = arith.constant 0 : index
    %37 = vector.load %arg7[%c0_56, %c0_57, %c0_58] : memref<18x18x8xf32, #tpu.memory_space<vmem>>, vector<16x16x8xf32>
    %c0_59 = arith.constant 0 : index
    %c1_60 = arith.constant 1 : index
    %c0_61 = arith.constant 0 : index
    %38 = vector.load %arg7[%c0_59, %c1_60, %c0_61] : memref<18x18x8xf32, #tpu.memory_space<vmem>>, vector<16x16x8xf32>
    %c0_62 = arith.constant 0 : index
    %c2_63 = arith.constant 2 : index
    %c0_64 = arith.constant 0 : index
    %39 = vector.load %arg7[%c0_62, %c2_63, %c0_64] : memref<18x18x8xf32, #tpu.memory_space<vmem>>, vector<16x16x8xf32>
    %c1_65 = arith.constant 1 : index
    %c0_66 = arith.constant 0 : index
    %c0_67 = arith.constant 0 : index
    %40 = vector.load %arg7[%c1_65, %c0_66, %c0_67] : memref<18x18x8xf32, #tpu.memory_space<vmem>>, vector<16x16x8xf32>
    %c1_68 = arith.constant 1 : index
    %c1_69 = arith.constant 1 : index
    %c0_70 = arith.constant 0 : index
    %41 = vector.load %arg7[%c1_68, %c1_69, %c0_70] : memref<18x18x8xf32, #tpu.memory_space<vmem>>, vector<16x16x8xf32>
    %c1_71 = arith.constant 1 : index
    %c2_72 = arith.constant 2 : index
    %c0_73 = arith.constant 0 : index
    %42 = vector.load %arg7[%c1_71, %c2_72, %c0_73] : memref<18x18x8xf32, #tpu.memory_space<vmem>>, vector<16x16x8xf32>
    %c2_74 = arith.constant 2 : index
    %c0_75 = arith.constant 0 : index
    %c0_76 = arith.constant 0 : index
    %43 = vector.load %arg7[%c2_74, %c0_75, %c0_76] : memref<18x18x8xf32, #tpu.memory_space<vmem>>, vector<16x16x8xf32>
    %c2_77 = arith.constant 2 : index
    %c1_78 = arith.constant 1 : index
    %c0_79 = arith.constant 0 : index
    %44 = vector.load %arg7[%c2_77, %c1_78, %c0_79] : memref<18x18x8xf32, #tpu.memory_space<vmem>>, vector<16x16x8xf32>
    %c2_80 = arith.constant 2 : index
    %c2_81 = arith.constant 2 : index
    %c0_82 = arith.constant 0 : index
    %45 = vector.load %arg7[%c2_80, %c2_81, %c0_82] : memref<18x18x8xf32, #tpu.memory_space<vmem>>, vector<16x16x8xf32>
    %46 = tpu.concatenate %37, %38, %39, %40, %41, %42, %43, %44, %45 in 2 : vector<16x16x8xf32>, vector<16x16x8xf32>, vector<16x16x8xf32>, vector<16x16x8xf32>, vector<16x16x8xf32>, vector<16x16x8xf32>, vector<16x16x8xf32>, vector<16x16x8xf32>, vector<16x16x8xf32> -> vector<16x16x72xf32>
    %47 = vector.shape_cast %46 : vector<16x16x72xf32> to vector<256x72xf32>
    %c0_83 = arith.constant 0 : index
    %c0_84 = arith.constant 0 : index
    %48 = vector.load %arg4[%c0_83, %c0_84] : memref<72x8xf32, #tpu.memory_space<vmem>>, vector<72x8xf32>
    %cst_85 = arith.constant dense<0.000000e+00> : vector<256x8xf32>
    %49 = tpu.matmul %47, %48, %cst_85 {dimension_numbers = #tpu.dot_dimension_numbers<[1], [0], [0], [1], [0, 0, 1, 1], [], []>} : vector<256x72xf32>, vector<72x8xf32>, vector<256x8xf32> -> vector<256x8xf32>
    %c0_86 = arith.constant 0 : index
    %c0_87 = arith.constant 0 : index
    %50 = vector.load %arg5[%c0_86, %c0_87] : memref<1x8xf32, #tpu.memory_space<vmem>>, vector<1x8xf32>
    %51 = vector.broadcast %50 : vector<1x8xf32> to vector<256x8xf32>
    %52 = arith.addf %49, %51 : vector<256x8xf32>
    %cst_88 = arith.constant 0.000000e+00 : f32
    %53 = vector.broadcast %cst_88 : f32 to vector<256x8xf32>
    %54 = arith.maximumf %52, %53 : vector<256x8xf32>
    %55 = vector.shape_cast %54 : vector<256x8xf32> to vector<8x2x16x8xf32>
    %56 = vector.extract_strided_slice %55 {offsets = [0, 0, 0, 0], sizes = [8, 1, 16, 8], strides = [1, 1, 1, 1]} : vector<8x2x16x8xf32> to vector<8x1x16x8xf32>
    %57 = vector.shape_cast %56 : vector<8x1x16x8xf32> to vector<8x16x8xf32>
    %58 = vector.extract_strided_slice %55 {offsets = [0, 1, 0, 0], sizes = [8, 1, 16, 8], strides = [1, 1, 1, 1]} : vector<8x2x16x8xf32> to vector<8x1x16x8xf32>
    %59 = vector.shape_cast %58 : vector<8x1x16x8xf32> to vector<8x16x8xf32>
    %60 = arith.maximumf %57, %59 : vector<8x16x8xf32>
    %61 = vector.shape_cast %60 : vector<8x16x8xf32> to vector<8x8x2x8xf32>
    %62 = vector.extract_strided_slice %61 {offsets = [0, 0, 0, 0], sizes = [8, 8, 1, 8], strides = [1, 1, 1, 1]} : vector<8x8x2x8xf32> to vector<8x8x1x8xf32>
    %63 = vector.shape_cast %62 : vector<8x8x1x8xf32> to vector<8x8x8xf32>
    %64 = vector.extract_strided_slice %61 {offsets = [0, 0, 1, 0], sizes = [8, 8, 1, 8], strides = [1, 1, 1, 1]} : vector<8x8x2x8xf32> to vector<8x8x1x8xf32>
    %65 = vector.shape_cast %64 : vector<8x8x1x8xf32> to vector<8x8x8xf32>
    %66 = arith.maximumf %63, %65 : vector<8x8x8xf32>
    %67 = vector.extract_strided_slice %66 {offsets = [0, 0, 0], sizes = [8, 1, 8], strides = [1, 1, 1]} : vector<8x8x8xf32> to vector<8x1x8xf32>
    %68 = vector.shape_cast %67 : vector<8x1x8xf32> to vector<8x8xf32>
    %69 = vector.extract_strided_slice %66 {offsets = [0, 1, 0], sizes = [8, 1, 8], strides = [1, 1, 1]} : vector<8x8x8xf32> to vector<8x1x8xf32>
    %70 = vector.shape_cast %69 : vector<8x1x8xf32> to vector<8x8xf32>
    %71 = vector.extract_strided_slice %66 {offsets = [0, 2, 0], sizes = [8, 1, 8], strides = [1, 1, 1]} : vector<8x8x8xf32> to vector<8x1x8xf32>
    %72 = vector.shape_cast %71 : vector<8x1x8xf32> to vector<8x8xf32>
    %73 = vector.extract_strided_slice %66 {offsets = [0, 3, 0], sizes = [8, 1, 8], strides = [1, 1, 1]} : vector<8x8x8xf32> to vector<8x1x8xf32>
    %74 = vector.shape_cast %73 : vector<8x1x8xf32> to vector<8x8xf32>
    %75 = vector.extract_strided_slice %66 {offsets = [0, 4, 0], sizes = [8, 1, 8], strides = [1, 1, 1]} : vector<8x8x8xf32> to vector<8x1x8xf32>
    %76 = vector.shape_cast %75 : vector<8x1x8xf32> to vector<8x8xf32>
    %77 = vector.extract_strided_slice %66 {offsets = [0, 5, 0], sizes = [8, 1, 8], strides = [1, 1, 1]} : vector<8x8x8xf32> to vector<8x1x8xf32>
    %78 = vector.shape_cast %77 : vector<8x1x8xf32> to vector<8x8xf32>
    %79 = vector.extract_strided_slice %66 {offsets = [0, 6, 0], sizes = [8, 1, 8], strides = [1, 1, 1]} : vector<8x8x8xf32> to vector<8x1x8xf32>
    %80 = vector.shape_cast %79 : vector<8x1x8xf32> to vector<8x8xf32>
    %81 = vector.extract_strided_slice %66 {offsets = [0, 7, 0], sizes = [8, 1, 8], strides = [1, 1, 1]} : vector<8x8x8xf32> to vector<8x1x8xf32>
    %82 = vector.shape_cast %81 : vector<8x1x8xf32> to vector<8x8xf32>
    %83 = tpu.concatenate %68, %70, %72, %74, %76, %78, %80, %82 in 1 : vector<8x8xf32>, vector<8x8xf32>, vector<8x8xf32>, vector<8x8xf32>, vector<8x8xf32>, vector<8x8xf32>, vector<8x8xf32>, vector<8x8xf32> -> vector<8x64xf32>
    %84 = vector.shape_cast %83 : vector<8x64xf32> to vector<4x2x64xf32>
    %85 = vector.extract_strided_slice %84 {offsets = [0, 0, 0], sizes = [4, 1, 64], strides = [1, 1, 1]} : vector<4x2x64xf32> to vector<4x1x64xf32>
    %86 = vector.shape_cast %85 : vector<4x1x64xf32> to vector<4x64xf32>
    %87 = vector.extract_strided_slice %84 {offsets = [0, 1, 0], sizes = [4, 1, 64], strides = [1, 1, 1]} : vector<4x2x64xf32> to vector<4x1x64xf32>
    %88 = vector.shape_cast %87 : vector<4x1x64xf32> to vector<4x64xf32>
    %89 = tpu.concatenate %86, %88 in 1 : vector<4x64xf32>, vector<4x64xf32> -> vector<4x128xf32>
    %90 = vector.shape_cast %89 : vector<4x128xf32> to vector<1x4x128xf32>
    %c0_89 = arith.constant 0 : index
    %c0_90 = arith.constant 0 : index
    %c0_91 = arith.constant 0 : index
    %91 = vector.load %arg6[%c0_89, %c0_90, %c0_91] : memref<1x4x128xf32, #tpu.memory_space<vmem>>, vector<1x4x128xf32>
    tpu.vector_store %arg6[%c0_89, %c0_90, %c0_91], %90 {strides = array<i32>} : memref<1x4x128xf32, #tpu.memory_space<vmem>>, vector<1x4x128xf32>,
    return
  }
  func.func @transform_0(%arg0: i32) -> (i32, i32, i32, i32) {
    %c0_i32 = arith.constant 0 : i32
    %c0_i32_0 = arith.constant 0 : i32
    %c0_i32_1 = arith.constant 0 : i32
    %c0_i32_2 = arith.constant 0 : i32
    return %arg0, %c0_i32, %c0_i32_0, %c0_i32_1 : i32, i32, i32, i32
  }
  func.func @transform_1(%arg0: i32) -> (i32, i32) {
    %c0_i32 = arith.constant 0 : i32
    %c0_i32_0 = arith.constant 0 : i32
    %c0_i32_1 = arith.constant 0 : i32
    return %c0_i32, %c0_i32_0 : i32, i32
  }
  func.func @transform_2(%arg0: i32) -> (i32, i32) {
    %c0_i32 = arith.constant 0 : i32
    %c0_i32_0 = arith.constant 0 : i32
    %c0_i32_1 = arith.constant 0 : i32
    return %c0_i32, %c0_i32_0 : i32, i32
  }
  func.func @transform_3(%arg0: i32) -> (i32, i32) {
    %c0_i32 = arith.constant 0 : i32
    %c0_i32_0 = arith.constant 0 : i32
    %c0_i32_1 = arith.constant 0 : i32
    return %c0_i32, %c0_i32_0 : i32, i32
  }
  func.func @transform_4(%arg0: i32) -> (i32, i32) {
    %c0_i32 = arith.constant 0 : i32
    %c0_i32_0 = arith.constant 0 : i32
    %c0_i32_1 = arith.constant 0 : i32
    return %c0_i32, %c0_i32_0 : i32, i32
  }
  func.func @transform_5(%arg0: i32) -> (i32, i32, i32) {
    %c0_i32 = arith.constant 0 : i32
    %c0_i32_0 = arith.constant 0 : i32
    %c0_i32_1 = arith.constant 0 : i32
    return %arg0, %c0_i32, %c0_i32_0 : i32, i32, i32
  }
}

</mosaic_0001>

<llo_original>
// kernel: tpu_custom_call.1
$region0: #{tpu_custom_call.1}
  #allocation0 [shape = 'u32[]', space=smem, size = 0x4, offset = 0x4, fixed_abs, tag = 'smem constant byte address 0x4 - core index']
  #allocation1 [shape = 'u32[144,128]{1,0:T(1,128)}', space=vmem, size = 0x12000, scoped, tag = 'internal scratch']
  #allocation2 [shape = 'f32[18,18,8]{2,1,0:T(8,128)}', space=vmem, size = 0x36000, scoped, tag = 'scratch operand']
  %s0 = inlined_call_operand.vmem [shape: f32[2,18,18,4], index: 0, kind: input, shape index: {}]
  %s1 = inlined_call_operand.vmem [shape: f32[36,8], index: 1, kind: input, shape index: {}]
  %s2 = inlined_call_operand.vmem [shape: f32[1,8], index: 2, kind: input, shape index: {}]
  %s3 = inlined_call_operand.vmem [shape: f32[72,8], index: 3, kind: input, shape index: {}]
  %s4 = inlined_call_operand.vmem [shape: f32[1,8], index: 4, kind: input, shape index: {}]
  %s5 = inlined_call_operand.hbm [shape: f32[2,4,128], index: 5, kind: output, shape index: {}]
  %s6 = sld [smem:[#allocation0]]
  $region53: #{tpu_custom_call.1} parent=0
    _
  %s8 = ssub.s32 1, %s6
  %s9 = scalar_select 0, %s8, %s6
  $region1: #{tpu_custom_call.1} parent=0
    #allocation3 [shape = 'u8[4096]{0}', space=vmem, size = 0x1000, scoped, tag = 'output window, operand 0']
    #allocation4 [shape = 's32[2]{0}', space=sflag, size = 0x8, scoped, tag = 'scoped memory for tpu_custom_call.1']
    %10 = vsyncpa [#allocation4], 0
    %s11 = scalar_lea.sflag [#allocation4], 1
    %12 = vsyncpa %s11, 0
    loop: start=0, step=1, limit=4
    $region2: #{tpu_custom_call.1} parent=1 // loop_pre_header
      _
    $region3: #{tpu_custom_call.1} parent=1 // loop_header
      %s14 = sphi 0, %s18
      %p15 = scmp.ge.s32.totalorder %s14, 4
      %s24 = sphi 0, %s26
      %s27 = sphi 0, %s24
      %s28 = sphi 0, %s27
      %s44 = sphi 0, %s28
      %s48 = sphi 0, %s48
      %s50 = sphi 0, %s48
      %s51 = sphi 0, %s50
      %s65 = sphi 0, %s51
      %s69 = sphi 0, %s69
      %s71 = sphi 0, %s69
      %s72 = sphi 0, %s71
      %s86 = sphi 0, %s72
      %s90 = sphi 0, %s90
      %s92 = sphi 0, %s90
      %s93 = sphi 0, %s92
      %s107 = sphi 0, %s93
      %s111 = sphi 0, %s111
      %s113 = sphi 0, %s111
      %s114 = sphi 0, %s113
      %s128 = sphi 0, %s114
      %s134 = sphi 0, %s136
      %s137 = sphi 0, %s134
      %s138 = sphi 0, %s137
      %s154 = sphi 0, %s138
    $region4: #{tpu_custom_call.1} parent=1 // loop_header_branch
      %17 = sbr.rel (%p15) target = $region8
    $region5: #{tpu_custom_call.1} parent=1 // loop_body
      %s19 = ssub.s32 %s14, 1
      %s20 = ssub.s32 %s14, 2
      %s21 = sadd.s32 %s14, 1
      %s22 = ssub.s32 %s14, %s21
      %p23 = scmp.eq.s32.totalorder %s22, 0
      %s25 = sadd.s32 %s24, 1
      %s26 = scalar_select %p23, %s24, %s25
      %p29 = pneg %p23
      %p30 = scmp.eq.s32.totalorder %s14, 1
      %p31 = por %p29, %p30
      %p32 = scmp.ne.s32.totalorder %s24, %s27
      %p33 = scmp.eq.s32.totalorder %s14, 0
      %p34 = por %p32, %p33
      %p35 = scmp.ne.s32.totalorder %s24, %s27
      %p36 = scmp.eq.s32.totalorder %s19, 1
      %p37 = por %p35, %p36
      %p38 = scmp.ne.s32.totalorder %s27, %s28
      %p39 = scmp.eq.s32.totalorder %s19, 0
      %p40 = por %p38, %p39
      %p41 = scmp.ne.s32.totalorder %s27, %s28
      %p42 = scmp.eq.s32.totalorder %s20, 1
      %p43 = por %p41, %p42
      %p45 = scmp.ne.s32.totalorder %s28, %s44
      %p46 = scmp.eq.s32.totalorder %s20, 0
      %p47 = por %p45, %p46
      %s49 = sadd.s32 %s48, 1
      %p52 = scmp.eq.s32.totalorder %s14, 1
      %p53 = scmp.ne.s32.totalorder %s48, %s50
      %p54 = scmp.eq.s32.totalorder %s14, 0
      %p55 = por %p53, %p54
      %p56 = scmp.ne.s32.totalorder %s48, %s50
      %p57 = scmp.eq.s32.totalorder %s19, 1
      %p58 = por %p56, %p57
      %p59 = scmp.ne.s32.totalorder %s50, %s51
      %p60 = scmp.eq.s32.totalorder %s19, 0
      %p61 = por %p59, %p60
      %p62 = scmp.ne.s32.totalorder %s50, %s51
      %p63 = scmp.eq.s32.totalorder %s20, 1
      %p64 = por %p62, %p63
      %p66 = scmp.ne.s32.totalorder %s51, %s65
      %p67 = scmp.eq.s32.totalorder %s20, 0
      %p68 = por %p66, %p67
      %s70 = sadd.s32 %s69, 1
      %p73 = scmp.eq.s32.totalorder %s14, 1
      %p74 = scmp.ne.s32.totalorder %s69, %s71
      %p75 = scmp.eq.s32.totalorder %s14, 0
      %p76 = por %p74, %p75
      %p77 = scmp.ne.s32.totalorder %s69, %s71
      %p78 = scmp.eq.s32.totalorder %s19, 1
      %p79 = por %p77, %p78
      %p80 = scmp.ne.s32.totalorder %s71, %s72
      %p81 = scmp.eq.s32.totalorder %s19, 0
      %p82 = por %p80, %p81
      %p83 = scmp.ne.s32.totalorder %s71, %s72
      %p84 = scmp.eq.s32.totalorder %s20, 1
      %p85 = por %p83, %p84
      %p87 = scmp.ne.s32.totalorder %s72, %s86
      %p88 = scmp.eq.s32.totalorder %s20, 0
      %p89 = por %p87, %p88
      %s91 = sadd.s32 %s90, 1
      %p94 = scmp.eq.s32.totalorder %s14, 1
      %p95 = scmp.ne.s32.totalorder %s90, %s92
      %p96 = scmp.eq.s32.totalorder %s14, 0
      %p97 = por %p95, %p96
      %p98 = scmp.ne.s32.totalorder %s90, %s92
      %p99 = scmp.eq.s32.totalorder %s19, 1
      %p100 = por %p98, %p99
      %p101 = scmp.ne.s32.totalorder %s92, %s93
      %p102 = scmp.eq.s32.totalorder %s19, 0
      %p103 = por %p101, %p102
      %p104 = scmp.ne.s32.totalorder %s92, %s93
      %p105 = scmp.eq.s32.totalorder %s20, 1
      %p106 = por %p104, %p105
      %p108 = scmp.ne.s32.totalorder %s93, %s107
      %p109 = scmp.eq.s32.totalorder %s20, 0
      %p110 = por %p108, %p109
      %s112 = sadd.s32 %s111, 1
      %p115 = scmp.eq.s32.totalorder %s14, 1
      %p116 = scmp.ne.s32.totalorder %s111, %s113
      %p117 = scmp.eq.s32.totalorder %s14, 0
      %p118 = por %p116, %p117
      %p119 = scmp.ne.s32.totalorder %s111, %s113
      %p120 = scmp.eq.s32.totalorder %s19, 1
      %p121 = por %p119, %p120
      %p122 = scmp.ne.s32.totalorder %s113, %s114
      %p123 = scmp.eq.s32.totalorder %s19, 0
      %p124 = por %p122, %p123
      %p125 = scmp.ne.s32.totalorder %s113, %s114
      %p126 = scmp.eq.s32.totalorder %s20, 1
      %p127 = por %p125, %p126
      %p129 = scmp.ne.s32.totalorder %s114, %s128
      %p130 = scmp.eq.s32.totalorder %s20, 0
      %p131 = por %p129, %p130
      %s132 = ssub.s32 %s14, %s21
      %p133 = scmp.eq.s32.totalorder %s132, 0
      %s135 = sadd.s32 %s134, 1
      %s136 = scalar_select %p133, %s134, %s135
      %p139 = pneg %p133
      %p140 = scmp.eq.s32.totalorder %s14, 1
      %p141 = por %p139, %p140
      %p142 = scmp.ne.s32.totalorder %s134, %s137
      %p143 = scmp.eq.s32.totalorder %s14, 0
      %p144 = por %p142, %p143
      %p145 = scmp.ne.s32.totalorder %s134, %s137
      %p146 = scmp.eq.s32.totalorder %s19, 1
      %p147 = por %p145, %p146
      %p148 = scmp.ne.s32.totalorder %s137, %s138
      %p149 = scmp.eq.s32.totalorder %s19, 0
      %p150 = por %p148, %p149
      %p151 = scmp.ne.s32.totalorder %s137, %s138
      %p152 = scmp.eq.s32.totalorder %s20, 1
      %p153 = por %p151, %p152
      %p155 = scmp.ne.s32.totalorder %s138, %s154
      %p156 = scmp.eq.s32.totalorder %s20, 0
      %p157 = por %p155, %p156
      %p158 = scmp.le.s32.totalorder 1, %s14
      %p159 = scmp.lt.s32.totalorder %s14, 3
      %p160 = pnand %p158, %p159
      %p161 = pneg %p160
      // Predicated region
      $region9: #{tpu_custom_call.1} parent=5 // pred_check
        _
      $region10: #{tpu_custom_call.1} parent=5 // pred_check_branch
        %163 = sbr.rel (%p160) target = $region12
      $region11: #{tpu_custom_call.1} parent=5 // pred_region
        %s164 = ssub.s32 %s14, 1
        // Predicated region
        $region13: #{tpu_custom_call.1} parent=11 // pred_check
          %p165 = pneg %p61
        $region14: #{tpu_custom_call.1} parent=11 // pred_check_branch
          %167 = sbr.rel (%p165) target = $region16
        $region15: #{tpu_custom_call.1} parent=11 // pred_region
          _
        $region16: #{tpu_custom_call.1} parent=11 // pred_fallthru
          _
        // Predicated region
        $region17: #{tpu_custom_call.1} parent=11 // pred_check
          %p168 = pneg %p82
        $region18: #{tpu_custom_call.1} parent=11 // pred_check_branch
          %170 = sbr.rel (%p168) target = $region20
        $region19: #{tpu_custom_call.1} parent=11 // pred_region
          _
        $region20: #{tpu_custom_call.1} parent=11 // pred_fallthru
          _
        // Predicated region
        $region21: #{tpu_custom_call.1} parent=11 // pred_check
          %p171 = pneg %p103
        $region22: #{tpu_custom_call.1} parent=11 // pred_check_branch
          %173 = sbr.rel (%p171) target = $region24
        $region23: #{tpu_custom_call.1} parent=11 // pred_region
          _
        $region24: #{tpu_custom_call.1} parent=11 // pred_fallthru
          _
        // Predicated region
        $region25: #{tpu_custom_call.1} parent=11 // pred_check
          %p174 = pneg %p124
        $region26: #{tpu_custom_call.1} parent=11 // pred_check_branch
          %176 = sbr.rel (%p174) target = $region28
        $region27: #{tpu_custom_call.1} parent=11 // pred_region
          _
        $region28: #{tpu_custom_call.1} parent=11 // pred_fallthru
          _
      $region12: #{tpu_custom_call.1} parent=5 // pred_fallthru
        _
      %p177 = scmp.lt.s32.totalorder %s14, 2
      // Predicated region
      $region29: #{tpu_custom_call.1} parent=5 // pred_check
        %p178 = pneg %p177
      $region30: #{tpu_custom_call.1} parent=5 // pred_check_branch
        %180 = sbr.rel (%p178) target = $region32
      $region31: #{tpu_custom_call.1} parent=5 // pred_region
        // Predicated region
        $region33: #{tpu_custom_call.1} parent=31 // pred_check
          %p181 = pneg %p34
        $region34: #{tpu_custom_call.1} parent=31 // pred_check_branch
          %183 = sbr.rel (%p181) target = $region36
        $region35: #{tpu_custom_call.1} parent=31 // pred_region
          %p184 = scmp.lt.s32.totalorder %s14, 1
          %s185 = scalar_select %p184, %s14, 1
          %s186 = smul.addr %s185, 54
          %s187 = smul.addr %s186, 8
          %s188 = scalar_lea.vmem %s0, %s187
        $region36: #{tpu_custom_call.1} parent=31 // pred_fallthru
          _
      $region32: #{tpu_custom_call.1} parent=5 // pred_fallthru
        _
      %p189 = scmp.le.s32.totalorder 1, %s14
      %p190 = scmp.lt.s32.totalorder %s14, 3
      %p191 = pnand %p189, %p190
      %p192 = pneg %p191
      // Predicated region
      $region37: #{tpu_custom_call.1} parent=5 // pred_check
        _
      $region38: #{tpu_custom_call.1} parent=5 // pred_check_branch
        %194 = sbr.rel (%p191) target = $region40
      $region39: #{tpu_custom_call.1} parent=5 // pred_region
        %s195 = ssub.s32 %s14, 1
        %p196 = scmp.lt.s32.totalorder %s19, 1
        %s197 = scalar_select %p196, %s19, 1
        %s198 = smul.addr %s197, 54
        %s199 = smul.addr %s198, 8
        %s200 = scalar_lea.vmem %s0, %s199
        %p201 = pneg %p40
        %p202 = pneg %p37
        %p203 = pneg %p61
        %p204 = pneg %p58
        %p205 = pneg %p82
        %p206 = pneg %p79
        %p207 = pneg %p103
        %p208 = pneg %p100
        %p209 = pneg %p124
        %p210 = pneg %p121
        %p211 = pneg %p150
        %p212 = pneg %p147
        %s213 = sand.u32 %s137, 1
        %s214 = scalar_lea.sflag [#allocation4], %s213
        %s215 = sand.u32 %s137, 1
        %s216 = smul.addr %s215, 4
        %s217 = scalar_lea.vmem [#allocation3], %s216
        %p218 = scmp.lt.s32.totalorder %s19, 1
        %s219 = scalar_select %p218, %s19, 1
        %s220 = smul.addr %s219, 54
        %s221 = smul.addr %s220, 8
        %s222 = scalar_lea.vmem %s0, %s221
        %v223 = vld [vmem:[%s222] sm:$0xff]
        %v224 = vld [vmem:[%s222 + $0x8] sm:$0xff]
        %v225 = vld [vmem:[%s222 + $0x18] sm:$0xff]
        %v226 = vld [vmem:[%s222 + $0x20] sm:$0xff]
        %v227 = vld [vmem:[%s222 + $0x30] sm:$0xff]
        %v228 = vld [vmem:[%s222 + $0x38] sm:$0xff]
        %v229 = vld [vmem:[%s222 + $0x48] sm:$0xff]
        %v230 = vld [vmem:[%s222 + $0x50] sm:$0xff]
        %v231 = vld [vmem:[%s222 + $0x60] sm:$0xff]
        %v232 = vld [vmem:[%s222 + $0x68] sm:$0xff]
        %v233 = vld [vmem:[%s222 + $0x78] sm:$0xff]
        %v234 = vld [vmem:[%s222 + $0x80] sm:$0xff]
        %v235 = vld [vmem:[%s222 + $0x90] sm:$0xff]
        %v236 = vld [vmem:[%s222 + $0x98] sm:$0xff]
        %v237 = vld [vmem:[%s222 + $0xa8] sm:$0xff]
        %v238 = vld [vmem:[%s222 + $0xb0] sm:$0xff]
        %v239 = vld [vmem:[%s222 + $0xc0] sm:$0xff]
        %v240 = vld [vmem:[%s222 + $0xc8] sm:$0xff]
        %v241 = vld [vmem:[%s222 + $0xd8] sm:$0xff]
        %v242 = vld [vmem:[%s222 + $0xe0] sm:$0xff]
        %v243 = vld [vmem:[%s222 + $0xf0] sm:$0xff]
        %v244 = vld [vmem:[%s222 + $0xf8] sm:$0xff]
        %v245 = vld [vmem:[%s222 + $0x108] sm:$0xff]
        %v246 = vld [vmem:[%s222 + $0x110] sm:$0xff]
        %v247 = vld [vmem:[%s222 + $0x120] sm:$0xff]
        %v248 = vld [vmem:[%s222 + $0x128] sm:$0xff]
        %v249 = vld [vmem:[%s222 + $0x138] sm:$0xff]
        %v250 = vld [vmem:[%s222 + $0x140] sm:$0xff]
        %v251 = vld [vmem:[%s222 + $0x150] sm:$0xff]
        %v252 = vld [vmem:[%s222 + $0x158] sm:$0xff]
        %v253 = vld [vmem:[%s222 + $0x168] sm:$0xff]
        %v254 = vld [vmem:[%s222 + $0x170] sm:$0xff]
        %v255 = vld [vmem:[%s222 + $0x1] sm:$0xff]
        %v256 = vld [vmem:[%s222 + $0x9] sm:$0xff]
        %v257 = vld [vmem:[%s222 + $0x19] sm:$0xff]
        %v258 = vld [vmem:[%s222 + $0x21] sm:$0xff]
        %v259 = vld [vmem:[%s222 + $0x31] sm:$0xff]
        %v260 = vld [vmem:[%s222 + $0x39] sm:$0xff]
        %v261 = vld [vmem:[%s222 + $0x49] sm:$0xff]
        %v262 = vld [vmem:[%s222 + $0x51] sm:$0xff]
        %v263 = vld [vmem:[%s222 + $0x61] sm:$0xff]
        %v264 = vld [vmem:[%s222 + $0x69] sm:$0xff]
        %v265 = vld [vmem:[%s222 + $0x79] sm:$0xff]
        %v266 = vld [vmem:[%s222 + $0x81] sm:$0xff]
        %v267 = vld [vmem:[%s222 + $0x91] sm:$0xff]
        %v268 = vld [vmem:[%s222 + $0x99] sm:$0xff]
        %v269 = vld [vmem:[%s222 + $0xa9] sm:$0xff]
        %v270 = vld [vmem:[%s222 + $0xb1] sm:$0xff]
        %v271 = vld [vmem:[%s222 + $0xc1] sm:$0xff]
        %v272 = vld [vmem:[%s222 + $0xc9] sm:$0xff]
        %v273 = vld [vmem:[%s222 + $0xd9] sm:$0xff]
        %v274 = vld [vmem:[%s222 + $0xe1] sm:$0xff]
        %v275 = vld [vmem:[%s222 + $0xf1] sm:$0xff]
        %v276 = vld [vmem:[%s222 + $0xf9] sm:$0xff]
        %v277 = vld [vmem:[%s222 + $0x109] sm:$0xff]
        %v278 = vld [vmem:[%s222 + $0x111] sm:$0xff]
        %v279 = vld [vmem:[%s222 + $0x121] sm:$0xff]
        %v280 = vld [vmem:[%s222 + $0x129] sm:$0xff]
        %v281 = vld [vmem:[%s222 + $0x139] sm:$0xff]
        %v282 = vld [vmem:[%s222 + $0x141] sm:$0xff]
        %v283 = vld [vmem:[%s222 + $0x151] sm:$0xff]
        %v284 = vld [vmem:[%s222 + $0x159] sm:$0xff]
        %v285 = vld [vmem:[%s222 + $0x169] sm:$0xff]
        %v286 = vld [vmem:[%s222 + $0x171] sm:$0xff]
        %v287 = vld [vmem:[%s222 + $0x2] sm:$0xff]
        %v288 = vld [vmem:[%s222 + $0xa] sm:$0xff]
        %v289 = vld [vmem:[%s222 + $0x1a] sm:$0xff]
        %v290 = vld [vmem:[%s222 + $0x22] sm:$0xff]
        %v291 = vld [vmem:[%s222 + $0x32] sm:$0xff]
        %v292 = vld [vmem:[%s222 + $0x3a] sm:$0xff]
        %v293 = vld [vmem:[%s222 + $0x4a] sm:$0xff]
        %v294 = vld [vmem:[%s222 + $0x52] sm:$0xff]
        %v295 = vld [vmem:[%s222 + $0x62] sm:$0xff]
        %v296 = vld [vmem:[%s222 + $0x6a] sm:$0xff]
        %v297 = vld [vmem:[%s222 + $0x7a] sm:$0xff]
        %v298 = vld [vmem:[%s222 + $0x82] sm:$0xff]
        %v299 = vld [vmem:[%s222 + $0x92] sm:$0xff]
        %v300 = vld [vmem:[%s222 + $0x9a] sm:$0xff]
        %v301 = vld [vmem:[%s222 + $0xaa] sm:$0xff]
        %v302 = vld [vmem:[%s222 + $0xb2] sm:$0xff]
        %v303 = vld [vmem:[%s222 + $0xc2] sm:$0xff]
        %v304 = vld [vmem:[%s222 + $0xca] sm:$0xff]
        %v305 = vld [vmem:[%s222 + $0xda] sm:$0xff]
        %v306 = vld [vmem:[%s222 + $0xe2] sm:$0xff]
        %v307 = vld [vmem:[%s222 + $0xf2] sm:$0xff]
        %v308 = vld [vmem:[%s222 + $0xfa] sm:$0xff]
        %v309 = vld [vmem:[%s222 + $0x10a] sm:$0xff]
        %v310 = vld [vmem:[%s222 + $0x112] sm:$0xff]
        %v311 = vld [vmem:[%s222 + $0x122] sm:$0xff]
        %v312 = vld [vmem:[%s222 + $0x12a] sm:$0xff]
        %v313 = vld [vmem:[%s222 + $0x13a] sm:$0xff]
        %v314 = vld [vmem:[%s222 + $0x142] sm:$0xff]
        %v315 = vld [vmem:[%s222 + $0x152] sm:$0xff]
        %v316 = vld [vmem:[%s222 + $0x15a] sm:$0xff]
        %v317 = vld [vmem:[%s222 + $0x16a] sm:$0xff]
        %v318 = vld [vmem:[%s222 + $0x172] sm:$0xff]
        %s319 = scalar_lea.vmem %s222, 24
        %v320 = vld [vmem:[%s319] sm:$0xff]
        %v321 = vld [vmem:[%s319 + $0x8] sm:$0xff]
        %v322 = vld [vmem:[%s319 + $0x18] sm:$0xff]
        %v323 = vld [vmem:[%s319 + $0x20] sm:$0xff]
        %v324 = vld [vmem:[%s319 + $0x30] sm:$0xff]
        %v325 = vld [vmem:[%s319 + $0x38] sm:$0xff]
        %v326 = vld [vmem:[%s319 + $0x48] sm:$0xff]
        %v327 = vld [vmem:[%s319 + $0x50] sm:$0xff]
        %v328 = vld [vmem:[%s319 + $0x60] sm:$0xff]
        %v329 = vld [vmem:[%s319 + $0x68] sm:$0xff]
        %v330 = vld [vmem:[%s319 + $0x78] sm:$0xff]
        %v331 = vld [vmem:[%s319 + $0x80] sm:$0xff]
        %v332 = vld [vmem:[%s319 + $0x90] sm:$0xff]
        %v333 = vld [vmem:[%s319 + $0x98] sm:$0xff]
        %v334 = vld [vmem:[%s319 + $0xa8] sm:$0xff]
        %v335 = vld [vmem:[%s319 + $0xb0] sm:$0xff]
        %v336 = vld [vmem:[%s319 + $0xc0] sm:$0xff]
        %v337 = vld [vmem:[%s319 + $0xc8] sm:$0xff]
        %v338 = vld [vmem:[%s319 + $0xd8] sm:$0xff]
        %v339 = vld [vmem:[%s319 + $0xe0] sm:$0xff]
        %v340 = vld [vmem:[%s319 + $0xf0] sm:$0xff]
        %v341 = vld [vmem:[%s319 + $0xf8] sm:$0xff]
        %v342 = vld [vmem:[%s319 + $0x108] sm:$0xff]
        %v343 = vld [vmem:[%s319 + $0x110] sm:$0xff]
        %v344 = vld [vmem:[%s319 + $0x120] sm:$0xff]
        %v345 = vld [vmem:[%s319 + $0x128] sm:$0xff]
        %v346 = vld [vmem:[%s319 + $0x138] sm:$0xff]
        %v347 = vld [vmem:[%s319 + $0x140] sm:$0xff]
        %v348 = vld [vmem:[%s319 + $0x150] sm:$0xff]
        %v349 = vld [vmem:[%s319 + $0x158] sm:$0xff]
        %v350 = vld [vmem:[%s319 + $0x168] sm:$0xff]
        %v351 = vld [vmem:[%s319 + $0x170] sm:$0xff]
        %v352 = vld [vmem:[%s319 + $0x1] sm:$0xff]
        %v353 = vld [vmem:[%s319 + $0x9] sm:$0xff]
        %v354 = vld [vmem:[%s319 + $0x19] sm:$0xff]
        %v355 = vld [vmem:[%s319 + $0x21] sm:$0xff]
        %v356 = vld [vmem:[%s319 + $0x31] sm:$0xff]
        %v357 = vld [vmem:[%s319 + $0x39] sm:$0xff]
        %v358 = vld [vmem:[%s319 + $0x49] sm:$0xff]
        %v359 = vld [vmem:[%s319 + $0x51] sm:$0xff]
        %v360 = vld [vmem:[%s319 + $0x61] sm:$0xff]
        %v361 = vld [vmem:[%s319 + $0x69] sm:$0xff]
        %v362 = vld [vmem:[%s319 + $0x79] sm:$0xff]
        %v363 = vld [vmem:[%s319 + $0x81] sm:$0xff]
        %v364 = vld [vmem:[%s319 + $0x91] sm:$0xff]
        %v365 = vld [vmem:[%s319 + $0x99] sm:$0xff]
        %v366 = vld [vmem:[%s319 + $0xa9] sm:$0xff]
        %v367 = vld [vmem:[%s319 + $0xb1] sm:$0xff]
        %v368 = vld [vmem:[%s319 + $0xc1] sm:$0xff]
        %v369 = vld [vmem:[%s319 + $0xc9] sm:$0xff]
        %v370 = vld [vmem:[%s319 + $0xd9] sm:$0xff]
        %v371 = vld [vmem:[%s319 + $0xe1] sm:$0xff]
        %v372 = vld [vmem:[%s319 + $0xf1] sm:$0xff]
        %v373 = vld [vmem:[%s319 + $0xf9] sm:$0xff]
        %v374 = vld [vmem:[%s319 + $0x109] sm:$0xff]
        %v375 = vld [vmem:[%s319 + $0x111] sm:$0xff]
        %v376 = vld [vmem:[%s319 + $0x121] sm:$0xff]
        %v377 = vld [vmem:[%s319 + $0x129] sm:$0xff]
        %v378 = vld [vmem:[%s319 + $0x139] sm:$0xff]
        %v379 = vld [vmem:[%s319 + $0x141] sm:$0xff]
        %v380 = vld [vmem:[%s319 + $0x151] sm:$0xff]
        %v381 = vld [vmem:[%s319 + $0x159] sm:$0xff]
        %v382 = vld [vmem:[%s319 + $0x169] sm:$0xff]
        %v383 = vld [vmem:[%s319 + $0x171] sm:$0xff]
        %v384 = vld [vmem:[%s319 + $0x2] sm:$0xff]
        %v385 = vld [vmem:[%s319 + $0xa] sm:$0xff]
        %v386 = vld [vmem:[%s319 + $0x1a] sm:$0xff]
        %v387 = vld [vmem:[%s319 + $0x22] sm:$0xff]
        %v388 = vld [vmem:[%s319 + $0x32] sm:$0xff]
        %v389 = vld [vmem:[%s319 + $0x3a] sm:$0xff]
        %v390 = vld [vmem:[%s319 + $0x4a] sm:$0xff]
        %v391 = vld [vmem:[%s319 + $0x52] sm:$0xff]
        %v392 = vld [vmem:[%s319 + $0x62] sm:$0xff]
        %v393 = vld [vmem:[%s319 + $0x6a] sm:$0xff]
        %v394 = vld [vmem:[%s319 + $0x7a] sm:$0xff]
        %v395 = vld [vmem:[%s319 + $0x82] sm:$0xff]
        %v396 = vld [vmem:[%s319 + $0x92] sm:$0xff]
        %v397 = vld [vmem:[%s319 + $0x9a] sm:$0xff]
        %v398 = vld [vmem:[%s319 + $0xaa] sm:$0xff]
        %v399 = vld [vmem:[%s319 + $0xb2] sm:$0xff]
        %v400 = vld [vmem:[%s319 + $0xc2] sm:$0xff]
        %v401 = vld [vmem:[%s319 + $0xca] sm:$0xff]
        %v402 = vld [vmem:[%s319 + $0xda] sm:$0xff]
        %v403 = vld [vmem:[%s319 + $0xe2] sm:$0xff]
        %v404 = vld [vmem:[%s319 + $0xf2] sm:$0xff]
        %v405 = vld [vmem:[%s319 + $0xfa] sm:$0xff]
        %v406 = vld [vmem:[%s319 + $0x10a] sm:$0xff]
        %v407 = vld [vmem:[%s319 + $0x112] sm:$0xff]
        %v408 = vld [vmem:[%s319 + $0x122] sm:$0xff]
        %v409 = vld [vmem:[%s319 + $0x12a] sm:$0xff]
        %v410 = vld [vmem:[%s319 + $0x13a] sm:$0xff]
        %v411 = vld [vmem:[%s319 + $0x142] sm:$0xff]
        %v412 = vld [vmem:[%s319 + $0x152] sm:$0xff]
        %v413 = vld [vmem:[%s319 + $0x15a] sm:$0xff]
        %v414 = vld [vmem:[%s319 + $0x16a] sm:$0xff]
        %v415 = vld [vmem:[%s319 + $0x172] sm:$0xff]
        %s416 = scalar_lea.vmem %s222, 48
        %v417 = vld [vmem:[%s416] sm:$0xff]
        %v418 = vld [vmem:[%s416 + $0x8] sm:$0xff]
        %v419 = vld [vmem:[%s416 + $0x18] sm:$0xff]
        %v420 = vld [vmem:[%s416 + $0x20] sm:$0xff]
        %v421 = vld [vmem:[%s416 + $0x30] sm:$0xff]
        %v422 = vld [vmem:[%s416 + $0x38] sm:$0xff]
        %v423 = vld [vmem:[%s416 + $0x48] sm:$0xff]
        %v424 = vld [vmem:[%s416 + $0x50] sm:$0xff]
        %v425 = vld [vmem:[%s416 + $0x60] sm:$0xff]
        %v426 = vld [vmem:[%s416 + $0x68] sm:$0xff]
        %v427 = vld [vmem:[%s416 + $0x78] sm:$0xff]
        %v428 = vld [vmem:[%s416 + $0x80] sm:$0xff]
        %v429 = vld [vmem:[%s416 + $0x90] sm:$0xff]
        %v430 = vld [vmem:[%s416 + $0x98] sm:$0xff]
        %v431 = vld [vmem:[%s416 + $0xa8] sm:$0xff]
        %v432 = vld [vmem:[%s416 + $0xb0] sm:$0xff]
        %v433 = vld [vmem:[%s416 + $0xc0] sm:$0xff]
        %v434 = vld [vmem:[%s416 + $0xc8] sm:$0xff]
        %v435 = vld [vmem:[%s416 + $0xd8] sm:$0xff]
        %v436 = vld [vmem:[%s416 + $0xe0] sm:$0xff]
        %v437 = vld [vmem:[%s416 + $0xf0] sm:$0xff]
        %v438 = vld [vmem:[%s416 + $0xf8] sm:$0xff]
        %v439 = vld [vmem:[%s416 + $0x108] sm:$0xff]
        %v440 = vld [vmem:[%s416 + $0x110] sm:$0xff]
        %v441 = vld [vmem:[%s416 + $0x120] sm:$0xff]
        %v442 = vld [vmem:[%s416 + $0x128] sm:$0xff]
        %v443 = vld [vmem:[%s416 + $0x138] sm:$0xff]
        %v444 = vld [vmem:[%s416 + $0x140] sm:$0xff]
        %v445 = vld [vmem:[%s416 + $0x150] sm:$0xff]
        %v446 = vld [vmem:[%s416 + $0x158] sm:$0xff]
        %v447 = vld [vmem:[%s416 + $0x168] sm:$0xff]
        %v448 = vld [vmem:[%s416 + $0x170] sm:$0xff]
        %v449 = vld [vmem:[%s416 + $0x1] sm:$0xff]
        %v450 = vld [vmem:[%s416 + $0x9] sm:$0xff]
        %v451 = vld [vmem:[%s416 + $0x19] sm:$0xff]
        %v452 = vld [vmem:[%s416 + $0x21] sm:$0xff]
        %v453 = vld [vmem:[%s416 + $0x31] sm:$0xff]
        %v454 = vld [vmem:[%s416 + $0x39] sm:$0xff]
        %v455 = vld [vmem:[%s416 + $0x49] sm:$0xff]
        %v456 = vld [vmem:[%s416 + $0x51] sm:$0xff]
        %v457 = vld [vmem:[%s416 + $0x61] sm:$0xff]
        %v458 = vld [vmem:[%s416 + $0x69] sm:$0xff]
        %v459 = vld [vmem:[%s416 + $0x79] sm:$0xff]
        %v460 = vld [vmem:[%s416 + $0x81] sm:$0xff]
        %v461 = vld [vmem:[%s416 + $0x91] sm:$0xff]
        %v462 = vld [vmem:[%s416 + $0x99] sm:$0xff]
        %v463 = vld [vmem:[%s416 + $0xa9] sm:$0xff]
        %v464 = vld [vmem:[%s416 + $0xb1] sm:$0xff]
        %v465 = vld [vmem:[%s416 + $0xc1] sm:$0xff]
        %v466 = vld [vmem:[%s416 + $0xc9] sm:$0xff]
        %v467 = vld [vmem:[%s416 + $0xd9] sm:$0xff]
        %v468 = vld [vmem:[%s416 + $0xe1] sm:$0xff]
        %v469 = vld [vmem:[%s416 + $0xf1] sm:$0xff]
        %v470 = vld [vmem:[%s416 + $0xf9] sm:$0xff]
        %v471 = vld [vmem:[%s416 + $0x109] sm:$0xff]
        %v472 = vld [vmem:[%s416 + $0x111] sm:$0xff]
        %v473 = vld [vmem:[%s416 + $0x121] sm:$0xff]
        %v474 = vld [vmem:[%s416 + $0x129] sm:$0xff]
        %v475 = vld [vmem:[%s416 + $0x139] sm:$0xff]
        %v476 = vld [vmem:[%s416 + $0x141] sm:$0xff]
        %v477 = vld [vmem:[%s416 + $0x151] sm:$0xff]
        %v478 = vld [vmem:[%s416 + $0x159] sm:$0xff]
        %v479 = vld [vmem:[%s416 + $0x169] sm:$0xff]
        %v480 = vld [vmem:[%s416 + $0x171] sm:$0xff]
        %v481 = vld [vmem:[%s416 + $0x2] sm:$0xff]
        %v482 = vld [vmem:[%s416 + $0xa] sm:$0xff]
        %v483 = vld [vmem:[%s416 + $0x1a] sm:$0xff]
        %v484 = vld [vmem:[%s416 + $0x22] sm:$0xff]
        %v485 = vld [vmem:[%s416 + $0x32] sm:$0xff]
        %v486 = vld [vmem:[%s416 + $0x3a] sm:$0xff]
        %v487 = vld [vmem:[%s416 + $0x4a] sm:$0xff]
        %v488 = vld [vmem:[%s416 + $0x52] sm:$0xff]
        %v489 = vld [vmem:[%s416 + $0x62] sm:$0xff]
        %v490 = vld [vmem:[%s416 + $0x6a] sm:$0xff]
        %v491 = vld [vmem:[%s416 + $0x7a] sm:$0xff]
        %v492 = vld [vmem:[%s416 + $0x82] sm:$0xff]
        %v493 = vld [vmem:[%s416 + $0x92] sm:$0xff]
        %v494 = vld [vmem:[%s416 + $0x9a] sm:$0xff]
        %v495 = vld [vmem:[%s416 + $0xaa] sm:$0xff]
        %v496 = vld [vmem:[%s416 + $0xb2] sm:$0xff]
        %v497 = vld [vmem:[%s416 + $0xc2] sm:$0xff]
        %v498 = vld [vmem:[%s416 + $0xca] sm:$0xff]
        %v499 = vld [vmem:[%s416 + $0xda] sm:$0xff]
        %v500 = vld [vmem:[%s416 + $0xe2] sm:$0xff]
        %v501 = vld [vmem:[%s416 + $0xf2] sm:$0xff]
        %v502 = vld [vmem:[%s416 + $0xfa] sm:$0xff]
        %v503 = vld [vmem:[%s416 + $0x10a] sm:$0xff]
        %v504 = vld [vmem:[%s416 + $0x112] sm:$0xff]
        %v505 = vld [vmem:[%s416 + $0x122] sm:$0xff]
        %v506 = vld [vmem:[%s416 + $0x12a] sm:$0xff]
        %v507 = vld [vmem:[%s416 + $0x13a] sm:$0xff]
        %v508 = vld [vmem:[%s416 + $0x142] sm:$0xff]
        %v509 = vld [vmem:[%s416 + $0x152] sm:$0xff]
        %v510 = vld [vmem:[%s416 + $0x15a] sm:$0xff]
        %v511 = vld [vmem:[%s416 + $0x16a] sm:$0xff]
        %v512 = vld [vmem:[%s416 + $0x172] sm:$0xff]
        %545 = vrot.lane.b32.xlu0 %v255, 4
        %v546 = vpop.permute.xlu0 %545
        %547 = vrot.lane.b32.xlu0 %v256, 4
        %v548 = vpop.permute.xlu0 %547
        %549 = vrot.lane.b32.xlu0 %v257, 4
        %v550 = vpop.permute.xlu0 %549
        %551 = vrot.lane.b32.xlu0 %v258, 4
        %v552 = vpop.permute.xlu0 %551
        %553 = vrot.lane.b32.xlu0 %v259, 4
        %v554 = vpop.permute.xlu0 %553
        %555 = vrot.lane.b32.xlu0 %v260, 4
        %v556 = vpop.permute.xlu0 %555
        %557 = vrot.lane.b32.xlu0 %v261, 4
        %v558 = vpop.permute.xlu0 %557
        %559 = vrot.lane.b32.xlu0 %v262, 4
        %v560 = vpop.permute.xlu0 %559
        %561 = vrot.lane.b32.xlu0 %v263, 4
        %v562 = vpop.permute.xlu0 %561
        %563 = vrot.lane.b32.xlu0 %v264, 4
        %v564 = vpop.permute.xlu0 %563
        %565 = vrot.lane.b32.xlu0 %v265, 4
        %v566 = vpop.permute.xlu0 %565
        %567 = vrot.lane.b32.xlu0 %v266, 4
        %v568 = vpop.permute.xlu0 %567
        %569 = vrot.lane.b32.xlu0 %v267, 4
        %v570 = vpop.permute.xlu0 %569
        %571 = vrot.lane.b32.xlu0 %v268, 4
        %v572 = vpop.permute.xlu0 %571
        %573 = vrot.lane.b32.xlu0 %v269, 4
        %v574 = vpop.permute.xlu0 %573
        %575 = vrot.lane.b32.xlu0 %v270, 4
        %v576 = vpop.permute.xlu0 %575
        %577 = vrot.lane.b32.xlu0 %v271, 4
        %v578 = vpop.permute.xlu0 %577
        %579 = vrot.lane.b32.xlu0 %v272, 4
        %v580 = vpop.permute.xlu0 %579
        %581 = vrot.lane.b32.xlu0 %v273, 4
        %v582 = vpop.permute.xlu0 %581
        %583 = vrot.lane.b32.xlu0 %v274, 4
        %v584 = vpop.permute.xlu0 %583
        %585 = vrot.lane.b32.xlu0 %v275, 4
        %v586 = vpop.permute.xlu0 %585
        %587 = vrot.lane.b32.xlu0 %v276, 4
        %v588 = vpop.permute.xlu0 %587
        %589 = vrot.lane.b32.xlu0 %v277, 4
        %v590 = vpop.permute.xlu0 %589
        %591 = vrot.lane.b32.xlu0 %v278, 4
        %v592 = vpop.permute.xlu0 %591
        %593 = vrot.lane.b32.xlu0 %v279, 4
        %v594 = vpop.permute.xlu0 %593
        %595 = vrot.lane.b32.xlu0 %v280, 4
        %v596 = vpop.permute.xlu0 %595
        %597 = vrot.lane.b32.xlu0 %v281, 4
        %v598 = vpop.permute.xlu0 %597
        %599 = vrot.lane.b32.xlu0 %v282, 4
        %v600 = vpop.permute.xlu0 %599
        %601 = vrot.lane.b32.xlu0 %v283, 4
        %v602 = vpop.permute.xlu0 %601
        %603 = vrot.lane.b32.xlu0 %v284, 4
        %v604 = vpop.permute.xlu0 %603
        %605 = vrot.lane.b32.xlu0 %v285, 4
        %v606 = vpop.permute.xlu0 %605
        %607 = vrot.lane.b32.xlu0 %v286, 4
        %v608 = vpop.permute.xlu0 %607
        %673 = vrot.lane.b32.xlu0 %v287, 8
        %v674 = vpop.permute.xlu0 %673
        %675 = vrot.lane.b32.xlu0 %v288, 8
        %v676 = vpop.permute.xlu0 %675
        %677 = vrot.lane.b32.xlu0 %v289, 8
        %v678 = vpop.permute.xlu0 %677
        %679 = vrot.lane.b32.xlu0 %v290, 8
        %v680 = vpop.permute.xlu0 %679
        %681 = vrot.lane.b32.xlu0 %v291, 8
        %v682 = vpop.permute.xlu0 %681
        %683 = vrot.lane.b32.xlu0 %v292, 8
        %v684 = vpop.permute.xlu0 %683
        %685 = vrot.lane.b32.xlu0 %v293, 8
        %v686 = vpop.permute.xlu0 %685
        %687 = vrot.lane.b32.xlu0 %v294, 8
        %v688 = vpop.permute.xlu0 %687
        %689 = vrot.lane.b32.xlu0 %v295, 8
        %v690 = vpop.permute.xlu0 %689
        %691 = vrot.lane.b32.xlu0 %v296, 8
        %v692 = vpop.permute.xlu0 %691
        %693 = vrot.lane.b32.xlu0 %v297, 8
        %v694 = vpop.permute.xlu0 %693
        %695 = vrot.lane.b32.xlu0 %v298, 8
        %v696 = vpop.permute.xlu0 %695
        %697 = vrot.lane.b32.xlu0 %v299, 8
        %v698 = vpop.permute.xlu0 %697
        %699 = vrot.lane.b32.xlu0 %v300, 8
        %v700 = vpop.permute.xlu0 %699
        %701 = vrot.lane.b32.xlu0 %v301, 8
        %v702 = vpop.permute.xlu0 %701
        %703 = vrot.lane.b32.xlu0 %v302, 8
        %v704 = vpop.permute.xlu0 %703
        %705 = vrot.lane.b32.xlu0 %v303, 8
        %v706 = vpop.permute.xlu0 %705
        %707 = vrot.lane.b32.xlu0 %v304, 8
        %v708 = vpop.permute.xlu0 %707
        %709 = vrot.lane.b32.xlu0 %v305, 8
        %v710 = vpop.permute.xlu0 %709
        %711 = vrot.lane.b32.xlu0 %v306, 8
        %v712 = vpop.permute.xlu0 %711
        %713 = vrot.lane.b32.xlu0 %v307, 8
        %v714 = vpop.permute.xlu0 %713
        %715 = vrot.lane.b32.xlu0 %v308, 8
        %v716 = vpop.permute.xlu0 %715
        %717 = vrot.lane.b32.xlu0 %v309, 8
        %v718 = vpop.permute.xlu0 %717
        %719 = vrot.lane.b32.xlu0 %v310, 8
        %v720 = vpop.permute.xlu0 %719
        %721 = vrot.lane.b32.xlu0 %v311, 8
        %v722 = vpop.permute.xlu0 %721
        %723 = vrot.lane.b32.xlu0 %v312, 8
        %v724 = vpop.permute.xlu0 %723
        %725 = vrot.lane.b32.xlu0 %v313, 8
        %v726 = vpop.permute.xlu0 %725
        %727 = vrot.lane.b32.xlu0 %v314, 8
        %v728 = vpop.permute.xlu0 %727
        %729 = vrot.lane.b32.xlu0 %v315, 8
        %v730 = vpop.permute.xlu0 %729
        %731 = vrot.lane.b32.xlu0 %v316, 8
        %v732 = vpop.permute.xlu0 %731
        %733 = vrot.lane.b32.xlu0 %v317, 8
        %v734 = vpop.permute.xlu0 %733
        %735 = vrot.lane.b32.xlu0 %v318, 8
        %v736 = vpop.permute.xlu0 %735
        %801 = vrot.lane.b32.xlu0 %v320, 12
        %v802 = vpop.permute.xlu0 %801
        %803 = vrot.lane.b32.xlu0 %v321, 12
        %v804 = vpop.permute.xlu0 %803
        %805 = vrot.lane.b32.xlu0 %v322, 12
        %v806 = vpop.permute.xlu0 %805
        %807 = vrot.lane.b32.xlu0 %v323, 12
        %v808 = vpop.permute.xlu0 %807
        %809 = vrot.lane.b32.xlu0 %v324, 12
        %v810 = vpop.permute.xlu0 %809
        %811 = vrot.lane.b32.xlu0 %v325, 12
        %v812 = vpop.permute.xlu0 %811
        %813 = vrot.lane.b32.xlu0 %v326, 12
        %v814 = vpop.permute.xlu0 %813
        %815 = vrot.lane.b32.xlu0 %v327, 12
        %v816 = vpop.permute.xlu0 %815
        %817 = vrot.lane.b32.xlu0 %v328, 12
        %v818 = vpop.permute.xlu0 %817
        %819 = vrot.lane.b32.xlu0 %v329, 12
        %v820 = vpop.permute.xlu0 %819
        %821 = vrot.lane.b32.xlu0 %v330, 12
        %v822 = vpop.permute.xlu0 %821
        %823 = vrot.lane.b32.xlu0 %v331, 12
        %v824 = vpop.permute.xlu0 %823
        %825 = vrot.lane.b32.xlu0 %v332, 12
        %v826 = vpop.permute.xlu0 %825
        %827 = vrot.lane.b32.xlu0 %v333, 12
        %v828 = vpop.permute.xlu0 %827
        %829 = vrot.lane.b32.xlu0 %v334, 12
        %v830 = vpop.permute.xlu0 %829
        %831 = vrot.lane.b32.xlu0 %v335, 12
        %v832 = vpop.permute.xlu0 %831
        %833 = vrot.lane.b32.xlu0 %v336, 12
        %v834 = vpop.permute.xlu0 %833
        %835 = vrot.lane.b32.xlu0 %v337, 12
        %v836 = vpop.permute.xlu0 %835
        %837 = vrot.lane.b32.xlu0 %v338, 12
        %v838 = vpop.permute.xlu0 %837
        %839 = vrot.lane.b32.xlu0 %v339, 12
        %v840 = vpop.permute.xlu0 %839
        %841 = vrot.lane.b32.xlu0 %v340, 12
        %v842 = vpop.permute.xlu0 %841
        %843 = vrot.lane.b32.xlu0 %v341, 12
        %v844 = vpop.permute.xlu0 %843
        %845 = vrot.lane.b32.xlu0 %v342, 12
        %v846 = vpop.permute.xlu0 %845
        %847 = vrot.lane.b32.xlu0 %v343, 12
        %v848 = vpop.permute.xlu0 %847
        %849 = vrot.lane.b32.xlu0 %v344, 12
        %v850 = vpop.permute.xlu0 %849
        %851 = vrot.lane.b32.xlu0 %v345, 12
        %v852 = vpop.permute.xlu0 %851
        %853 = vrot.lane.b32.xlu0 %v346, 12
        %v854 = vpop.permute.xlu0 %853
        %855 = vrot.lane.b32.xlu0 %v347, 12
        %v856 = vpop.permute.xlu0 %855
        %857 = vrot.lane.b32.xlu0 %v348, 12
        %v858 = vpop.permute.xlu0 %857
        %859 = vrot.lane.b32.xlu0 %v349, 12
        %v860 = vpop.permute.xlu0 %859
        %861 = vrot.lane.b32.xlu0 %v350, 12
        %v862 = vpop.permute.xlu0 %861
        %863 = vrot.lane.b32.xlu0 %v351, 12
        %v864 = vpop.permute.xlu0 %863
        %929 = vrot.lane.b32.xlu0 %v352, 16
        %v930 = vpop.permute.xlu0 %929
        %931 = vrot.lane.b32.xlu0 %v353, 16
        %v932 = vpop.permute.xlu0 %931
        %933 = vrot.lane.b32.xlu0 %v354, 16
        %v934 = vpop.permute.xlu0 %933
        %935 = vrot.lane.b32.xlu0 %v355, 16
        %v936 = vpop.permute.xlu0 %935
        %937 = vrot.lane.b32.xlu0 %v356, 16
        %v938 = vpop.permute.xlu0 %937
        %939 = vrot.lane.b32.xlu0 %v357, 16
        %v940 = vpop.permute.xlu0 %939
        %941 = vrot.lane.b32.xlu0 %v358, 16
        %v942 = vpop.permute.xlu0 %941
        %943 = vrot.lane.b32.xlu0 %v359, 16
        %v944 = vpop.permute.xlu0 %943
        %945 = vrot.lane.b32.xlu0 %v360, 16
        %v946 = vpop.permute.xlu0 %945
        %947 = vrot.lane.b32.xlu0 %v361, 16
        %v948 = vpop.permute.xlu0 %947
        %949 = vrot.lane.b32.xlu0 %v362, 16
        %v950 = vpop.permute.xlu0 %949
        %951 = vrot.lane.b32.xlu0 %v363, 16
        %v952 = vpop.permute.xlu0 %951
        %953 = vrot.lane.b32.xlu0 %v364, 16
        %v954 = vpop.permute.xlu0 %953
        %955 = vrot.lane.b32.xlu0 %v365, 16
        %v956 = vpop.permute.xlu0 %955
        %957 = vrot.lane.b32.xlu0 %v366, 16
        %v958 = vpop.permute.xlu0 %957
        %959 = vrot.lane.b32.xlu0 %v367, 16
        %v960 = vpop.permute.xlu0 %959
        %961 = vrot.lane.b32.xlu0 %v368, 16
        %v962 = vpop.permute.xlu0 %961
        %963 = vrot.lane.b32.xlu0 %v369, 16
        %v964 = vpop.permute.xlu0 %963
        %965 = vrot.lane.b32.xlu0 %v370, 16
        %v966 = vpop.permute.xlu0 %965
        %967 = vrot.lane.b32.xlu0 %v371, 16
        %v968 = vpop.permute.xlu0 %967
        %969 = vrot.lane.b32.xlu0 %v372, 16
        %v970 = vpop.permute.xlu0 %969
        %971 = vrot.lane.b32.xlu0 %v373, 16
        %v972 = vpop.permute.xlu0 %971
        %973 = vrot.lane.b32.xlu0 %v374, 16
        %v974 = vpop.permute.xlu0 %973
        %975 = vrot.lane.b32.xlu0 %v375, 16
        %v976 = vpop.permute.xlu0 %975
        %977 = vrot.lane.b32.xlu0 %v376, 16
        %v978 = vpop.permute.xlu0 %977
        %979 = vrot.lane.b32.xlu0 %v377, 16
        %v980 = vpop.permute.xlu0 %979
        %981 = vrot.lane.b32.xlu0 %v378, 16
        %v982 = vpop.permute.xlu0 %981
        %983 = vrot.lane.b32.xlu0 %v379, 16
        %v984 = vpop.permute.xlu0 %983
        %985 = vrot.lane.b32.xlu0 %v380, 16
        %v986 = vpop.permute.xlu0 %985
        %987 = vrot.lane.b32.xlu0 %v381, 16
        %v988 = vpop.permute.xlu0 %987
        %989 = vrot.lane.b32.xlu0 %v382, 16
        %v990 = vpop.permute.xlu0 %989
        %991 = vrot.lane.b32.xlu0 %v383, 16
        %v992 = vpop.permute.xlu0 %991
        %1057 = vrot.lane.b32.xlu0 %v384, 20
        %v1058 = vpop.permute.xlu0 %1057
        %1059 = vrot.lane.b32.xlu0 %v385, 20
        %v1060 = vpop.permute.xlu0 %1059
        %1061 = vrot.lane.b32.xlu0 %v386, 20
        %v1062 = vpop.permute.xlu0 %1061
        %1063 = vrot.lane.b32.xlu0 %v387, 20
        %v1064 = vpop.permute.xlu0 %1063
        %1065 = vrot.lane.b32.xlu0 %v388, 20
        %v1066 = vpop.permute.xlu0 %1065
        %1067 = vrot.lane.b32.xlu0 %v389, 20
        %v1068 = vpop.permute.xlu0 %1067
        %1069 = vrot.lane.b32.xlu0 %v390, 20
        %v1070 = vpop.permute.xlu0 %1069
        %1071 = vrot.lane.b32.xlu0 %v391, 20
        %v1072 = vpop.permute.xlu0 %1071
        %1073 = vrot.lane.b32.xlu0 %v392, 20
        %v1074 = vpop.permute.xlu0 %1073
        %1075 = vrot.lane.b32.xlu0 %v393, 20
        %v1076 = vpop.permute.xlu0 %1075
        %1077 = vrot.lane.b32.xlu0 %v394, 20
        %v1078 = vpop.permute.xlu0 %1077
        %1079 = vrot.lane.b32.xlu0 %v395, 20
        %v1080 = vpop.permute.xlu0 %1079
        %1081 = vrot.lane.b32.xlu0 %v396, 20
        %v1082 = vpop.permute.xlu0 %1081
        %1083 = vrot.lane.b32.xlu0 %v397, 20
        %v1084 = vpop.permute.xlu0 %1083
        %1085 = vrot.lane.b32.xlu0 %v398, 20
        %v1086 = vpop.permute.xlu0 %1085
        %1087 = vrot.lane.b32.xlu0 %v399, 20
        %v1088 = vpop.permute.xlu0 %1087
        %1089 = vrot.lane.b32.xlu0 %v400, 20
        %v1090 = vpop.permute.xlu0 %1089
        %1091 = vrot.lane.b32.xlu0 %v401, 20
        %v1092 = vpop.permute.xlu0 %1091
        %1093 = vrot.lane.b32.xlu0 %v402, 20
        %v1094 = vpop.permute.xlu0 %1093
        %1095 = vrot.lane.b32.xlu0 %v403, 20
        %v1096 = vpop.permute.xlu0 %1095
        %1097 = vrot.lane.b32.xlu0 %v404, 20
        %v1098 = vpop.permute.xlu0 %1097
        %1099 = vrot.lane.b32.xlu0 %v405, 20
        %v1100 = vpop.permute.xlu0 %1099
        %1101 = vrot.lane.b32.xlu0 %v406, 20
        %v1102 = vpop.permute.xlu0 %1101
        %1103 = vrot.lane.b32.xlu0 %v407, 20
        %v1104 = vpop.permute.xlu0 %1103
        %1105 = vrot.lane.b32.xlu0 %v408, 20
        %v1106 = vpop.permute.xlu0 %1105
        %1107 = vrot.lane.b32.xlu0 %v409, 20
        %v1108 = vpop.permute.xlu0 %1107
        %1109 = vrot.lane.b32.xlu0 %v410, 20
        %v1110 = vpop.permute.xlu0 %1109
        %1111 = vrot.lane.b32.xlu0 %v411, 20
        %v1112 = vpop.permute.xlu0 %1111
        %1113 = vrot.lane.b32.xlu0 %v412, 20
        %v1114 = vpop.permute.xlu0 %1113
        %1115 = vrot.lane.b32.xlu0 %v413, 20
        %v1116 = vpop.permute.xlu0 %1115
        %1117 = vrot.lane.b32.xlu0 %v414, 20
        %v1118 = vpop.permute.xlu0 %1117
        %1119 = vrot.lane.b32.xlu0 %v415, 20
        %v1120 = vpop.permute.xlu0 %1119
        %1185 = vrot.lane.b32.xlu0 %v417, 24
        %v1186 = vpop.permute.xlu0 %1185
        %1187 = vrot.lane.b32.xlu0 %v418, 24
        %v1188 = vpop.permute.xlu0 %1187
        %1189 = vrot.lane.b32.xlu0 %v419, 24
        %v1190 = vpop.permute.xlu0 %1189
        %1191 = vrot.lane.b32.xlu0 %v420, 24
        %v1192 = vpop.permute.xlu0 %1191
        %1193 = vrot.lane.b32.xlu0 %v421, 24
        %v1194 = vpop.permute.xlu0 %1193
        %1195 = vrot.lane.b32.xlu0 %v422, 24
        %v1196 = vpop.permute.xlu0 %1195
        %1197 = vrot.lane.b32.xlu0 %v423, 24
        %v1198 = vpop.permute.xlu0 %1197
        %1199 = vrot.lane.b32.xlu0 %v424, 24
        %v1200 = vpop.permute.xlu0 %1199
        %1201 = vrot.lane.b32.xlu0 %v425, 24
        %v1202 = vpop.permute.xlu0 %1201
        %1203 = vrot.lane.b32.xlu0 %v426, 24
        %v1204 = vpop.permute.xlu0 %1203
        %1205 = vrot.lane.b32.xlu0 %v427, 24
        %v1206 = vpop.permute.xlu0 %1205
        %1207 = vrot.lane.b32.xlu0 %v428, 24
        %v1208 = vpop.permute.xlu0 %1207
        %1209 = vrot.lane.b32.xlu0 %v429, 24
        %v1210 = vpop.permute.xlu0 %1209
        %1211 = vrot.lane.b32.xlu0 %v430, 24
        %v1212 = vpop.permute.xlu0 %1211
        %1213 = vrot.lane.b32.xlu0 %v431, 24
        %v1214 = vpop.permute.xlu0 %1213
        %1215 = vrot.lane.b32.xlu0 %v432, 24
        %v1216 = vpop.permute.xlu0 %1215
        %1217 = vrot.lane.b32.xlu0 %v433, 24
        %v1218 = vpop.permute.xlu0 %1217
        %1219 = vrot.lane.b32.xlu0 %v434, 24
        %v1220 = vpop.permute.xlu0 %1219
        %1221 = vrot.lane.b32.xlu0 %v435, 24
        %v1222 = vpop.permute.xlu0 %1221
        %1223 = vrot.lane.b32.xlu0 %v436, 24
        %v1224 = vpop.permute.xlu0 %1223
        %1225 = vrot.lane.b32.xlu0 %v437, 24
        %v1226 = vpop.permute.xlu0 %1225
        %1227 = vrot.lane.b32.xlu0 %v438, 24
        %v1228 = vpop.permute.xlu0 %1227
        %1229 = vrot.lane.b32.xlu0 %v439, 24
        %v1230 = vpop.permute.xlu0 %1229
        %1231 = vrot.lane.b32.xlu0 %v440, 24
        %v1232 = vpop.permute.xlu0 %1231
        %1233 = vrot.lane.b32.xlu0 %v441, 24
        %v1234 = vpop.permute.xlu0 %1233
        %1235 = vrot.lane.b32.xlu0 %v442, 24
        %v1236 = vpop.permute.xlu0 %1235
        %1237 = vrot.lane.b32.xlu0 %v443, 24
        %v1238 = vpop.permute.xlu0 %1237
        %1239 = vrot.lane.b32.xlu0 %v444, 24
        %v1240 = vpop.permute.xlu0 %1239
        %1241 = vrot.lane.b32.xlu0 %v445, 24
        %v1242 = vpop.permute.xlu0 %1241
        %1243 = vrot.lane.b32.xlu0 %v446, 24
        %v1244 = vpop.permute.xlu0 %1243
        %1245 = vrot.lane.b32.xlu0 %v447, 24
        %v1246 = vpop.permute.xlu0 %1245
        %1247 = vrot.lane.b32.xlu0 %v448, 24
        %v1248 = vpop.permute.xlu0 %1247
        %1313 = vrot.lane.b32.xlu0 %v449, 28
        %v1314 = vpop.permute.xlu0 %1313
        %1315 = vrot.lane.b32.xlu0 %v450, 28
        %v1316 = vpop.permute.xlu0 %1315
        %1317 = vrot.lane.b32.xlu0 %v451, 28
        %v1318 = vpop.permute.xlu0 %1317
        %1319 = vrot.lane.b32.xlu0 %v452, 28
        %v1320 = vpop.permute.xlu0 %1319
        %1321 = vrot.lane.b32.xlu0 %v453, 28
        %v1322 = vpop.permute.xlu0 %1321
        %1323 = vrot.lane.b32.xlu0 %v454, 28
        %v1324 = vpop.permute.xlu0 %1323
        %1325 = vrot.lane.b32.xlu0 %v455, 28
        %v1326 = vpop.permute.xlu0 %1325
        %1327 = vrot.lane.b32.xlu0 %v456, 28
        %v1328 = vpop.permute.xlu0 %1327
        %1329 = vrot.lane.b32.xlu0 %v457, 28
        %v1330 = vpop.permute.xlu0 %1329
        %1331 = vrot.lane.b32.xlu0 %v458, 28
        %v1332 = vpop.permute.xlu0 %1331
        %1333 = vrot.lane.b32.xlu0 %v459, 28
        %v1334 = vpop.permute.xlu0 %1333
        %1335 = vrot.lane.b32.xlu0 %v460, 28
        %v1336 = vpop.permute.xlu0 %1335
        %1337 = vrot.lane.b32.xlu0 %v461, 28
        %v1338 = vpop.permute.xlu0 %1337
        %1339 = vrot.lane.b32.xlu0 %v462, 28
        %v1340 = vpop.permute.xlu0 %1339
        %1341 = vrot.lane.b32.xlu0 %v463, 28
        %v1342 = vpop.permute.xlu0 %1341
        %1343 = vrot.lane.b32.xlu0 %v464, 28
        %v1344 = vpop.permute.xlu0 %1343
        %1345 = vrot.lane.b32.xlu0 %v465, 28
        %v1346 = vpop.permute.xlu0 %1345
        %1347 = vrot.lane.b32.xlu0 %v466, 28
        %v1348 = vpop.permute.xlu0 %1347
        %1349 = vrot.lane.b32.xlu0 %v467, 28
        %v1350 = vpop.permute.xlu0 %1349
        %1351 = vrot.lane.b32.xlu0 %v468, 28
        %v1352 = vpop.permute.xlu0 %1351
        %1353 = vrot.lane.b32.xlu0 %v469, 28
        %v1354 = vpop.permute.xlu0 %1353
        %1355 = vrot.lane.b32.xlu0 %v470, 28
        %v1356 = vpop.permute.xlu0 %1355
        %1357 = vrot.lane.b32.xlu0 %v471, 28
        %v1358 = vpop.permute.xlu0 %1357
        %1359 = vrot.lane.b32.xlu0 %v472, 28
        %v1360 = vpop.permute.xlu0 %1359
        %1361 = vrot.lane.b32.xlu0 %v473, 28
        %v1362 = vpop.permute.xlu0 %1361
        %1363 = vrot.lane.b32.xlu0 %v474, 28
        %v1364 = vpop.permute.xlu0 %1363
        %1365 = vrot.lane.b32.xlu0 %v475, 28
        %v1366 = vpop.permute.xlu0 %1365
        %1367 = vrot.lane.b32.xlu0 %v476, 28
        %v1368 = vpop.permute.xlu0 %1367
        %1369 = vrot.lane.b32.xlu0 %v477, 28
        %v1370 = vpop.permute.xlu0 %1369
        %1371 = vrot.lane.b32.xlu0 %v478, 28
        %v1372 = vpop.permute.xlu0 %1371
        %1373 = vrot.lane.b32.xlu0 %v479, 28
        %v1374 = vpop.permute.xlu0 %1373
        %1375 = vrot.lane.b32.xlu0 %v480, 28
        %v1376 = vpop.permute.xlu0 %1375
        %1441 = vrot.lane.b32.xlu0 %v481, 32
        %v1442 = vpop.permute.xlu0 %1441
        %1443 = vrot.lane.b32.xlu0 %v482, 32
        %v1444 = vpop.permute.xlu0 %1443
        %1445 = vrot.lane.b32.xlu0 %v483, 32
        %v1446 = vpop.permute.xlu0 %1445
        %1447 = vrot.lane.b32.xlu0 %v484, 32
        %v1448 = vpop.permute.xlu0 %1447
        %1449 = vrot.lane.b32.xlu0 %v485, 32
        %v1450 = vpop.permute.xlu0 %1449
        %1451 = vrot.lane.b32.xlu0 %v486, 32
        %v1452 = vpop.permute.xlu0 %1451
        %1453 = vrot.lane.b32.xlu0 %v487, 32
        %v1454 = vpop.permute.xlu0 %1453
        %1455 = vrot.lane.b32.xlu0 %v488, 32
        %v1456 = vpop.permute.xlu0 %1455
        %1457 = vrot.lane.b32.xlu0 %v489, 32
        %v1458 = vpop.permute.xlu0 %1457
        %1459 = vrot.lane.b32.xlu0 %v490, 32
        %v1460 = vpop.permute.xlu0 %1459
        %1461 = vrot.lane.b32.xlu0 %v491, 32
        %v1462 = vpop.permute.xlu0 %1461
        %1463 = vrot.lane.b32.xlu0 %v492, 32
        %v1464 = vpop.permute.xlu0 %1463
        %1465 = vrot.lane.b32.xlu0 %v493, 32
        %v1466 = vpop.permute.xlu0 %1465
        %1467 = vrot.lane.b32.xlu0 %v494, 32
        %v1468 = vpop.permute.xlu0 %1467
        %1469 = vrot.lane.b32.xlu0 %v495, 32
        %v1470 = vpop.permute.xlu0 %1469
        %1471 = vrot.lane.b32.xlu0 %v496, 32
        %v1472 = vpop.permute.xlu0 %1471
        %1473 = vrot.lane.b32.xlu0 %v497, 32
        %v1474 = vpop.permute.xlu0 %1473
        %1475 = vrot.lane.b32.xlu0 %v498, 32
        %v1476 = vpop.permute.xlu0 %1475
        %1477 = vrot.lane.b32.xlu0 %v499, 32
        %v1478 = vpop.permute.xlu0 %1477
        %1479 = vrot.lane.b32.xlu0 %v500, 32
        %v1480 = vpop.permute.xlu0 %1479
        %1481 = vrot.lane.b32.xlu0 %v501, 32
        %v1482 = vpop.permute.xlu0 %1481
        %1483 = vrot.lane.b32.xlu0 %v502, 32
        %v1484 = vpop.permute.xlu0 %1483
        %1485 = vrot.lane.b32.xlu0 %v503, 32
        %v1486 = vpop.permute.xlu0 %1485
        %1487 = vrot.lane.b32.xlu0 %v504, 32
        %v1488 = vpop.permute.xlu0 %1487
        %1489 = vrot.lane.b32.xlu0 %v505, 32
        %v1490 = vpop.permute.xlu0 %1489
        %1491 = vrot.lane.b32.xlu0 %v506, 32
        %v1492 = vpop.permute.xlu0 %1491
        %1493 = vrot.lane.b32.xlu0 %v507, 32
        %v1494 = vpop.permute.xlu0 %1493
        %1495 = vrot.lane.b32.xlu0 %v508, 32
        %v1496 = vpop.permute.xlu0 %1495
        %1497 = vrot.lane.b32.xlu0 %v509, 32
        %v1498 = vpop.permute.xlu0 %1497
        %1499 = vrot.lane.b32.xlu0 %v510, 32
        %v1500 = vpop.permute.xlu0 %1499
        %1501 = vrot.lane.b32.xlu0 %v511, 32
        %v1502 = vpop.permute.xlu0 %1501
        %1503 = vrot.lane.b32.xlu0 %v512, 32
        %v1504 = vpop.permute.xlu0 %1503
        %vm1537 = vcmask 31744
        %v1538 = vsel %vm1537, %v223, %v546
        %v1539 = vsel %vm1537, %v224, %v548
        %v1540 = vsel %vm1537, %v225, %v550
        %v1541 = vsel %vm1537, %v226, %v552
        %v1542 = vsel %vm1537, %v227, %v554
        %v1543 = vsel %vm1537, %v228, %v556
        %v1544 = vsel %vm1537, %v229, %v558
        %v1545 = vsel %vm1537, %v230, %v560
        %v1546 = vsel %vm1537, %v231, %v562
        %v1547 = vsel %vm1537, %v232, %v564
        %v1548 = vsel %vm1537, %v233, %v566
        %v1549 = vsel %vm1537, %v234, %v568
        %v1550 = vsel %vm1537, %v235, %v570
        %v1551 = vsel %vm1537, %v236, %v572
        %v1552 = vsel %vm1537, %v237, %v574
        %v1553 = vsel %vm1537, %v238, %v576
        %v1554 = vsel %vm1537, %v239, %v578
        %v1555 = vsel %vm1537, %v240, %v580
        %v1556 = vsel %vm1537, %v241, %v582
        %v1557 = vsel %vm1537, %v242, %v584
        %v1558 = vsel %vm1537, %v243, %v586
        %v1559 = vsel %vm1537, %v244, %v588
        %v1560 = vsel %vm1537, %v245, %v590
        %v1561 = vsel %vm1537, %v246, %v592
        %v1562 = vsel %vm1537, %v247, %v594
        %v1563 = vsel %vm1537, %v248, %v596
        %v1564 = vsel %vm1537, %v249, %v598
        %v1565 = vsel %vm1537, %v250, %v600
        %v1566 = vsel %vm1537, %v251, %v602
        %v1567 = vsel %vm1537, %v252, %v604
        %v1568 = vsel %vm1537, %v253, %v606
        %v1569 = vsel %vm1537, %v254, %v608
        %vm1570 = vcmask 64512
        %v1571 = vsel %vm1570, %v1538, %v674
        %v1572 = vsel %vm1570, %v1539, %v676
        %v1573 = vsel %vm1570, %v1540, %v678
        %v1574 = vsel %vm1570, %v1541, %v680
        %v1575 = vsel %vm1570, %v1542, %v682
        %v1576 = vsel %vm1570, %v1543, %v684
        %v1577 = vsel %vm1570, %v1544, %v686
        %v1578 = vsel %vm1570, %v1545, %v688
        %v1579 = vsel %vm1570, %v1546, %v690
        %v1580 = vsel %vm1570, %v1547, %v692
        %v1581 = vsel %vm1570, %v1548, %v694
        %v1582 = vsel %vm1570, %v1549, %v696
        %v1583 = vsel %vm1570, %v1550, %v698
        %v1584 = vsel %vm1570, %v1551, %v700
        %v1585 = vsel %vm1570, %v1552, %v702
        %v1586 = vsel %vm1570, %v1553, %v704
        %v1587 = vsel %vm1570, %v1554, %v706
        %v1588 = vsel %vm1570, %v1555, %v708
        %v1589 = vsel %vm1570, %v1556, %v710
        %v1590 = vsel %vm1570, %v1557, %v712
        %v1591 = vsel %vm1570, %v1558, %v714
        %v1592 = vsel %vm1570, %v1559, %v716
        %v1593 = vsel %vm1570, %v1560, %v718
        %v1594 = vsel %vm1570, %v1561, %v720
        %v1595 = vsel %vm1570, %v1562, %v722
        %v1596 = vsel %vm1570, %v1563, %v724
        %v1597 = vsel %vm1570, %v1564, %v726
        %v1598 = vsel %vm1570, %v1565, %v728
        %v1599 = vsel %vm1570, %v1566, %v730
        %v1600 = vsel %vm1570, %v1567, %v732
        %v1601 = vsel %vm1570, %v1568, %v734
        %v1602 = vsel %vm1570, %v1569, %v736
        %vm1603 = vcmask 97280
        %v1604 = vsel %vm1603, %v1571, %v802
        %v1605 = vsel %vm1603, %v1572, %v804
        %v1606 = vsel %vm1603, %v1573, %v806
        %v1607 = vsel %vm1603, %v1574, %v808
        %v1608 = vsel %vm1603, %v1575, %v810
        %v1609 = vsel %vm1603, %v1576, %v812
        %v1610 = vsel %vm1603, %v1577, %v814
        %v1611 = vsel %vm1603, %v1578, %v816
        %v1612 = vsel %vm1603, %v1579, %v818
        %v1613 = vsel %vm1603, %v1580, %v820
        %v1614 = vsel %vm1603, %v1581, %v822
        %v1615 = vsel %vm1603, %v1582, %v824
        %v1616 = vsel %vm1603, %v1583, %v826
        %v1617 = vsel %vm1603, %v1584, %v828
        %v1618 = vsel %vm1603, %v1585, %v830
        %v1619 = vsel %vm1603, %v1586, %v832
        %v1620 = vsel %vm1603, %v1587, %v834
        %v1621 = vsel %vm1603, %v1588, %v836
        %v1622 = vsel %vm1603, %v1589, %v838
        %v1623 = vsel %vm1603, %v1590, %v840
        %v1624 = vsel %vm1603, %v1591, %v842
        %v1625 = vsel %vm1603, %v1592, %v844
        %v1626 = vsel %vm1603, %v1593, %v846
        %v1627 = vsel %vm1603, %v1594, %v848
        %v1628 = vsel %vm1603, %v1595, %v850
        %v1629 = vsel %vm1603, %v1596, %v852
        %v1630 = vsel %vm1603, %v1597, %v854
        %v1631 = vsel %vm1603, %v1598, %v856
        %v1632 = vsel %vm1603, %v1599, %v858
        %v1633 = vsel %vm1603, %v1600, %v860
        %v1634 = vsel %vm1603, %v1601, %v862
        %v1635 = vsel %vm1603, %v1602, %v864
        %vm1636 = vcmask 130048
        %v1637 = vsel %vm1636, %v1604, %v930
        %v1638 = vsel %vm1636, %v1605, %v932
        %v1639 = vsel %vm1636, %v1606, %v934
        %v1640 = vsel %vm1636, %v1607, %v936
        %v1641 = vsel %vm1636, %v1608, %v938
        %v1642 = vsel %vm1636, %v1609, %v940
        %v1643 = vsel %vm1636, %v1610, %v942
        %v1644 = vsel %vm1636, %v1611, %v944
        %v1645 = vsel %vm1636, %v1612, %v946
        %v1646 = vsel %vm1636, %v1613, %v948
        %v1647 = vsel %vm1636, %v1614, %v950
        %v1648 = vsel %vm1636, %v1615, %v952
        %v1649 = vsel %vm1636, %v1616, %v954
        %v1650 = vsel %vm1636, %v1617, %v956
        %v1651 = vsel %vm1636, %v1618, %v958
        %v1652 = vsel %vm1636, %v1619, %v960
        %v1653 = vsel %vm1636, %v1620, %v962
        %v1654 = vsel %vm1636, %v1621, %v964
        %v1655 = vsel %vm1636, %v1622, %v966
        %v1656 = vsel %vm1636, %v1623, %v968
        %v1657 = vsel %vm1636, %v1624, %v970
        %v1658 = vsel %vm1636, %v1625, %v972
        %v1659 = vsel %vm1636, %v1626, %v974
        %v1660 = vsel %vm1636, %v1627, %v976
        %v1661 = vsel %vm1636, %v1628, %v978
        %v1662 = vsel %vm1636, %v1629, %v980
        %v1663 = vsel %vm1636, %v1630, %v982
        %v1664 = vsel %vm1636, %v1631, %v984
        %v1665 = vsel %vm1636, %v1632, %v986
        %v1666 = vsel %vm1636, %v1633, %v988
        %v1667 = vsel %vm1636, %v1634, %v990
        %v1668 = vsel %vm1636, %v1635, %v992
        %vm1669 = vcmask 162816
        %v1670 = vsel %vm1669, %v1637, %v1058
        %v1671 = vsel %vm1669, %v1638, %v1060
        %v1672 = vsel %vm1669, %v1639, %v1062
        %v1673 = vsel %vm1669, %v1640, %v1064
        %v1674 = vsel %vm1669, %v1641, %v1066
        %v1675 = vsel %vm1669, %v1642, %v1068
        %v1676 = vsel %vm1669, %v1643, %v1070
        %v1677 = vsel %vm1669, %v1644, %v1072
        %v1678 = vsel %vm1669, %v1645, %v1074
        %v1679 = vsel %vm1669, %v1646, %v1076
        %v1680 = vsel %vm1669, %v1647, %v1078
        %v1681 = vsel %vm1669, %v1648, %v1080
        %v1682 = vsel %vm1669, %v1649, %v1082
        %v1683 = vsel %vm1669, %v1650, %v1084
        %v1684 = vsel %vm1669, %v1651, %v1086
        %v1685 = vsel %vm1669, %v1652, %v1088
        %v1686 = vsel %vm1669, %v1653, %v1090
        %v1687 = vsel %vm1669, %v1654, %v1092
        %v1688 = vsel %vm1669, %v1655, %v1094
        %v1689 = vsel %vm1669, %v1656, %v1096
        %v1690 = vsel %vm1669, %v1657, %v1098
        %v1691 = vsel %vm1669, %v1658, %v1100
        %v1692 = vsel %vm1669, %v1659, %v1102
        %v1693 = vsel %vm1669, %v1660, %v1104
        %v1694 = vsel %vm1669, %v1661, %v1106
        %v1695 = vsel %vm1669, %v1662, %v1108
        %v1696 = vsel %vm1669, %v1663, %v1110
        %v1697 = vsel %vm1669, %v1664, %v1112
        %v1698 = vsel %vm1669, %v1665, %v1114
        %v1699 = vsel %vm1669, %v1666, %v1116
        %v1700 = vsel %vm1669, %v1667, %v1118
        %v1701 = vsel %vm1669, %v1668, %v1120
        %vm1702 = vcmask 195584
        %v1703 = vsel %vm1702, %v1670, %v1186
        %v1704 = vsel %vm1702, %v1671, %v1188
        %v1705 = vsel %vm1702, %v1672, %v1190
        %v1706 = vsel %vm1702, %v1673, %v1192
        %v1707 = vsel %vm1702, %v1674, %v1194
        %v1708 = vsel %vm1702, %v1675, %v1196
        %v1709 = vsel %vm1702, %v1676, %v1198
        %v1710 = vsel %vm1702, %v1677, %v1200
        %v1711 = vsel %vm1702, %v1678, %v1202
        %v1712 = vsel %vm1702, %v1679, %v1204
        %v1713 = vsel %vm1702, %v1680, %v1206
        %v1714 = vsel %vm1702, %v1681, %v1208
        %v1715 = vsel %vm1702, %v1682, %v1210
        %v1716 = vsel %vm1702, %v1683, %v1212
        %v1717 = vsel %vm1702, %v1684, %v1214
        %v1718 = vsel %vm1702, %v1685, %v1216
        %v1719 = vsel %vm1702, %v1686, %v1218
        %v1720 = vsel %vm1702, %v1687, %v1220
        %v1721 = vsel %vm1702, %v1688, %v1222
        %v1722 = vsel %vm1702, %v1689, %v1224
        %v1723 = vsel %vm1702, %v1690, %v1226
        %v1724 = vsel %vm1702, %v1691, %v1228
        %v1725 = vsel %vm1702, %v1692, %v1230
        %v1726 = vsel %vm1702, %v1693, %v1232
        %v1727 = vsel %vm1702, %v1694, %v1234
        %v1728 = vsel %vm1702, %v1695, %v1236
        %v1729 = vsel %vm1702, %v1696, %v1238
        %v1730 = vsel %vm1702, %v1697, %v1240
        %v1731 = vsel %vm1702, %v1698, %v1242
        %v1732 = vsel %vm1702, %v1699, %v1244
        %v1733 = vsel %vm1702, %v1700, %v1246
        %v1734 = vsel %vm1702, %v1701, %v1248
        %vm1735 = vcmask 228352
        %v1736 = vsel %vm1735, %v1703, %v1314
        %v1737 = vsel %vm1735, %v1704, %v1316
        %v1738 = vsel %vm1735, %v1705, %v1318
        %v1739 = vsel %vm1735, %v1706, %v1320
        %v1740 = vsel %vm1735, %v1707, %v1322
        %v1741 = vsel %vm1735, %v1708, %v1324
        %v1742 = vsel %vm1735, %v1709, %v1326
        %v1743 = vsel %vm1735, %v1710, %v1328
        %v1744 = vsel %vm1735, %v1711, %v1330
        %v1745 = vsel %vm1735, %v1712, %v1332
        %v1746 = vsel %vm1735, %v1713, %v1334
        %v1747 = vsel %vm1735, %v1714, %v1336
        %v1748 = vsel %vm1735, %v1715, %v1338
        %v1749 = vsel %vm1735, %v1716, %v1340
        %v1750 = vsel %vm1735, %v1717, %v1342
        %v1751 = vsel %vm1735, %v1718, %v1344
        %v1752 = vsel %vm1735, %v1719, %v1346
        %v1753 = vsel %vm1735, %v1720, %v1348
        %v1754 = vsel %vm1735, %v1721, %v1350
        %v1755 = vsel %vm1735, %v1722, %v1352
        %v1756 = vsel %vm1735, %v1723, %v1354
        %v1757 = vsel %vm1735, %v1724, %v1356
        %v1758 = vsel %vm1735, %v1725, %v1358
        %v1759 = vsel %vm1735, %v1726, %v1360
        %v1760 = vsel %vm1735, %v1727, %v1362
        %v1761 = vsel %vm1735, %v1728, %v1364
        %v1762 = vsel %vm1735, %v1729, %v1366
        %v1763 = vsel %vm1735, %v1730, %v1368
        %v1764 = vsel %vm1735, %v1731, %v1370
        %v1765 = vsel %vm1735, %v1732, %v1372
        %v1766 = vsel %vm1735, %v1733, %v1374
        %v1767 = vsel %vm1735, %v1734, %v1376
        %vm1768 = vcmask 261120
        %v1769 = vsel %vm1768, %v1736, %v1442
        %v1770 = vsel %vm1768, %v1737, %v1444
        %v1771 = vsel %vm1768, %v1738, %v1446
        %v1772 = vsel %vm1768, %v1739, %v1448
        %v1773 = vsel %vm1768, %v1740, %v1450
        %v1774 = vsel %vm1768, %v1741, %v1452
        %v1775 = vsel %vm1768, %v1742, %v1454
        %v1776 = vsel %vm1768, %v1743, %v1456
        %v1777 = vsel %vm1768, %v1744, %v1458
        %v1778 = vsel %vm1768, %v1745, %v1460
        %v1779 = vsel %vm1768, %v1746, %v1462
        %v1780 = vsel %vm1768, %v1747, %v1464
        %v1781 = vsel %vm1768, %v1748, %v1466
        %v1782 = vsel %vm1768, %v1749, %v1468
        %v1783 = vsel %vm1768, %v1750, %v1470
        %v1784 = vsel %vm1768, %v1751, %v1472
        %v1785 = vsel %vm1768, %v1752, %v1474
        %v1786 = vsel %vm1768, %v1753, %v1476
        %v1787 = vsel %vm1768, %v1754, %v1478
        %v1788 = vsel %vm1768, %v1755, %v1480
        %v1789 = vsel %vm1768, %v1756, %v1482
        %v1790 = vsel %vm1768, %v1757, %v1484
        %v1791 = vsel %vm1768, %v1758, %v1486
        %v1792 = vsel %vm1768, %v1759, %v1488
        %v1793 = vsel %vm1768, %v1760, %v1490
        %v1794 = vsel %vm1768, %v1761, %v1492
        %v1795 = vsel %vm1768, %v1762, %v1494
        %v1796 = vsel %vm1768, %v1763, %v1496
        %v1797 = vsel %vm1768, %v1764, %v1498
        %v1798 = vsel %vm1768, %v1765, %v1500
        %v1799 = vsel %vm1768, %v1766, %v1502
        %v1800 = vsel %vm1768, %v1767, %v1504
        %v1801 = vld [vmem:[%s1] sm:$0xff]
        %v1802 = vld [vmem:[%s1 + $0x8] sm:$0xff]
        %v1803 = vld [vmem:[%s1 + $0x10] sm:$0xff]
        %v1804 = vld [vmem:[%s1 + $0x18] sm:$0xff]
        %v1805 = vld [vmem:[%s1 + $0x20] sm:$0xf]
        %v1806 = vld [vmem:[%s2] sm:$0x1]
        %v1808 = vlaneseq
        %v1809 = vshrl.u32 %v1808, 7
        %v1810 = vsub.s32 0, %v1809
        %v1811 = vrot.slane %v1806, %v1810
        %vm1813 = vcmask 293888
        %v1815 = vsel %vm1813, %v1769, 0
        %v1818 = vsel %vm1813, %v1770, 0
        %v1821 = vsel %vm1813, %v1771, 0
        %v1824 = vsel %vm1813, %v1772, 0
        %v1827 = vsel %vm1813, %v1773, 0
        %v1830 = vsel %vm1813, %v1774, 0
        %v1833 = vsel %vm1813, %v1775, 0
        %v1836 = vsel %vm1813, %v1776, 0
        %v1839 = vsel %vm1813, %v1777, 0
        %v1842 = vsel %vm1813, %v1778, 0
        %v1845 = vsel %vm1813, %v1779, 0
        %v1848 = vsel %vm1813, %v1780, 0
        %v1851 = vsel %vm1813, %v1781, 0
        %v1854 = vsel %vm1813, %v1782, 0
        %v1857 = vsel %vm1813, %v1783, 0
        %v1860 = vsel %vm1813, %v1784, 0
        %v1863 = vsel %vm1813, %v1785, 0
        %v1866 = vsel %vm1813, %v1786, 0
        %v1869 = vsel %vm1813, %v1787, 0
        %v1872 = vsel %vm1813, %v1788, 0
        %v1875 = vsel %vm1813, %v1789, 0
        %v1878 = vsel %vm1813, %v1790, 0
        %v1881 = vsel %vm1813, %v1791, 0
        %v1884 = vsel %vm1813, %v1792, 0
        %v1887 = vsel %vm1813, %v1793, 0
        %v1890 = vsel %vm1813, %v1794, 0
        %v1893 = vsel %vm1813, %v1795, 0
        %v1896 = vsel %vm1813, %v1796, 0
        %v1899 = vsel %vm1813, %v1797, 0
        %v1902 = vsel %vm1813, %v1798, 0
        %v1905 = vsel %vm1813, %v1799, 0
        %v1908 = vsel %vm1813, %v1800, 0
        %vm1910 = vcmask 1043456
        %v1912 = vsel %vm1910, %v1805, 0
        %1914 = vmatprep.subr.mxu0 0.0
        %1915 = vmatpush1.msra.mxu0 %v1801
        %1916 = vmatprep.subr.mxu0 0.0
        %1917 = vmatpush1.msra.mxu0 %v1802
        %1918 = vmatprep.subr.mxu0 0.0
        %1919 = vmatpush1.msra.mxu0 %v1803
        %1920 = vmatprep.subr.mxu0 0.0
        %1921 = vmatpush1.msra.mxu0 %v1804
        %1922 = vmatprep.subr.mxu0 0.0
        %1923 = vmatpush1.msra.mxu0 %v1912
        %1924 = vmatprep.subr.mxu0 0.0
        %1925 = vmatpush1.msra.mxu0 0.0
        %1926 = vmatprep.subr.mxu0 0.0
        %1927 = vmatpush1.msra.mxu0 0.0
        %1928 = vmatprep.subr.mxu0 0.0
        %1929 = vmatpush1.msra.mxu0 0.0
        %1930 = vmatprep.subr.mxu0 0.0
        %1931 = vmatpush1.msra.mxu0 0.0
        %1932 = vmatprep.subr.mxu0 0.0
        %1933 = vmatpush1.msra.mxu0 0.0
        %1934 = vmatprep.subr.mxu0 0.0
        %1935 = vmatpush1.msra.mxu0 0.0
        %1936 = vmatprep.subr.mxu0 0.0
        %1937 = vmatpush1.msra.mxu0 0.0
        %1938 = vmatprep.subr.mxu0 0.0
        %1939 = vmatpush1.msra.mxu0 0.0
        %1940 = vmatprep.subr.mxu0 0.0
        %1941 = vmatpush1.msra.mxu0 0.0
        %1942 = vmatprep.subr.mxu0 0.0
        %1943 = vmatpush1.msra.mxu0 0.0
        %1944 = vmatprep.subr.mxu0 0.0
        %1945 = vmatpush1.msra.mxu0 0.0
        %1946 = vmatprep.subr.mxu0 0.0
        %1947 = vmatpush1.msra.mxu0 0.0
        %1948 = vmatprep.subr.mxu0 0.0
        %1949 = vmatpush1.msra.mxu0 0.0
        %1950 = vmatprep.subr.mxu0 0.0
        %1951 = vmatpush1.msra.mxu0 0.0
        %1952 = vmatprep.subr.mxu0 0.0
        %1953 = vmatpush1.msra.mxu0 0.0
        %1954 = vmatprep.subr.mxu0 0.0
        %1955 = vmatpush1.msra.mxu0 0.0
        %1956 = vmatprep.subr.mxu0 0.0
        %1957 = vmatpush1.msra.mxu0 0.0
        %1958 = vmatprep.subr.mxu0 0.0
        %1959 = vmatpush1.msra.mxu0 0.0
        %1960 = vmatprep.subr.mxu0 0.0
        %1961 = vmatpush1.msra.mxu0 0.0
        %1962 = vmatprep.subr.mxu0 0.0
        %1963 = vmatpush1.msra.mxu0 0.0
        %1964 = vmatprep.subr.mxu0 0.0
        %1965 = vmatpush1.msra.mxu0 0.0
        %1966 = vmatprep.subr.mxu0 0.0
        %1967 = vmatpush1.msra.mxu0 0.0
        %1968 = vmatprep.subr.mxu0 0.0
        %1969 = vmatpush1.msra.mxu0 0.0
        %1970 = vmatprep.subr.mxu0 0.0
        %1971 = vmatpush1.msra.mxu0 0.0
        %1972 = vmatprep.subr.mxu0 0.0
        %1973 = vmatpush1.msra.mxu0 0.0
        %1974 = vmatprep.subr.mxu0 0.0
        %1975 = vmatpush1.msra.mxu0 0.0
        %1976 = vmatprep.subr.mxu0 0.0
        %1977 = vmatpush1.msra.mxu0 0.0
        %1978 = vmatprep.mubr.f32.mxu0 0.0
        %1979 = vmatmul.mubr.f32.gmra.mrb[0].mxu0 %v1815
        %v1980 = vpop.f32.mrb[0].mxu0
        %v1981 = vadd.f32 %v1811, %v1980
        %v1982 = vpop.f32.mrb[0].mxu0
        %1983 = vmatprep.mubr.f32.mxu0 0.0
        %1984 = vmatmul.mubr.f32.gmra.mrb[0].mxu0 %v1818
        %v1985 = vpop.f32.mrb[0].mxu0
        %v1986 = vadd.f32 %v1811, %v1985
        %v1987 = vpop.f32.mrb[0].mxu0
        %1988 = vmatprep.mubr.f32.mxu0 0.0
        %1989 = vmatmul.mubr.f32.gmra.mrb[0].mxu0 %v1821
        %v1990 = vpop.f32.mrb[0].mxu0
        %v1991 = vadd.f32 %v1811, %v1990
        %v1992 = vpop.f32.mrb[0].mxu0
        %1993 = vmatprep.mubr.f32.mxu0 0.0
        %1994 = vmatmul.mubr.f32.gmra.mrb[0].mxu0 %v1824
        %v1995 = vpop.f32.mrb[0].mxu0
        %v1996 = vadd.f32 %v1811, %v1995
        %v1997 = vpop.f32.mrb[0].mxu0
        %1998 = vmatprep.mubr.f32.mxu0 0.0
        %1999 = vmatmul.mubr.f32.gmra.mrb[0].mxu0 %v1827
        %v2000 = vpop.f32.mrb[0].mxu0
        %v2001 = vadd.f32 %v1811, %v2000
        %v2002 = vpop.f32.mrb[0].mxu0
        %2003 = vmatprep.mubr.f32.mxu0 0.0
        %2004 = vmatmul.mubr.f32.gmra.mrb[0].mxu0 %v1830
        %v2005 = vpop.f32.mrb[0].mxu0
        %v2006 = vadd.f32 %v1811, %v2005
        %v2007 = vpop.f32.mrb[0].mxu0
        %2008 = vmatprep.mubr.f32.mxu0 0.0
        %2009 = vmatmul.mubr.f32.gmra.mrb[0].mxu0 %v1833
        %v2010 = vpop.f32.mrb[0].mxu0
        %v2011 = vadd.f32 %v1811, %v2010
        %v2012 = vpop.f32.mrb[0].mxu0
        %2013 = vmatprep.mubr.f32.mxu0 0.0
        %2014 = vmatmul.mubr.f32.gmra.mrb[0].mxu0 %v1836
        %v2015 = vpop.f32.mrb[0].mxu0
        %v2016 = vadd.f32 %v1811, %v2015
        %v2017 = vpop.f32.mrb[0].mxu0
        %2018 = vmatprep.mubr.f32.mxu0 0.0
        %2019 = vmatmul.mubr.f32.gmra.mrb[0].mxu0 %v1839
        %v2020 = vpop.f32.mrb[0].mxu0
        %v2021 = vadd.f32 %v1811, %v2020
        %v2022 = vpop.f32.mrb[0].mxu0
        %2023 = vmatprep.mubr.f32.mxu0 0.0
        %2024 = vmatmul.mubr.f32.gmra.mrb[0].mxu0 %v1842
        %v2025 = vpop.f32.mrb[0].mxu0
        %v2026 = vadd.f32 %v1811, %v2025
        %v2027 = vpop.f32.mrb[0].mxu0
        %2028 = vmatprep.mubr.f32.mxu0 0.0
        %2029 = vmatmul.mubr.f32.gmra.mrb[0].mxu0 %v1845
        %v2030 = vpop.f32.mrb[0].mxu0
        %v2031 = vadd.f32 %v1811, %v2030
        %v2032 = vpop.f32.mrb[0].mxu0
        %2033 = vmatprep.mubr.f32.mxu0 0.0
        %2034 = vmatmul.mubr.f32.gmra.mrb[0].mxu0 %v1848
        %v2035 = vpop.f32.mrb[0].mxu0
        %v2036 = vadd.f32 %v1811, %v2035
        %v2037 = vpop.f32.mrb[0].mxu0
        %2038 = vmatprep.mubr.f32.mxu0 0.0
        %2039 = vmatmul.mubr.f32.gmra.mrb[0].mxu0 %v1851
        %v2040 = vpop.f32.mrb[0].mxu0
        %v2041 = vadd.f32 %v1811, %v2040
        %v2042 = vpop.f32.mrb[0].mxu0
        %2043 = vmatprep.mubr.f32.mxu0 0.0
        %2044 = vmatmul.mubr.f32.gmra.mrb[0].mxu0 %v1854
        %v2045 = vpop.f32.mrb[0].mxu0
        %v2046 = vadd.f32 %v1811, %v2045
        %v2047 = vpop.f32.mrb[0].mxu0
        %2048 = vmatprep.mubr.f32.mxu0 0.0
        %2049 = vmatmul.mubr.f32.gmra.mrb[0].mxu0 %v1857
        %v2050 = vpop.f32.mrb[0].mxu0
        %v2051 = vadd.f32 %v1811, %v2050
        %v2052 = vpop.f32.mrb[0].mxu0
        %2053 = vmatprep.mubr.f32.mxu0 0.0
        %2054 = vmatmul.mubr.f32.gmra.mrb[0].mxu0 %v1860
        %v2055 = vpop.f32.mrb[0].mxu0
        %v2056 = vadd.f32 %v1811, %v2055
        %v2057 = vpop.f32.mrb[0].mxu0
        %2058 = vmatprep.mubr.f32.mxu0 0.0
        %2059 = vmatmul.mubr.f32.gmra.mrb[0].mxu0 %v1863
        %v2060 = vpop.f32.mrb[0].mxu0
        %v2061 = vadd.f32 %v1811, %v2060
        %v2062 = vpop.f32.mrb[0].mxu0
        %2063 = vmatprep.mubr.f32.mxu0 0.0
        %2064 = vmatmul.mubr.f32.gmra.mrb[0].mxu0 %v1866
        %v2065 = vpop.f32.mrb[0].mxu0
        %v2066 = vadd.f32 %v1811, %v2065
        %v2067 = vpop.f32.mrb[0].mxu0
        %2068 = vmatprep.mubr.f32.mxu0 0.0
        %2069 = vmatmul.mubr.f32.gmra.mrb[0].mxu0 %v1869
        %v2070 = vpop.f32.mrb[0].mxu0
        %v2071 = vadd.f32 %v1811, %v2070
        %v2072 = vpop.f32.mrb[0].mxu0
        %2073 = vmatprep.mubr.f32.mxu0 0.0
        %2074 = vmatmul.mubr.f32.gmra.mrb[0].mxu0 %v1872
        %v2075 = vpop.f32.mrb[0].mxu0
        %v2076 = vadd.f32 %v1811, %v2075
        %v2077 = vpop.f32.mrb[0].mxu0
        %2078 = vmatprep.mubr.f32.mxu0 0.0
        %2079 = vmatmul.mubr.f32.gmra.mrb[0].mxu0 %v1875
        %v2080 = vpop.f32.mrb[0].mxu0
        %v2081 = vadd.f32 %v1811, %v2080
        %v2082 = vpop.f32.mrb[0].mxu0
        %2083 = vmatprep.mubr.f32.mxu0 0.0
        %2084 = vmatmul.mubr.f32.gmra.mrb[0].mxu0 %v1878
        %v2085 = vpop.f32.mrb[0].mxu0
        %v2086 = vadd.f32 %v1811, %v2085
        %v2087 = vpop.f32.mrb[0].mxu0
        %2088 = vmatprep.mubr.f32.mxu0 0.0
        %2089 = vmatmul.mubr.f32.gmra.mrb[0].mxu0 %v1881
        %v2090 = vpop.f32.mrb[0].mxu0
        %v2091 = vadd.f32 %v1811, %v2090
        %v2092 = vpop.f32.mrb[0].mxu0
        %2093 = vmatprep.mubr.f32.mxu0 0.0
        %2094 = vmatmul.mubr.f32.gmra.mrb[0].mxu0 %v1884
        %v2095 = vpop.f32.mrb[0].mxu0
        %v2096 = vadd.f32 %v1811, %v2095
        %v2097 = vpop.f32.mrb[0].mxu0
        %2098 = vmatprep.mubr.f32.mxu0 0.0
        %2099 = vmatmul.mubr.f32.gmra.mrb[0].mxu0 %v1887
        %v2100 = vpop.f32.mrb[0].mxu0
        %v2101 = vadd.f32 %v1811, %v2100
        %v2102 = vpop.f32.mrb[0].mxu0
        %2103 = vmatprep.mubr.f32.mxu0 0.0
        %2104 = vmatmul.mubr.f32.gmra.mrb[0].mxu0 %v1890
        %v2105 = vpop.f32.mrb[0].mxu0
        %v2106 = vadd.f32 %v1811, %v2105
        %v2107 = vpop.f32.mrb[0].mxu0
        %2108 = vmatprep.mubr.f32.mxu0 0.0
        %2109 = vmatmul.mubr.f32.gmra.mrb[0].mxu0 %v1893
        %v2110 = vpop.f32.mrb[0].mxu0
        %v2111 = vadd.f32 %v1811, %v2110
        %v2112 = vpop.f32.mrb[0].mxu0
        %2113 = vmatprep.mubr.f32.mxu0 0.0
        %2114 = vmatmul.mubr.f32.gmra.mrb[0].mxu0 %v1896
        %v2115 = vpop.f32.mrb[0].mxu0
        %v2116 = vadd.f32 %v1811, %v2115
        %v2117 = vpop.f32.mrb[0].mxu0
        %2118 = vmatprep.mubr.f32.mxu0 0.0
        %2119 = vmatmul.mubr.f32.gmra.mrb[0].mxu0 %v1899
        %v2120 = vpop.f32.mrb[0].mxu0
        %v2121 = vadd.f32 %v1811, %v2120
        %v2122 = vpop.f32.mrb[0].mxu0
        %2123 = vmatprep.mubr.f32.mxu0 0.0
        %2124 = vmatmul.mubr.f32.gmra.mrb[0].mxu0 %v1902
        %v2125 = vpop.f32.mrb[0].mxu0
        %v2126 = vadd.f32 %v1811, %v2125
        %v2127 = vpop.f32.mrb[0].mxu0
        %2128 = vmatprep.mubr.f32.mxu0 0.0
        %2129 = vmatmul.mubr.f32.gmra.mrb[0].mxu0 %v1905
        %v2130 = vpop.f32.mrb[0].mxu0
        %v2131 = vadd.f32 %v1811, %v2130
        %v2132 = vpop.f32.mrb[0].mxu0
        %2133 = vmatprep.mubr.f32.mxu0 0.0
        %2134 = vmatmul.mubr.f32.gmra.mrb[0].mxu0 %v1908
        %v2135 = vpop.f32.mrb[0].mxu0
        %v2136 = vadd.f32 %v1811, %v2135
        %v2137 = vpop.f32.mrb[0].mxu0
        %2138 = vdwg.mxu0
        %v2139 = vmax.f32 %v1981, 0.0
        %v2140 = vmax.f32 %v1986, 0.0
        %v2141 = vmax.f32 %v1991, 0.0
        %v2142 = vmax.f32 %v1996, 0.0
        %v2143 = vmax.f32 %v2001, 0.0
        %v2144 = vmax.f32 %v2006, 0.0
        %v2145 = vmax.f32 %v2011, 0.0
        %v2146 = vmax.f32 %v2016, 0.0
        %v2147 = vmax.f32 %v2021, 0.0
        %v2148 = vmax.f32 %v2026, 0.0
        %v2149 = vmax.f32 %v2031, 0.0
        %v2150 = vmax.f32 %v2036, 0.0
        %v2151 = vmax.f32 %v2041, 0.0
        %v2152 = vmax.f32 %v2046, 0.0
        %v2153 = vmax.f32 %v2051, 0.0
        %v2154 = vmax.f32 %v2056, 0.0
        %v2155 = vmax.f32 %v2061, 0.0
        %v2156 = vmax.f32 %v2066, 0.0
        %v2157 = vmax.f32 %v2071, 0.0
        %v2158 = vmax.f32 %v2076, 0.0
        %v2159 = vmax.f32 %v2081, 0.0
        %v2160 = vmax.f32 %v2086, 0.0
        %v2161 = vmax.f32 %v2091, 0.0
        %v2162 = vmax.f32 %v2096, 0.0
        %v2163 = vmax.f32 %v2101, 0.0
        %v2164 = vmax.f32 %v2106, 0.0
        %v2165 = vmax.f32 %v2111, 0.0
        %v2166 = vmax.f32 %v2116, 0.0
        %v2167 = vmax.f32 %v2121, 0.0
        %v2168 = vmax.f32 %v2126, 0.0
        %v2169 = vmax.f32 %v2131, 0.0
        %v2170 = vmax.f32 %v2136, 0.0
        %2171 = vst.msk [vmem:[#allocation2] sm:$0xff] %vm1570, 0.0
        %2172 = vst.msk [vmem:[#allocation2 + $0x8] sm:$0xff] %vm1570, 0.0
        %vm2173 = vcmask 58368
        %2174 = vst.msk [vmem:[#allocation2 + $0x10] sm:$0x3] %vm2173, 0.0
        %s2175 = scalar_lea.vmem [#allocation2], 408
        %2176 = vst.msk [vmem:[%s2175] sm:$0xff] %vm1570, 0.0
        %2177 = vst.msk [vmem:[%s2175 + $0x8] sm:$0xff] %vm1570, 0.0
        %2178 = vst.msk [vmem:[%s2175 + $0x10] sm:$0x3] %vm2173, 0.0
        %vm2179 = vcmask 57344
        %2180 = vst.msk [vmem:[#allocation2] sm:$0x1] %vm2179, 0.0
        %2181 = vst.msk [vmem:[#allocation2 + $0x18] sm:$0x1] %vm2179, 0.0
        %2182 = vst.msk [vmem:[#allocation2 + $0x30] sm:$0x1] %vm2179, 0.0
        %2183 = vst.msk [vmem:[#allocation2 + $0x48] sm:$0x1] %vm2179, 0.0
        %2184 = vst.msk [vmem:[#allocation2 + $0x60] sm:$0x1] %vm2179, 0.0
        %2185 = vst.msk [vmem:[#allocation2 + $0x78] sm:$0x1] %vm2179, 0.0
        %2186 = vst.msk [vmem:[#allocation2 + $0x90] sm:$0x1] %vm2179, 0.0
        %2187 = vst.msk [vmem:[#allocation2 + $0xa8] sm:$0x1] %vm2179, 0.0
        %2188 = vst.msk [vmem:[#allocation2 + $0xc0] sm:$0x1] %vm2179, 0.0
        %2189 = vst.msk [vmem:[#allocation2 + $0xd8] sm:$0x1] %vm2179, 0.0
        %2190 = vst.msk [vmem:[#allocation2 + $0xf0] sm:$0x1] %vm2179, 0.0
        %2191 = vst.msk [vmem:[#allocation2 + $0x108] sm:$0x1] %vm2179, 0.0
        %2192 = vst.msk [vmem:[#allocation2 + $0x120] sm:$0x1] %vm2179, 0.0
        %2193 = vst.msk [vmem:[#allocation2 + $0x138] sm:$0x1] %vm2179, 0.0
        %2194 = vst.msk [vmem:[#allocation2 + $0x150] sm:$0x1] %vm2179, 0.0
        %2195 = vst.msk [vmem:[#allocation2 + $0x168] sm:$0x1] %vm2179, 0.0
        %2196 = vst.msk [vmem:[#allocation2 + $0x180] sm:$0x1] %vm2179, 0.0
        %2197 = vst.msk [vmem:[#allocation2 + $0x198] sm:$0x1] %vm2179, 0.0
        %2198 = vst.msk [vmem:[#allocation2 + $0x11] sm:$0x1] %vm2179, 0.0
        %2199 = vst.msk [vmem:[#allocation2 + $0x29] sm:$0x1] %vm2179, 0.0
        %2200 = vst.msk [vmem:[#allocation2 + $0x41] sm:$0x1] %vm2179, 0.0
        %2201 = vst.msk [vmem:[#allocation2 + $0x59] sm:$0x1] %vm2179, 0.0
        %2202 = vst.msk [vmem:[#allocation2 + $0x71] sm:$0x1] %vm2179, 0.0
        %2203 = vst.msk [vmem:[#allocation2 + $0x89] sm:$0x1] %vm2179, 0.0
        %2204 = vst.msk [vmem:[#allocation2 + $0xa1] sm:$0x1] %vm2179, 0.0
        %2205 = vst.msk [vmem:[#allocation2 + $0xb9] sm:$0x1] %vm2179, 0.0
        %2206 = vst.msk [vmem:[#allocation2 + $0xd1] sm:$0x1] %vm2179, 0.0
        %2207 = vst.msk [vmem:[#allocation2 + $0xe9] sm:$0x1] %vm2179, 0.0
        %2208 = vst.msk [vmem:[#allocation2 + $0x101] sm:$0x1] %vm2179, 0.0
        %2209 = vst.msk [vmem:[#allocation2 + $0x119] sm:$0x1] %vm2179, 0.0
        %2210 = vst.msk [vmem:[#allocation2 + $0x131] sm:$0x1] %vm2179, 0.0
        %2211 = vst.msk [vmem:[#allocation2 + $0x149] sm:$0x1] %vm2179, 0.0
        %2212 = vst.msk [vmem:[#allocation2 + $0x161] sm:$0x1] %vm2179, 0.0
        %2213 = vst.msk [vmem:[#allocation2 + $0x179] sm:$0x1] %vm2179, 0.0
        %2214 = vst.msk [vmem:[#allocation2 + $0x191] sm:$0x1] %vm2179, 0.0
        %2215 = vst.msk [vmem:[#allocation2 + $0x1a9] sm:$0x1] %vm2179, 0.0
        %s2216 = scalar_lea.vmem [#allocation2], 24
        %2217 = vst.msk [vmem:[%s2216 + $0x1] sm:$0xff] %vm1570, %v2139
        %2218 = vst.msk [vmem:[%s2216 + $0x9] sm:$0xff] %vm1570, %v2140
        %2219 = vst.msk [vmem:[%s2216 + $0x19] sm:$0xff] %vm1570, %v2141
        %2220 = vst.msk [vmem:[%s2216 + $0x21] sm:$0xff] %vm1570, %v2142
        %2221 = vst.msk [vmem:[%s2216 + $0x31] sm:$0xff] %vm1570, %v2143
        %2222 = vst.msk [vmem:[%s2216 + $0x39] sm:$0xff] %vm1570, %v2144
        %2223 = vst.msk [vmem:[%s2216 + $0x49] sm:$0xff] %vm1570, %v2145
        %2224 = vst.msk [vmem:[%s2216 + $0x51] sm:$0xff] %vm1570, %v2146
        %2225 = vst.msk [vmem:[%s2216 + $0x61] sm:$0xff] %vm1570, %v2147
        %2226 = vst.msk [vmem:[%s2216 + $0x69] sm:$0xff] %vm1570, %v2148
        %2227 = vst.msk [vmem:[%s2216 + $0x79] sm:$0xff] %vm1570, %v2149
        %2228 = vst.msk [vmem:[%s2216 + $0x81] sm:$0xff] %vm1570, %v2150
        %2229 = vst.msk [vmem:[%s2216 + $0x91] sm:$0xff] %vm1570, %v2151
        %2230 = vst.msk [vmem:[%s2216 + $0x99] sm:$0xff] %vm1570, %v2152
        %2231 = vst.msk [vmem:[%s2216 + $0xa9] sm:$0xff] %vm1570, %v2153
        %2232 = vst.msk [vmem:[%s2216 + $0xb1] sm:$0xff] %vm1570, %v2154
        %2233 = vst.msk [vmem:[%s2216 + $0xc1] sm:$0xff] %vm1570, %v2155
        %2234 = vst.msk [vmem:[%s2216 + $0xc9] sm:$0xff] %vm1570, %v2156
        %2235 = vst.msk [vmem:[%s2216 + $0xd9] sm:$0xff] %vm1570, %v2157
        %2236 = vst.msk [vmem:[%s2216 + $0xe1] sm:$0xff] %vm1570, %v2158
        %2237 = vst.msk [vmem:[%s2216 + $0xf1] sm:$0xff] %vm1570, %v2159
        %2238 = vst.msk [vmem:[%s2216 + $0xf9] sm:$0xff] %vm1570, %v2160
        %2239 = vst.msk [vmem:[%s2216 + $0x109] sm:$0xff] %vm1570, %v2161
        %2240 = vst.msk [vmem:[%s2216 + $0x111] sm:$0xff] %vm1570, %v2162
        %2241 = vst.msk [vmem:[%s2216 + $0x121] sm:$0xff] %vm1570, %v2163
        %2242 = vst.msk [vmem:[%s2216 + $0x129] sm:$0xff] %vm1570, %v2164
        %2243 = vst.msk [vmem:[%s2216 + $0x139] sm:$0xff] %vm1570, %v2165
        %2244 = vst.msk [vmem:[%s2216 + $0x141] sm:$0xff] %vm1570, %v2166
        %2245 = vst.msk [vmem:[%s2216 + $0x151] sm:$0xff] %vm1570, %v2167
        %2246 = vst.msk [vmem:[%s2216 + $0x159] sm:$0xff] %vm1570, %v2168
        %2247 = vst.msk [vmem:[%s2216 + $0x169] sm:$0xff] %vm1570, %v2169
        %2248 = vst.msk [vmem:[%s2216 + $0x171] sm:$0xff] %vm1570, %v2170
        %v2249 = vld [vmem:[#allocation2] sm:$0xff]
        %v2250 = vld [vmem:[#allocation2 + $0x8] sm:$0xff]
        %v2251 = vld [vmem:[#allocation2 + $0x18] sm:$0xff]
        %v2252 = vld [vmem:[#allocation2 + $0x20] sm:$0xff]
        %v2253 = vld [vmem:[#allocation2 + $0x30] sm:$0xff]
        %v2254 = vld [vmem:[#allocation2 + $0x38] sm:$0xff]
        %v2255 = vld [vmem:[#allocation2 + $0x48] sm:$0xff]
        %v2256 = vld [vmem:[#allocation2 + $0x50] sm:$0xff]
        %v2257 = vld [vmem:[#allocation2 + $0x60] sm:$0xff]
        %v2258 = vld [vmem:[#allocation2 + $0x68] sm:$0xff]
        %v2259 = vld [vmem:[#allocation2 + $0x78] sm:$0xff]
        %v2260 = vld [vmem:[#allocation2 + $0x80] sm:$0xff]
        %v2261 = vld [vmem:[#allocation2 + $0x90] sm:$0xff]
        %v2262 = vld [vmem:[#allocation2 + $0x98] sm:$0xff]
        %v2263 = vld [vmem:[#allocation2 + $0xa8] sm:$0xff]
        %v2264 = vld [vmem:[#allocation2 + $0xb0] sm:$0xff]
        %v2265 = vld [vmem:[#allocation2 + $0xc0] sm:$0xff]
        %v2266 = vld [vmem:[#allocation2 + $0xc8] sm:$0xff]
        %v2267 = vld [vmem:[#allocation2 + $0xd8] sm:$0xff]
        %v2268 = vld [vmem:[#allocation2 + $0xe0] sm:$0xff]
        %v2269 = vld [vmem:[#allocation2 + $0xf0] sm:$0xff]
        %v2270 = vld [vmem:[#allocation2 + $0xf8] sm:$0xff]
        %v2271 = vld [vmem:[#allocation2 + $0x108] sm:$0xff]
        %v2272 = vld [vmem:[#allocation2 + $0x110] sm:$0xff]
        %v2273 = vld [vmem:[#allocation2 + $0x120] sm:$0xff]
        %v2274 = vld [vmem:[#allocation2 + $0x128] sm:$0xff]
        %v2275 = vld [vmem:[#allocation2 + $0x138] sm:$0xff]
        %v2276 = vld [vmem:[#allocation2 + $0x140] sm:$0xff]
        %v2277 = vld [vmem:[#allocation2 + $0x150] sm:$0xff]
        %v2278 = vld [vmem:[#allocation2 + $0x158] sm:$0xff]
        %v2279 = vld [vmem:[#allocation2 + $0x168] sm:$0xff]
        %v2280 = vld [vmem:[#allocation2 + $0x170] sm:$0xff]
        %v2281 = vld [vmem:[#allocation2 + $0x1] sm:$0xff]
        %v2282 = vld [vmem:[#allocation2 + $0x9] sm:$0xff]
        %v2283 = vld [vmem:[#allocation2 + $0x19] sm:$0xff]
        %v2284 = vld [vmem:[#allocation2 + $0x21] sm:$0xff]
        %v2285 = vld [vmem:[#allocation2 + $0x31] sm:$0xff]
        %v2286 = vld [vmem:[#allocation2 + $0x39] sm:$0xff]
        %v2287 = vld [vmem:[#allocation2 + $0x49] sm:$0xff]
        %v2288 = vld [vmem:[#allocation2 + $0x51] sm:$0xff]
        %v2289 = vld [vmem:[#allocation2 + $0x61] sm:$0xff]
        %v2290 = vld [vmem:[#allocation2 + $0x69] sm:$0xff]
        %v2291 = vld [vmem:[#allocation2 + $0x79] sm:$0xff]
        %v2292 = vld [vmem:[#allocation2 + $0x81] sm:$0xff]
        %v2293 = vld [vmem:[#allocation2 + $0x91] sm:$0xff]
        %v2294 = vld [vmem:[#allocation2 + $0x99] sm:$0xff]
        %v2295 = vld [vmem:[#allocation2 + $0xa9] sm:$0xff]
        %v2296 = vld [vmem:[#allocation2 + $0xb1] sm:$0xff]
        %v2297 = vld [vmem:[#allocation2 + $0xc1] sm:$0xff]
        %v2298 = vld [vmem:[#allocation2 + $0xc9] sm:$0xff]
        %v2299 = vld [vmem:[#allocation2 + $0xd9] sm:$0xff]
        %v2300 = vld [vmem:[#allocation2 + $0xe1] sm:$0xff]
        %v2301 = vld [vmem:[#allocation2 + $0xf1] sm:$0xff]
        %v2302 = vld [vmem:[#allocation2 + $0xf9] sm:$0xff]
        %v2303 = vld [vmem:[#allocation2 + $0x109] sm:$0xff]
        %v2304 = vld [vmem:[#allocation2 + $0x111] sm:$0xff]
        %v2305 = vld [vmem:[#allocation2 + $0x121] sm:$0xff]
        %v2306 = vld [vmem:[#allocation2 + $0x129] sm:$0xff]
        %v2307 = vld [vmem:[#allocation2 + $0x139] sm:$0xff]
        %v2308 = vld [vmem:[#allocation2 + $0x141] sm:$0xff]
        %v2309 = vld [vmem:[#allocation2 + $0x151] sm:$0xff]
        %v2310 = vld [vmem:[#allocation2 + $0x159] sm:$0xff]
        %v2311 = vld [vmem:[#allocation2 + $0x169] sm:$0xff]
        %v2312 = vld [vmem:[#allocation2 + $0x171] sm:$0xff]
        %v2313 = vld [vmem:[#allocation2 + $0x2] sm:$0xff]
        %v2314 = vld [vmem:[#allocation2 + $0xa] sm:$0xff]
        %v2315 = vld [vmem:[#allocation2 + $0x1a] sm:$0xff]
        %v2316 = vld [vmem:[#allocation2 + $0x22] sm:$0xff]
        %v2317 = vld [vmem:[#allocation2 + $0x32] sm:$0xff]
        %v2318 = vld [vmem:[#allocation2 + $0x3a] sm:$0xff]
        %v2319 = vld [vmem:[#allocation2 + $0x4a] sm:$0xff]
        %v2320 = vld [vmem:[#allocation2 + $0x52] sm:$0xff]
        %v2321 = vld [vmem:[#allocation2 + $0x62] sm:$0xff]
        %v2322 = vld [vmem:[#allocation2 + $0x6a] sm:$0xff]
        %v2323 = vld [vmem:[#allocation2 + $0x7a] sm:$0xff]
        %v2324 = vld [vmem:[#allocation2 + $0x82] sm:$0xff]
        %v2325 = vld [vmem:[#allocation2 + $0x92] sm:$0xff]
        %v2326 = vld [vmem:[#allocation2 + $0x9a] sm:$0xff]
        %v2327 = vld [vmem:[#allocation2 + $0xaa] sm:$0xff]
        %v2328 = vld [vmem:[#allocation2 + $0xb2] sm:$0xff]
        %v2329 = vld [vmem:[#allocation2 + $0xc2] sm:$0xff]
        %v2330 = vld [vmem:[#allocation2 + $0xca] sm:$0xff]
        %v2331 = vld [vmem:[#allocation2 + $0xda] sm:$0xff]
        %v2332 = vld [vmem:[#allocation2 + $0xe2] sm:$0xff]
        %v2333 = vld [vmem:[#allocation2 + $0xf2] sm:$0xff]
        %v2334 = vld [vmem:[#allocation2 + $0xfa] sm:$0xff]
        %v2335 = vld [vmem:[#allocation2 + $0x10a] sm:$0xff]
        %v2336 = vld [vmem:[#allocation2 + $0x112] sm:$0xff]
        %v2337 = vld [vmem:[#allocation2 + $0x122] sm:$0xff]
        %v2338 = vld [vmem:[#allocation2 + $0x12a] sm:$0xff]
        %v2339 = vld [vmem:[#allocation2 + $0x13a] sm:$0xff]
        %v2340 = vld [vmem:[#allocation2 + $0x142] sm:$0xff]
        %v2341 = vld [vmem:[#allocation2 + $0x152] sm:$0xff]
        %v2342 = vld [vmem:[#allocation2 + $0x15a] sm:$0xff]
        %v2343 = vld [vmem:[#allocation2 + $0x16a] sm:$0xff]
        %v2344 = vld [vmem:[#allocation2 + $0x172] sm:$0xff]
        %v2345 = vld [vmem:[%s2216] sm:$0xff]
        %v2346 = vld [vmem:[%s2216 + $0x8] sm:$0xff]
        %v2347 = vld [vmem:[%s2216 + $0x18] sm:$0xff]
        %v2348 = vld [vmem:[%s2216 + $0x20] sm:$0xff]
        %v2349 = vld [vmem:[%s2216 + $0x30] sm:$0xff]
        %v2350 = vld [vmem:[%s2216 + $0x38] sm:$0xff]
        %v2351 = vld [vmem:[%s2216 + $0x48] sm:$0xff]
        %v2352 = vld [vmem:[%s2216 + $0x50] sm:$0xff]
        %v2353 = vld [vmem:[%s2216 + $0x60] sm:$0xff]
        %v2354 = vld [vmem:[%s2216 + $0x68] sm:$0xff]
        %v2355 = vld [vmem:[%s2216 + $0x78] sm:$0xff]
        %v2356 = vld [vmem:[%s2216 + $0x80] sm:$0xff]
        %v2357 = vld [vmem:[%s2216 + $0x90] sm:$0xff]
        %v2358 = vld [vmem:[%s2216 + $0x98] sm:$0xff]
        %v2359 = vld [vmem:[%s2216 + $0xa8] sm:$0xff]
        %v2360 = vld [vmem:[%s2216 + $0xb0] sm:$0xff]
        %v2361 = vld [vmem:[%s2216 + $0xc0] sm:$0xff]
        %v2362 = vld [vmem:[%s2216 + $0xc8] sm:$0xff]
        %v2363 = vld [vmem:[%s2216 + $0xd8] sm:$0xff]
        %v2364 = vld [vmem:[%s2216 + $0xe0] sm:$0xff]
        %v2365 = vld [vmem:[%s2216 + $0xf0] sm:$0xff]
        %v2366 = vld [vmem:[%s2216 + $0xf8] sm:$0xff]
        %v2367 = vld [vmem:[%s2216 + $0x108] sm:$0xff]
        %v2368 = vld [vmem:[%s2216 + $0x110] sm:$0xff]
        %v2369 = vld [vmem:[%s2216 + $0x120] sm:$0xff]
        %v2370 = vld [vmem:[%s2216 + $0x128] sm:$0xff]
        %v2371 = vld [vmem:[%s2216 + $0x138] sm:$0xff]
        %v2372 = vld [vmem:[%s2216 + $0x140] sm:$0xff]
        %v2373 = vld [vmem:[%s2216 + $0x150] sm:$0xff]
        %v2374 = vld [vmem:[%s2216 + $0x158] sm:$0xff]
        %v2375 = vld [vmem:[%s2216 + $0x168] sm:$0xff]
        %v2376 = vld [vmem:[%s2216 + $0x170] sm:$0xff]
        %v2377 = vld [vmem:[%s2216 + $0x1] sm:$0xff]
        %v2378 = vld [vmem:[%s2216 + $0x9] sm:$0xff]
        %v2379 = vld [vmem:[%s2216 + $0x19] sm:$0xff]
        %v2380 = vld [vmem:[%s2216 + $0x21] sm:$0xff]
        %v2381 = vld [vmem:[%s2216 + $0x31] sm:$0xff]
        %v2382 = vld [vmem:[%s2216 + $0x39] sm:$0xff]
        %v2383 = vld [vmem:[%s2216 + $0x49] sm:$0xff]
        %v2384 = vld [vmem:[%s2216 + $0x51] sm:$0xff]
        %v2385 = vld [vmem:[%s2216 + $0x61] sm:$0xff]
        %v2386 = vld [vmem:[%s2216 + $0x69] sm:$0xff]
        %v2387 = vld [vmem:[%s2216 + $0x79] sm:$0xff]
        %v2388 = vld [vmem:[%s2216 + $0x81] sm:$0xff]
        %v2389 = vld [vmem:[%s2216 + $0x91] sm:$0xff]
        %v2390 = vld [vmem:[%s2216 + $0x99] sm:$0xff]
        %v2391 = vld [vmem:[%s2216 + $0xa9] sm:$0xff]
        %v2392 = vld [vmem:[%s2216 + $0xb1] sm:$0xff]
        %v2393 = vld [vmem:[%s2216 + $0xc1] sm:$0xff]
        %v2394 = vld [vmem:[%s2216 + $0xc9] sm:$0xff]
        %v2395 = vld [vmem:[%s2216 + $0xd9] sm:$0xff]
        %v2396 = vld [vmem:[%s2216 + $0xe1] sm:$0xff]
        %v2397 = vld [vmem:[%s2216 + $0xf1] sm:$0xff]
        %v2398 = vld [vmem:[%s2216 + $0xf9] sm:$0xff]
        %v2399 = vld [vmem:[%s2216 + $0x109] sm:$0xff]
        %v2400 = vld [vmem:[%s2216 + $0x111] sm:$0xff]
        %v2401 = vld [vmem:[%s2216 + $0x121] sm:$0xff]
        %v2402 = vld [vmem:[%s2216 + $0x129] sm:$0xff]
        %v2403 = vld [vmem:[%s2216 + $0x139] sm:$0xff]
        %v2404 = vld [vmem:[%s2216 + $0x141] sm:$0xff]
        %v2405 = vld [vmem:[%s2216 + $0x151] sm:$0xff]
        %v2406 = vld [vmem:[%s2216 + $0x159] sm:$0xff]
        %v2407 = vld [vmem:[%s2216 + $0x169] sm:$0xff]
        %v2408 = vld [vmem:[%s2216 + $0x171] sm:$0xff]
        %v2409 = vld [vmem:[%s2216 + $0x2] sm:$0xff]
        %v2410 = vld [vmem:[%s2216 + $0xa] sm:$0xff]
        %v2411 = vld [vmem:[%s2216 + $0x1a] sm:$0xff]
        %v2412 = vld [vmem:[%s2216 + $0x22] sm:$0xff]
        %v2413 = vld [vmem:[%s2216 + $0x32] sm:$0xff]
        %v2414 = vld [vmem:[%s2216 + $0x3a] sm:$0xff]
        %v2415 = vld [vmem:[%s2216 + $0x4a] sm:$0xff]
        %v2416 = vld [vmem:[%s2216 + $0x52] sm:$0xff]
        %v2417 = vld [vmem:[%s2216 + $0x62] sm:$0xff]
        %v2418 = vld [vmem:[%s2216 + $0x6a] sm:$0xff]
        %v2419 = vld [vmem:[%s2216 + $0x7a] sm:$0xff]
        %v2420 = vld [vmem:[%s2216 + $0x82] sm:$0xff]
        %v2421 = vld [vmem:[%s2216 + $0x92] sm:$0xff]
        %v2422 = vld [vmem:[%s2216 + $0x9a] sm:$0xff]
        %v2423 = vld [vmem:[%s2216 + $0xaa] sm:$0xff]
        %v2424 = vld [vmem:[%s2216 + $0xb2] sm:$0xff]
        %v2425 = vld [vmem:[%s2216 + $0xc2] sm:$0xff]
        %v2426 = vld [vmem:[%s2216 + $0xca] sm:$0xff]
        %v2427 = vld [vmem:[%s2216 + $0xda] sm:$0xff]
        %v2428 = vld [vmem:[%s2216 + $0xe2] sm:$0xff]
        %v2429 = vld [vmem:[%s2216 + $0xf2] sm:$0xff]
        %v2430 = vld [vmem:[%s2216 + $0xfa] sm:$0xff]
        %v2431 = vld [vmem:[%s2216 + $0x10a] sm:$0xff]
        %v2432 = vld [vmem:[%s2216 + $0x112] sm:$0xff]
        %v2433 = vld [vmem:[%s2216 + $0x122] sm:$0xff]
        %v2434 = vld [vmem:[%s2216 + $0x12a] sm:$0xff]
        %v2435 = vld [vmem:[%s2216 + $0x13a] sm:$0xff]
        %v2436 = vld [vmem:[%s2216 + $0x142] sm:$0xff]
        %v2437 = vld [vmem:[%s2216 + $0x152] sm:$0xff]
        %v2438 = vld [vmem:[%s2216 + $0x15a] sm:$0xff]
        %v2439 = vld [vmem:[%s2216 + $0x16a] sm:$0xff]
        %v2440 = vld [vmem:[%s2216 + $0x172] sm:$0xff]
        %s2441 = scalar_lea.vmem [#allocation2], 48
        %v2442 = vld [vmem:[%s2441] sm:$0xff]
        %v2443 = vld [vmem:[%s2441 + $0x8] sm:$0xff]
        %v2444 = vld [vmem:[%s2441 + $0x18] sm:$0xff]
        %v2445 = vld [vmem:[%s2441 + $0x20] sm:$0xff]
        %v2446 = vld [vmem:[%s2441 + $0x30] sm:$0xff]
        %v2447 = vld [vmem:[%s2441 + $0x38] sm:$0xff]
        %v2448 = vld [vmem:[%s2441 + $0x48] sm:$0xff]
        %v2449 = vld [vmem:[%s2441 + $0x50] sm:$0xff]
        %v2450 = vld [vmem:[%s2441 + $0x60] sm:$0xff]
        %v2451 = vld [vmem:[%s2441 + $0x68] sm:$0xff]
        %v2452 = vld [vmem:[%s2441 + $0x78] sm:$0xff]
        %v2453 = vld [vmem:[%s2441 + $0x80] sm:$0xff]
        %v2454 = vld [vmem:[%s2441 + $0x90] sm:$0xff]
        %v2455 = vld [vmem:[%s2441 + $0x98] sm:$0xff]
        %v2456 = vld [vmem:[%s2441 + $0xa8] sm:$0xff]
        %v2457 = vld [vmem:[%s2441 + $0xb0] sm:$0xff]
        %v2458 = vld [vmem:[%s2441 + $0xc0] sm:$0xff]
        %v2459 = vld [vmem:[%s2441 + $0xc8] sm:$0xff]
        %v2460 = vld [vmem:[%s2441 + $0xd8] sm:$0xff]
        %v2461 = vld [vmem:[%s2441 + $0xe0] sm:$0xff]
        %v2462 = vld [vmem:[%s2441 + $0xf0] sm:$0xff]
        %v2463 = vld [vmem:[%s2441 + $0xf8] sm:$0xff]
        %v2464 = vld [vmem:[%s2441 + $0x108] sm:$0xff]
        %v2465 = vld [vmem:[%s2441 + $0x110] sm:$0xff]
        %v2466 = vld [vmem:[%s2441 + $0x120] sm:$0xff]
        %v2467 = vld [vmem:[%s2441 + $0x128] sm:$0xff]
        %v2468 = vld [vmem:[%s2441 + $0x138] sm:$0xff]
        %v2469 = vld [vmem:[%s2441 + $0x140] sm:$0xff]
        %v2470 = vld [vmem:[%s2441 + $0x150] sm:$0xff]
        %v2471 = vld [vmem:[%s2441 + $0x158] sm:$0xff]
        %v2472 = vld [vmem:[%s2441 + $0x168] sm:$0xff]
        %v2473 = vld [vmem:[%s2441 + $0x170] sm:$0xff]
        %v2474 = vld [vmem:[%s2441 + $0x1] sm:$0xff]
        %v2475 = vld [vmem:[%s2441 + $0x9] sm:$0xff]
        %v2476 = vld [vmem:[%s2441 + $0x19] sm:$0xff]
        %v2477 = vld [vmem:[%s2441 + $0x21] sm:$0xff]
        %v2478 = vld [vmem:[%s2441 + $0x31] sm:$0xff]
        %v2479 = vld [vmem:[%s2441 + $0x39] sm:$0xff]
        %v2480 = vld [vmem:[%s2441 + $0x49] sm:$0xff]
        %v2481 = vld [vmem:[%s2441 + $0x51] sm:$0xff]
        %v2482 = vld [vmem:[%s2441 + $0x61] sm:$0xff]
        %v2483 = vld [vmem:[%s2441 + $0x69] sm:$0xff]
        %v2484 = vld [vmem:[%s2441 + $0x79] sm:$0xff]
        %v2485 = vld [vmem:[%s2441 + $0x81] sm:$0xff]
        %v2486 = vld [vmem:[%s2441 + $0x91] sm:$0xff]
        %v2487 = vld [vmem:[%s2441 + $0x99] sm:$0xff]
        %v2488 = vld [vmem:[%s2441 + $0xa9] sm:$0xff]
        %v2489 = vld [vmem:[%s2441 + $0xb1] sm:$0xff]
        %v2490 = vld [vmem:[%s2441 + $0xc1] sm:$0xff]
        %v2491 = vld [vmem:[%s2441 + $0xc9] sm:$0xff]
        %v2492 = vld [vmem:[%s2441 + $0xd9] sm:$0xff]
        %v2493 = vld [vmem:[%s2441 + $0xe1] sm:$0xff]
        %v2494 = vld [vmem:[%s2441 + $0xf1] sm:$0xff]
        %v2495 = vld [vmem:[%s2441 + $0xf9] sm:$0xff]
        %v2496 = vld [vmem:[%s2441 + $0x109] sm:$0xff]
        %v2497 = vld [vmem:[%s2441 + $0x111] sm:$0xff]
        %v2498 = vld [vmem:[%s2441 + $0x121] sm:$0xff]
        %v2499 = vld [vmem:[%s2441 + $0x129] sm:$0xff]
        %v2500 = vld [vmem:[%s2441 + $0x139] sm:$0xff]
        %v2501 = vld [vmem:[%s2441 + $0x141] sm:$0xff]
        %v2502 = vld [vmem:[%s2441 + $0x151] sm:$0xff]
        %v2503 = vld [vmem:[%s2441 + $0x159] sm:$0xff]
        %v2504 = vld [vmem:[%s2441 + $0x169] sm:$0xff]
        %v2505 = vld [vmem:[%s2441 + $0x171] sm:$0xff]
        %v2506 = vld [vmem:[%s2441 + $0x2] sm:$0xff]
        %v2507 = vld [vmem:[%s2441 + $0xa] sm:$0xff]
        %v2508 = vld [vmem:[%s2441 + $0x1a] sm:$0xff]
        %v2509 = vld [vmem:[%s2441 + $0x22] sm:$0xff]
        %v2510 = vld [vmem:[%s2441 + $0x32] sm:$0xff]
        %v2511 = vld [vmem:[%s2441 + $0x3a] sm:$0xff]
        %v2512 = vld [vmem:[%s2441 + $0x4a] sm:$0xff]
        %v2513 = vld [vmem:[%s2441 + $0x52] sm:$0xff]
        %v2514 = vld [vmem:[%s2441 + $0x62] sm:$0xff]
        %v2515 = vld [vmem:[%s2441 + $0x6a] sm:$0xff]
        %v2516 = vld [vmem:[%s2441 + $0x7a] sm:$0xff]
        %v2517 = vld [vmem:[%s2441 + $0x82] sm:$0xff]
        %v2518 = vld [vmem:[%s2441 + $0x92] sm:$0xff]
        %v2519 = vld [vmem:[%s2441 + $0x9a] sm:$0xff]
        %v2520 = vld [vmem:[%s2441 + $0xaa] sm:$0xff]
        %v2521 = vld [vmem:[%s2441 + $0xb2] sm:$0xff]
        %v2522 = vld [vmem:[%s2441 + $0xc2] sm:$0xff]
        %v2523 = vld [vmem:[%s2441 + $0xca] sm:$0xff]
        %v2524 = vld [vmem:[%s2441 + $0xda] sm:$0xff]
        %v2525 = vld [vmem:[%s2441 + $0xe2] sm:$0xff]
        %v2526 = vld [vmem:[%s2441 + $0xf2] sm:$0xff]
        %v2527 = vld [vmem:[%s2441 + $0xfa] sm:$0xff]
        %v2528 = vld [vmem:[%s2441 + $0x10a] sm:$0xff]
        %v2529 = vld [vmem:[%s2441 + $0x112] sm:$0xff]
        %v2530 = vld [vmem:[%s2441 + $0x122] sm:$0xff]
        %v2531 = vld [vmem:[%s2441 + $0x12a] sm:$0xff]
        %v2532 = vld [vmem:[%s2441 + $0x13a] sm:$0xff]
        %v2533 = vld [vmem:[%s2441 + $0x142] sm:$0xff]
        %v2534 = vld [vmem:[%s2441 + $0x152] sm:$0xff]
        %v2535 = vld [vmem:[%s2441 + $0x15a] sm:$0xff]
        %v2536 = vld [vmem:[%s2441 + $0x16a] sm:$0xff]
        %v2537 = vld [vmem:[%s2441 + $0x172] sm:$0xff]
        %2570 = vrot.lane.b32.xlu0 %v2281, 8
        %v2571 = vpop.permute.xlu0 %2570
        %2572 = vrot.lane.b32.xlu0 %v2282, 8
        %v2573 = vpop.permute.xlu0 %2572
        %2574 = vrot.lane.b32.xlu0 %v2283, 8
        %v2575 = vpop.permute.xlu0 %2574
        %2576 = vrot.lane.b32.xlu0 %v2284, 8
        %v2577 = vpop.permute.xlu0 %2576
        %2578 = vrot.lane.b32.xlu0 %v2285, 8
        %v2579 = vpop.permute.xlu0 %2578
        %2580 = vrot.lane.b32.xlu0 %v2286, 8
        %v2581 = vpop.permute.xlu0 %2580
        %2582 = vrot.lane.b32.xlu0 %v2287, 8
        %v2583 = vpop.permute.xlu0 %2582
        %2584 = vrot.lane.b32.xlu0 %v2288, 8
        %v2585 = vpop.permute.xlu0 %2584
        %2586 = vrot.lane.b32.xlu0 %v2289, 8
        %v2587 = vpop.permute.xlu0 %2586
        %2588 = vrot.lane.b32.xlu0 %v2290, 8
        %v2589 = vpop.permute.xlu0 %2588
        %2590 = vrot.lane.b32.xlu0 %v2291, 8
        %v2591 = vpop.permute.xlu0 %2590
        %2592 = vrot.lane.b32.xlu0 %v2292, 8
        %v2593 = vpop.permute.xlu0 %2592
        %2594 = vrot.lane.b32.xlu0 %v2293, 8
        %v2595 = vpop.permute.xlu0 %2594
        %2596 = vrot.lane.b32.xlu0 %v2294, 8
        %v2597 = vpop.permute.xlu0 %2596
        %2598 = vrot.lane.b32.xlu0 %v2295, 8
        %v2599 = vpop.permute.xlu0 %2598
        %2600 = vrot.lane.b32.xlu0 %v2296, 8
        %v2601 = vpop.permute.xlu0 %2600
        %2602 = vrot.lane.b32.xlu0 %v2297, 8
        %v2603 = vpop.permute.xlu0 %2602
        %2604 = vrot.lane.b32.xlu0 %v2298, 8
        %v2605 = vpop.permute.xlu0 %2604
        %2606 = vrot.lane.b32.xlu0 %v2299, 8
        %v2607 = vpop.permute.xlu0 %2606
        %2608 = vrot.lane.b32.xlu0 %v2300, 8
        %v2609 = vpop.permute.xlu0 %2608
        %2610 = vrot.lane.b32.xlu0 %v2301, 8
        %v2611 = vpop.permute.xlu0 %2610
        %2612 = vrot.lane.b32.xlu0 %v2302, 8
        %v2613 = vpop.permute.xlu0 %2612
        %2614 = vrot.lane.b32.xlu0 %v2303, 8
        %v2615 = vpop.permute.xlu0 %2614
        %2616 = vrot.lane.b32.xlu0 %v2304, 8
        %v2617 = vpop.permute.xlu0 %2616
        %2618 = vrot.lane.b32.xlu0 %v2305, 8
        %v2619 = vpop.permute.xlu0 %2618
        %2620 = vrot.lane.b32.xlu0 %v2306, 8
        %v2621 = vpop.permute.xlu0 %2620
        %2622 = vrot.lane.b32.xlu0 %v2307, 8
        %v2623 = vpop.permute.xlu0 %2622
        %2624 = vrot.lane.b32.xlu0 %v2308, 8
        %v2625 = vpop.permute.xlu0 %2624
        %2626 = vrot.lane.b32.xlu0 %v2309, 8
        %v2627 = vpop.permute.xlu0 %2626
        %2628 = vrot.lane.b32.xlu0 %v2310, 8
        %v2629 = vpop.permute.xlu0 %2628
        %2630 = vrot.lane.b32.xlu0 %v2311, 8
        %v2631 = vpop.permute.xlu0 %2630
        %2632 = vrot.lane.b32.xlu0 %v2312, 8
        %v2633 = vpop.permute.xlu0 %2632
        %2698 = vrot.lane.b32.xlu0 %v2313, 16
        %v2699 = vpop.permute.xlu0 %2698
        %2700 = vrot.lane.b32.xlu0 %v2314, 16
        %v2701 = vpop.permute.xlu0 %2700
        %2702 = vrot.lane.b32.xlu0 %v2315, 16
        %v2703 = vpop.permute.xlu0 %2702
        %2704 = vrot.lane.b32.xlu0 %v2316, 16
        %v2705 = vpop.permute.xlu0 %2704
        %2706 = vrot.lane.b32.xlu0 %v2317, 16
        %v2707 = vpop.permute.xlu0 %2706
        %2708 = vrot.lane.b32.xlu0 %v2318, 16
        %v2709 = vpop.permute.xlu0 %2708
        %2710 = vrot.lane.b32.xlu0 %v2319, 16
        %v2711 = vpop.permute.xlu0 %2710
        %2712 = vrot.lane.b32.xlu0 %v2320, 16
        %v2713 = vpop.permute.xlu0 %2712
        %2714 = vrot.lane.b32.xlu0 %v2321, 16
        %v2715 = vpop.permute.xlu0 %2714
        %2716 = vrot.lane.b32.xlu0 %v2322, 16
        %v2717 = vpop.permute.xlu0 %2716
        %2718 = vrot.lane.b32.xlu0 %v2323, 16
        %v2719 = vpop.permute.xlu0 %2718
        %2720 = vrot.lane.b32.xlu0 %v2324, 16
        %v2721 = vpop.permute.xlu0 %2720
        %2722 = vrot.lane.b32.xlu0 %v2325, 16
        %v2723 = vpop.permute.xlu0 %2722
        %2724 = vrot.lane.b32.xlu0 %v2326, 16
        %v2725 = vpop.permute.xlu0 %2724
        %2726 = vrot.lane.b32.xlu0 %v2327, 16
        %v2727 = vpop.permute.xlu0 %2726
        %2728 = vrot.lane.b32.xlu0 %v2328, 16
        %v2729 = vpop.permute.xlu0 %2728
        %2730 = vrot.lane.b32.xlu0 %v2329, 16
        %v2731 = vpop.permute.xlu0 %2730
        %2732 = vrot.lane.b32.xlu0 %v2330, 16
        %v2733 = vpop.permute.xlu0 %2732
        %2734 = vrot.lane.b32.xlu0 %v2331, 16
        %v2735 = vpop.permute.xlu0 %2734
        %2736 = vrot.lane.b32.xlu0 %v2332, 16
        %v2737 = vpop.permute.xlu0 %2736
        %2738 = vrot.lane.b32.xlu0 %v2333, 16
        %v2739 = vpop.permute.xlu0 %2738
        %2740 = vrot.lane.b32.xlu0 %v2334, 16
        %v2741 = vpop.permute.xlu0 %2740
        %2742 = vrot.lane.b32.xlu0 %v2335, 16
        %v2743 = vpop.permute.xlu0 %2742
        %2744 = vrot.lane.b32.xlu0 %v2336, 16
        %v2745 = vpop.permute.xlu0 %2744
        %2746 = vrot.lane.b32.xlu0 %v2337, 16
        %v2747 = vpop.permute.xlu0 %2746
        %2748 = vrot.lane.b32.xlu0 %v2338, 16
        %v2749 = vpop.permute.xlu0 %2748
        %2750 = vrot.lane.b32.xlu0 %v2339, 16
        %v2751 = vpop.permute.xlu0 %2750
        %2752 = vrot.lane.b32.xlu0 %v2340, 16
        %v2753 = vpop.permute.xlu0 %2752
        %2754 = vrot.lane.b32.xlu0 %v2341, 16
        %v2755 = vpop.permute.xlu0 %2754
        %2756 = vrot.lane.b32.xlu0 %v2342, 16
        %v2757 = vpop.permute.xlu0 %2756
        %2758 = vrot.lane.b32.xlu0 %v2343, 16
        %v2759 = vpop.permute.xlu0 %2758
        %2760 = vrot.lane.b32.xlu0 %v2344, 16
        %v2761 = vpop.permute.xlu0 %2760
        %2826 = vrot.lane.b32.xlu0 %v2345, 24
        %v2827 = vpop.permute.xlu0 %2826
        %2828 = vrot.lane.b32.xlu0 %v2346, 24
        %v2829 = vpop.permute.xlu0 %2828
        %2830 = vrot.lane.b32.xlu0 %v2347, 24
        %v2831 = vpop.permute.xlu0 %2830
        %2832 = vrot.lane.b32.xlu0 %v2348, 24
        %v2833 = vpop.permute.xlu0 %2832
        %2834 = vrot.lane.b32.xlu0 %v2349, 24
        %v2835 = vpop.permute.xlu0 %2834
        %2836 = vrot.lane.b32.xlu0 %v2350, 24
        %v2837 = vpop.permute.xlu0 %2836
        %2838 = vrot.lane.b32.xlu0 %v2351, 24
        %v2839 = vpop.permute.xlu0 %2838
        %2840 = vrot.lane.b32.xlu0 %v2352, 24
        %v2841 = vpop.permute.xlu0 %2840
        %2842 = vrot.lane.b32.xlu0 %v2353, 24
        %v2843 = vpop.permute.xlu0 %2842
        %2844 = vrot.lane.b32.xlu0 %v2354, 24
        %v2845 = vpop.permute.xlu0 %2844
        %2846 = vrot.lane.b32.xlu0 %v2355, 24
        %v2847 = vpop.permute.xlu0 %2846
        %2848 = vrot.lane.b32.xlu0 %v2356, 24
        %v2849 = vpop.permute.xlu0 %2848
        %2850 = vrot.lane.b32.xlu0 %v2357, 24
        %v2851 = vpop.permute.xlu0 %2850
        %2852 = vrot.lane.b32.xlu0 %v2358, 24
        %v2853 = vpop.permute.xlu0 %2852
        %2854 = vrot.lane.b32.xlu0 %v2359, 24
        %v2855 = vpop.permute.xlu0 %2854
        %2856 = vrot.lane.b32.xlu0 %v2360, 24
        %v2857 = vpop.permute.xlu0 %2856
        %2858 = vrot.lane.b32.xlu0 %v2361, 24
        %v2859 = vpop.permute.xlu0 %2858
        %2860 = vrot.lane.b32.xlu0 %v2362, 24
        %v2861 = vpop.permute.xlu0 %2860
        %2862 = vrot.lane.b32.xlu0 %v2363, 24
        %v2863 = vpop.permute.xlu0 %2862
        %2864 = vrot.lane.b32.xlu0 %v2364, 24
        %v2865 = vpop.permute.xlu0 %2864
        %2866 = vrot.lane.b32.xlu0 %v2365, 24
        %v2867 = vpop.permute.xlu0 %2866
        %2868 = vrot.lane.b32.xlu0 %v2366, 24
        %v2869 = vpop.permute.xlu0 %2868
        %2870 = vrot.lane.b32.xlu0 %v2367, 24
        %v2871 = vpop.permute.xlu0 %2870
        %2872 = vrot.lane.b32.xlu0 %v2368, 24
        %v2873 = vpop.permute.xlu0 %2872
        %2874 = vrot.lane.b32.xlu0 %v2369, 24
        %v2875 = vpop.permute.xlu0 %2874
        %2876 = vrot.lane.b32.xlu0 %v2370, 24
        %v2877 = vpop.permute.xlu0 %2876
        %2878 = vrot.lane.b32.xlu0 %v2371, 24
        %v2879 = vpop.permute.xlu0 %2878
        %2880 = vrot.lane.b32.xlu0 %v2372, 24
        %v2881 = vpop.permute.xlu0 %2880
        %2882 = vrot.lane.b32.xlu0 %v2373, 24
        %v2883 = vpop.permute.xlu0 %2882
        %2884 = vrot.lane.b32.xlu0 %v2374, 24
        %v2885 = vpop.permute.xlu0 %2884
        %2886 = vrot.lane.b32.xlu0 %v2375, 24
        %v2887 = vpop.permute.xlu0 %2886
        %2888 = vrot.lane.b32.xlu0 %v2376, 24
        %v2889 = vpop.permute.xlu0 %2888
        %2954 = vrot.lane.b32.xlu0 %v2377, 32
        %v2955 = vpop.permute.xlu0 %2954
        %2956 = vrot.lane.b32.xlu0 %v2378, 32
        %v2957 = vpop.permute.xlu0 %2956
        %2958 = vrot.lane.b32.xlu0 %v2379, 32
        %v2959 = vpop.permute.xlu0 %2958
        %2960 = vrot.lane.b32.xlu0 %v2380, 32
        %v2961 = vpop.permute.xlu0 %2960
        %2962 = vrot.lane.b32.xlu0 %v2381, 32
        %v2963 = vpop.permute.xlu0 %2962
        %2964 = vrot.lane.b32.xlu0 %v2382, 32
        %v2965 = vpop.permute.xlu0 %2964
        %2966 = vrot.lane.b32.xlu0 %v2383, 32
        %v2967 = vpop.permute.xlu0 %2966
        %2968 = vrot.lane.b32.xlu0 %v2384, 32
        %v2969 = vpop.permute.xlu0 %2968
        %2970 = vrot.lane.b32.xlu0 %v2385, 32
        %v2971 = vpop.permute.xlu0 %2970
        %2972 = vrot.lane.b32.xlu0 %v2386, 32
        %v2973 = vpop.permute.xlu0 %2972
        %2974 = vrot.lane.b32.xlu0 %v2387, 32
        %v2975 = vpop.permute.xlu0 %2974
        %2976 = vrot.lane.b32.xlu0 %v2388, 32
        %v2977 = vpop.permute.xlu0 %2976
        %2978 = vrot.lane.b32.xlu0 %v2389, 32
        %v2979 = vpop.permute.xlu0 %2978
        %2980 = vrot.lane.b32.xlu0 %v2390, 32
        %v2981 = vpop.permute.xlu0 %2980
        %2982 = vrot.lane.b32.xlu0 %v2391, 32
        %v2983 = vpop.permute.xlu0 %2982
        %2984 = vrot.lane.b32.xlu0 %v2392, 32
        %v2985 = vpop.permute.xlu0 %2984
        %2986 = vrot.lane.b32.xlu0 %v2393, 32
        %v2987 = vpop.permute.xlu0 %2986
        %2988 = vrot.lane.b32.xlu0 %v2394, 32
        %v2989 = vpop.permute.xlu0 %2988
        %2990 = vrot.lane.b32.xlu0 %v2395, 32
        %v2991 = vpop.permute.xlu0 %2990
        %2992 = vrot.lane.b32.xlu0 %v2396, 32
        %v2993 = vpop.permute.xlu0 %2992
        %2994 = vrot.lane.b32.xlu0 %v2397, 32
        %v2995 = vpop.permute.xlu0 %2994
        %2996 = vrot.lane.b32.xlu0 %v2398, 32
        %v2997 = vpop.permute.xlu0 %2996
        %2998 = vrot.lane.b32.xlu0 %v2399, 32
        %v2999 = vpop.permute.xlu0 %2998
        %3000 = vrot.lane.b32.xlu0 %v2400, 32
        %v3001 = vpop.permute.xlu0 %3000
        %3002 = vrot.lane.b32.xlu0 %v2401, 32
        %v3003 = vpop.permute.xlu0 %3002
        %3004 = vrot.lane.b32.xlu0 %v2402, 32
        %v3005 = vpop.permute.xlu0 %3004
        %3006 = vrot.lane.b32.xlu0 %v2403, 32
        %v3007 = vpop.permute.xlu0 %3006
        %3008 = vrot.lane.b32.xlu0 %v2404, 32
        %v3009 = vpop.permute.xlu0 %3008
        %3010 = vrot.lane.b32.xlu0 %v2405, 32
        %v3011 = vpop.permute.xlu0 %3010
        %3012 = vrot.lane.b32.xlu0 %v2406, 32
        %v3013 = vpop.permute.xlu0 %3012
        %3014 = vrot.lane.b32.xlu0 %v2407, 32
        %v3015 = vpop.permute.xlu0 %3014
        %3016 = vrot.lane.b32.xlu0 %v2408, 32
        %v3017 = vpop.permute.xlu0 %3016
        %3082 = vrot.lane.b32.xlu0 %v2409, 40
        %v3083 = vpop.permute.xlu0 %3082
        %3084 = vrot.lane.b32.xlu0 %v2410, 40
        %v3085 = vpop.permute.xlu0 %3084
        %3086 = vrot.lane.b32.xlu0 %v2411, 40
        %v3087 = vpop.permute.xlu0 %3086
        %3088 = vrot.lane.b32.xlu0 %v2412, 40
        %v3089 = vpop.permute.xlu0 %3088
        %3090 = vrot.lane.b32.xlu0 %v2413, 40
        %v3091 = vpop.permute.xlu0 %3090
        %3092 = vrot.lane.b32.xlu0 %v2414, 40
        %v3093 = vpop.permute.xlu0 %3092
        %3094 = vrot.lane.b32.xlu0 %v2415, 40
        %v3095 = vpop.permute.xlu0 %3094
        %3096 = vrot.lane.b32.xlu0 %v2416, 40
        %v3097 = vpop.permute.xlu0 %3096
        %3098 = vrot.lane.b32.xlu0 %v2417, 40
        %v3099 = vpop.permute.xlu0 %3098
        %3100 = vrot.lane.b32.xlu0 %v2418, 40
        %v3101 = vpop.permute.xlu0 %3100
        %3102 = vrot.lane.b32.xlu0 %v2419, 40
        %v3103 = vpop.permute.xlu0 %3102
        %3104 = vrot.lane.b32.xlu0 %v2420, 40
        %v3105 = vpop.permute.xlu0 %3104
        %3106 = vrot.lane.b32.xlu0 %v2421, 40
        %v3107 = vpop.permute.xlu0 %3106
        %3108 = vrot.lane.b32.xlu0 %v2422, 40
        %v3109 = vpop.permute.xlu0 %3108
        %3110 = vrot.lane.b32.xlu0 %v2423, 40
        %v3111 = vpop.permute.xlu0 %3110
        %3112 = vrot.lane.b32.xlu0 %v2424, 40
        %v3113 = vpop.permute.xlu0 %3112
        %3114 = vrot.lane.b32.xlu0 %v2425, 40
        %v3115 = vpop.permute.xlu0 %3114
        %3116 = vrot.lane.b32.xlu0 %v2426, 40
        %v3117 = vpop.permute.xlu0 %3116
        %3118 = vrot.lane.b32.xlu0 %v2427, 40
        %v3119 = vpop.permute.xlu0 %3118
        %3120 = vrot.lane.b32.xlu0 %v2428, 40
        %v3121 = vpop.permute.xlu0 %3120
        %3122 = vrot.lane.b32.xlu0 %v2429, 40
        %v3123 = vpop.permute.xlu0 %3122
        %3124 = vrot.lane.b32.xlu0 %v2430, 40
        %v3125 = vpop.permute.xlu0 %3124
        %3126 = vrot.lane.b32.xlu0 %v2431, 40
        %v3127 = vpop.permute.xlu0 %3126
        %3128 = vrot.lane.b32.xlu0 %v2432, 40
        %v3129 = vpop.permute.xlu0 %3128
        %3130 = vrot.lane.b32.xlu0 %v2433, 40
        %v3131 = vpop.permute.xlu0 %3130
        %3132 = vrot.lane.b32.xlu0 %v2434, 40
        %v3133 = vpop.permute.xlu0 %3132
        %3134 = vrot.lane.b32.xlu0 %v2435, 40
        %v3135 = vpop.permute.xlu0 %3134
        %3136 = vrot.lane.b32.xlu0 %v2436, 40
        %v3137 = vpop.permute.xlu0 %3136
        %3138 = vrot.lane.b32.xlu0 %v2437, 40
        %v3139 = vpop.permute.xlu0 %3138
        %3140 = vrot.lane.b32.xlu0 %v2438, 40
        %v3141 = vpop.permute.xlu0 %3140
        %3142 = vrot.lane.b32.xlu0 %v2439, 40
        %v3143 = vpop.permute.xlu0 %3142
        %3144 = vrot.lane.b32.xlu0 %v2440, 40
        %v3145 = vpop.permute.xlu0 %3144
        %3210 = vrot.lane.b32.xlu0 %v2442, 48
        %v3211 = vpop.permute.xlu0 %3210
        %3212 = vrot.lane.b32.xlu0 %v2443, 48
        %v3213 = vpop.permute.xlu0 %3212
        %3214 = vrot.lane.b32.xlu0 %v2444, 48
        %v3215 = vpop.permute.xlu0 %3214
        %3216 = vrot.lane.b32.xlu0 %v2445, 48
        %v3217 = vpop.permute.xlu0 %3216
        %3218 = vrot.lane.b32.xlu0 %v2446, 48
        %v3219 = vpop.permute.xlu0 %3218
        %3220 = vrot.lane.b32.xlu0 %v2447, 48
        %v3221 = vpop.permute.xlu0 %3220
        %3222 = vrot.lane.b32.xlu0 %v2448, 48
        %v3223 = vpop.permute.xlu0 %3222
        %3224 = vrot.lane.b32.xlu0 %v2449, 48
        %v3225 = vpop.permute.xlu0 %3224
        %3226 = vrot.lane.b32.xlu0 %v2450, 48
        %v3227 = vpop.permute.xlu0 %3226
        %3228 = vrot.lane.b32.xlu0 %v2451, 48
        %v3229 = vpop.permute.xlu0 %3228
        %3230 = vrot.lane.b32.xlu0 %v2452, 48
        %v3231 = vpop.permute.xlu0 %3230
        %3232 = vrot.lane.b32.xlu0 %v2453, 48
        %v3233 = vpop.permute.xlu0 %3232
        %3234 = vrot.lane.b32.xlu0 %v2454, 48
        %v3235 = vpop.permute.xlu0 %3234
        %3236 = vrot.lane.b32.xlu0 %v2455, 48
        %v3237 = vpop.permute.xlu0 %3236
        %3238 = vrot.lane.b32.xlu0 %v2456, 48
        %v3239 = vpop.permute.xlu0 %3238
        %3240 = vrot.lane.b32.xlu0 %v2457, 48
        %v3241 = vpop.permute.xlu0 %3240
        %3242 = vrot.lane.b32.xlu0 %v2458, 48
        %v3243 = vpop.permute.xlu0 %3242
        %3244 = vrot.lane.b32.xlu0 %v2459, 48
        %v3245 = vpop.permute.xlu0 %3244
        %3246 = vrot.lane.b32.xlu0 %v2460, 48
        %v3247 = vpop.permute.xlu0 %3246
        %3248 = vrot.lane.b32.xlu0 %v2461, 48
        %v3249 = vpop.permute.xlu0 %3248
        %3250 = vrot.lane.b32.xlu0 %v2462, 48
        %v3251 = vpop.permute.xlu0 %3250
        %3252 = vrot.lane.b32.xlu0 %v2463, 48
        %v3253 = vpop.permute.xlu0 %3252
        %3254 = vrot.lane.b32.xlu0 %v2464, 48
        %v3255 = vpop.permute.xlu0 %3254
        %3256 = vrot.lane.b32.xlu0 %v2465, 48
        %v3257 = vpop.permute.xlu0 %3256
        %3258 = vrot.lane.b32.xlu0 %v2466, 48
        %v3259 = vpop.permute.xlu0 %3258
        %3260 = vrot.lane.b32.xlu0 %v2467, 48
        %v3261 = vpop.permute.xlu0 %3260
        %3262 = vrot.lane.b32.xlu0 %v2468, 48
        %v3263 = vpop.permute.xlu0 %3262
        %3264 = vrot.lane.b32.xlu0 %v2469, 48
        %v3265 = vpop.permute.xlu0 %3264
        %3266 = vrot.lane.b32.xlu0 %v2470, 48
        %v3267 = vpop.permute.xlu0 %3266
        %3268 = vrot.lane.b32.xlu0 %v2471, 48
        %v3269 = vpop.permute.xlu0 %3268
        %3270 = vrot.lane.b32.xlu0 %v2472, 48
        %v3271 = vpop.permute.xlu0 %3270
        %3272 = vrot.lane.b32.xlu0 %v2473, 48
        %v3273 = vpop.permute.xlu0 %3272
        %3338 = vrot.lane.b32.xlu0 %v2474, 56
        %v3339 = vpop.permute.xlu0 %3338
        %3340 = vrot.lane.b32.xlu0 %v2475, 56
        %v3341 = vpop.permute.xlu0 %3340
        %3342 = vrot.lane.b32.xlu0 %v2476, 56
        %v3343 = vpop.permute.xlu0 %3342
        %3344 = vrot.lane.b32.xlu0 %v2477, 56
        %v3345 = vpop.permute.xlu0 %3344
        %3346 = vrot.lane.b32.xlu0 %v2478, 56
        %v3347 = vpop.permute.xlu0 %3346
        %3348 = vrot.lane.b32.xlu0 %v2479, 56
        %v3349 = vpop.permute.xlu0 %3348
        %3350 = vrot.lane.b32.xlu0 %v2480, 56
        %v3351 = vpop.permute.xlu0 %3350
        %3352 = vrot.lane.b32.xlu0 %v2481, 56
        %v3353 = vpop.permute.xlu0 %3352
        %3354 = vrot.lane.b32.xlu0 %v2482, 56
        %v3355 = vpop.permute.xlu0 %3354
        %3356 = vrot.lane.b32.xlu0 %v2483, 56
        %v3357 = vpop.permute.xlu0 %3356
        %3358 = vrot.lane.b32.xlu0 %v2484, 56
        %v3359 = vpop.permute.xlu0 %3358
        %3360 = vrot.lane.b32.xlu0 %v2485, 56
        %v3361 = vpop.permute.xlu0 %3360
        %3362 = vrot.lane.b32.xlu0 %v2486, 56
        %v3363 = vpop.permute.xlu0 %3362
        %3364 = vrot.lane.b32.xlu0 %v2487, 56
        %v3365 = vpop.permute.xlu0 %3364
        %3366 = vrot.lane.b32.xlu0 %v2488, 56
        %v3367 = vpop.permute.xlu0 %3366
        %3368 = vrot.lane.b32.xlu0 %v2489, 56
        %v3369 = vpop.permute.xlu0 %3368
        %3370 = vrot.lane.b32.xlu0 %v2490, 56
        %v3371 = vpop.permute.xlu0 %3370
        %3372 = vrot.lane.b32.xlu0 %v2491, 56
        %v3373 = vpop.permute.xlu0 %3372
        %3374 = vrot.lane.b32.xlu0 %v2492, 56
        %v3375 = vpop.permute.xlu0 %3374
        %3376 = vrot.lane.b32.xlu0 %v2493, 56
        %v3377 = vpop.permute.xlu0 %3376
        %3378 = vrot.lane.b32.xlu0 %v2494, 56
        %v3379 = vpop.permute.xlu0 %3378
        %3380 = vrot.lane.b32.xlu0 %v2495, 56
        %v3381 = vpop.permute.xlu0 %3380
        %3382 = vrot.lane.b32.xlu0 %v2496, 56
        %v3383 = vpop.permute.xlu0 %3382
        %3384 = vrot.lane.b32.xlu0 %v2497, 56
        %v3385 = vpop.permute.xlu0 %3384
        %3386 = vrot.lane.b32.xlu0 %v2498, 56
        %v3387 = vpop.permute.xlu0 %3386
        %3388 = vrot.lane.b32.xlu0 %v2499, 56
        %v3389 = vpop.permute.xlu0 %3388
        %3390 = vrot.lane.b32.xlu0 %v2500, 56
        %v3391 = vpop.permute.xlu0 %3390
        %3392 = vrot.lane.b32.xlu0 %v2501, 56
        %v3393 = vpop.permute.xlu0 %3392
        %3394 = vrot.lane.b32.xlu0 %v2502, 56
        %v3395 = vpop.permute.xlu0 %3394
        %3396 = vrot.lane.b32.xlu0 %v2503, 56
        %v3397 = vpop.permute.xlu0 %3396
        %3398 = vrot.lane.b32.xlu0 %v2504, 56
        %v3399 = vpop.permute.xlu0 %3398
        %3400 = vrot.lane.b32.xlu0 %v2505, 56
        %v3401 = vpop.permute.xlu0 %3400
        %3466 = vrot.lane.b32.xlu0 %v2506, 64
        %v3467 = vpop.permute.xlu0 %3466
        %3468 = vrot.lane.b32.xlu0 %v2507, 64
        %v3469 = vpop.permute.xlu0 %3468
        %3470 = vrot.lane.b32.xlu0 %v2508, 64
        %v3471 = vpop.permute.xlu0 %3470
        %3472 = vrot.lane.b32.xlu0 %v2509, 64
        %v3473 = vpop.permute.xlu0 %3472
        %3474 = vrot.lane.b32.xlu0 %v2510, 64
        %v3475 = vpop.permute.xlu0 %3474
        %3476 = vrot.lane.b32.xlu0 %v2511, 64
        %v3477 = vpop.permute.xlu0 %3476
        %3478 = vrot.lane.b32.xlu0 %v2512, 64
        %v3479 = vpop.permute.xlu0 %3478
        %3480 = vrot.lane.b32.xlu0 %v2513, 64
        %v3481 = vpop.permute.xlu0 %3480
        %3482 = vrot.lane.b32.xlu0 %v2514, 64
        %v3483 = vpop.permute.xlu0 %3482
        %3484 = vrot.lane.b32.xlu0 %v2515, 64
        %v3485 = vpop.permute.xlu0 %3484
        %3486 = vrot.lane.b32.xlu0 %v2516, 64
        %v3487 = vpop.permute.xlu0 %3486
        %3488 = vrot.lane.b32.xlu0 %v2517, 64
        %v3489 = vpop.permute.xlu0 %3488
        %3490 = vrot.lane.b32.xlu0 %v2518, 64
        %v3491 = vpop.permute.xlu0 %3490
        %3492 = vrot.lane.b32.xlu0 %v2519, 64
        %v3493 = vpop.permute.xlu0 %3492
        %3494 = vrot.lane.b32.xlu0 %v2520, 64
        %v3495 = vpop.permute.xlu0 %3494
        %3496 = vrot.lane.b32.xlu0 %v2521, 64
        %v3497 = vpop.permute.xlu0 %3496
        %3498 = vrot.lane.b32.xlu0 %v2522, 64
        %v3499 = vpop.permute.xlu0 %3498
        %3500 = vrot.lane.b32.xlu0 %v2523, 64
        %v3501 = vpop.permute.xlu0 %3500
        %3502 = vrot.lane.b32.xlu0 %v2524, 64
        %v3503 = vpop.permute.xlu0 %3502
        %3504 = vrot.lane.b32.xlu0 %v2525, 64
        %v3505 = vpop.permute.xlu0 %3504
        %3506 = vrot.lane.b32.xlu0 %v2526, 64
        %v3507 = vpop.permute.xlu0 %3506
        %3508 = vrot.lane.b32.xlu0 %v2527, 64
        %v3509 = vpop.permute.xlu0 %3508
        %3510 = vrot.lane.b32.xlu0 %v2528, 64
        %v3511 = vpop.permute.xlu0 %3510
        %3512 = vrot.lane.b32.xlu0 %v2529, 64
        %v3513 = vpop.permute.xlu0 %3512
        %3514 = vrot.lane.b32.xlu0 %v2530, 64
        %v3515 = vpop.permute.xlu0 %3514
        %3516 = vrot.lane.b32.xlu0 %v2531, 64
        %v3517 = vpop.permute.xlu0 %3516
        %3518 = vrot.lane.b32.xlu0 %v2532, 64
        %v3519 = vpop.permute.xlu0 %3518
        %3520 = vrot.lane.b32.xlu0 %v2533, 64
        %v3521 = vpop.permute.xlu0 %3520
        %3522 = vrot.lane.b32.xlu0 %v2534, 64
        %v3523 = vpop.permute.xlu0 %3522
        %3524 = vrot.lane.b32.xlu0 %v2535, 64
        %v3525 = vpop.permute.xlu0 %3524
        %3526 = vrot.lane.b32.xlu0 %v2536, 64
        %v3527 = vpop.permute.xlu0 %3526
        %3528 = vrot.lane.b32.xlu0 %v2537, 64
        %v3529 = vpop.permute.xlu0 %3528
        %v3562 = vsel %vm1570, %v2249, %v2571
        %v3563 = vsel %vm1570, %v2250, %v2573
        %v3564 = vsel %vm1570, %v2251, %v2575
        %v3565 = vsel %vm1570, %v2252, %v2577
        %v3566 = vsel %vm1570, %v2253, %v2579
        %v3567 = vsel %vm1570, %v2254, %v2581
        %v3568 = vsel %vm1570, %v2255, %v2583
        %v3569 = vsel %vm1570, %v2256, %v2585
        %v3570 = vsel %vm1570, %v2257, %v2587
        %v3571 = vsel %vm1570, %v2258, %v2589
        %v3572 = vsel %vm1570, %v2259, %v2591
        %v3573 = vsel %vm1570, %v2260, %v2593
        %v3574 = vsel %vm1570, %v2261, %v2595
        %v3575 = vsel %vm1570, %v2262, %v2597
        %v3576 = vsel %vm1570, %v2263, %v2599
        %v3577 = vsel %vm1570, %v2264, %v2601
        %v3578 = vsel %vm1570, %v2265, %v2603
        %v3579 = vsel %vm1570, %v2266, %v2605
        %v3580 = vsel %vm1570, %v2267, %v2607
        %v3581 = vsel %vm1570, %v2268, %v2609
        %v3582 = vsel %vm1570, %v2269, %v2611
        %v3583 = vsel %vm1570, %v2270, %v2613
        %v3584 = vsel %vm1570, %v2271, %v2615
        %v3585 = vsel %vm1570, %v2272, %v2617
        %v3586 = vsel %vm1570, %v2273, %v2619
        %v3587 = vsel %vm1570, %v2274, %v2621
        %v3588 = vsel %vm1570, %v2275, %v2623
        %v3589 = vsel %vm1570, %v2276, %v2625
        %v3590 = vsel %vm1570, %v2277, %v2627
        %v3591 = vsel %vm1570, %v2278, %v2629
        %v3592 = vsel %vm1570, %v2279, %v2631
        %v3593 = vsel %vm1570, %v2280, %v2633
        %v3594 = vsel %vm1636, %v3562, %v2699
        %v3595 = vsel %vm1636, %v3563, %v2701
        %v3596 = vsel %vm1636, %v3564, %v2703
        %v3597 = vsel %vm1636, %v3565, %v2705
        %v3598 = vsel %vm1636, %v3566, %v2707
        %v3599 = vsel %vm1636, %v3567, %v2709
        %v3600 = vsel %vm1636, %v3568, %v2711
        %v3601 = vsel %vm1636, %v3569, %v2713
        %v3602 = vsel %vm1636, %v3570, %v2715
        %v3603 = vsel %vm1636, %v3571, %v2717
        %v3604 = vsel %vm1636, %v3572, %v2719
        %v3605 = vsel %vm1636, %v3573, %v2721
        %v3606 = vsel %vm1636, %v3574, %v2723
        %v3607 = vsel %vm1636, %v3575, %v2725
        %v3608 = vsel %vm1636, %v3576, %v2727
        %v3609 = vsel %vm1636, %v3577, %v2729
        %v3610 = vsel %vm1636, %v3578, %v2731
        %v3611 = vsel %vm1636, %v3579, %v2733
        %v3612 = vsel %vm1636, %v3580, %v2735
        %v3613 = vsel %vm1636, %v3581, %v2737
        %v3614 = vsel %vm1636, %v3582, %v2739
        %v3615 = vsel %vm1636, %v3583, %v2741
        %v3616 = vsel %vm1636, %v3584, %v2743
        %v3617 = vsel %vm1636, %v3585, %v2745
        %v3618 = vsel %vm1636, %v3586, %v2747
        %v3619 = vsel %vm1636, %v3587, %v2749
        %v3620 = vsel %vm1636, %v3588, %v2751
        %v3621 = vsel %vm1636, %v3589, %v2753
        %v3622 = vsel %vm1636, %v3590, %v2755
        %v3623 = vsel %vm1636, %v3591, %v2757
        %v3624 = vsel %vm1636, %v3592, %v2759
        %v3625 = vsel %vm1636, %v3593, %v2761
        %v3626 = vsel %vm1702, %v3594, %v2827
        %v3627 = vsel %vm1702, %v3595, %v2829
        %v3628 = vsel %vm1702, %v3596, %v2831
        %v3629 = vsel %vm1702, %v3597, %v2833
        %v3630 = vsel %vm1702, %v3598, %v2835
        %v3631 = vsel %vm1702, %v3599, %v2837
        %v3632 = vsel %vm1702, %v3600, %v2839
        %v3633 = vsel %vm1702, %v3601, %v2841
        %v3634 = vsel %vm1702, %v3602, %v2843
        %v3635 = vsel %vm1702, %v3603, %v2845
        %v3636 = vsel %vm1702, %v3604, %v2847
        %v3637 = vsel %vm1702, %v3605, %v2849
        %v3638 = vsel %vm1702, %v3606, %v2851
        %v3639 = vsel %vm1702, %v3607, %v2853
        %v3640 = vsel %vm1702, %v3608, %v2855
        %v3641 = vsel %vm1702, %v3609, %v2857
        %v3642 = vsel %vm1702, %v3610, %v2859
        %v3643 = vsel %vm1702, %v3611, %v2861
        %v3644 = vsel %vm1702, %v3612, %v2863
        %v3645 = vsel %vm1702, %v3613, %v2865
        %v3646 = vsel %vm1702, %v3614, %v2867
        %v3647 = vsel %vm1702, %v3615, %v2869
        %v3648 = vsel %vm1702, %v3616, %v2871
        %v3649 = vsel %vm1702, %v3617, %v2873
        %v3650 = vsel %vm1702, %v3618, %v2875
        %v3651 = vsel %vm1702, %v3619, %v2877
        %v3652 = vsel %vm1702, %v3620, %v2879
        %v3653 = vsel %vm1702, %v3621, %v2881
        %v3654 = vsel %vm1702, %v3622, %v2883
        %v3655 = vsel %vm1702, %v3623, %v2885
        %v3656 = vsel %vm1702, %v3624, %v2887
        %v3657 = vsel %vm1702, %v3625, %v2889
        %v3658 = vsel %vm1768, %v3626, %v2955
        %v3659 = vsel %vm1768, %v3627, %v2957
        %v3660 = vsel %vm1768, %v3628, %v2959
        %v3661 = vsel %vm1768, %v3629, %v2961
        %v3662 = vsel %vm1768, %v3630, %v2963
        %v3663 = vsel %vm1768, %v3631, %v2965
        %v3664 = vsel %vm1768, %v3632, %v2967
        %v3665 = vsel %vm1768, %v3633, %v2969
        %v3666 = vsel %vm1768, %v3634, %v2971
        %v3667 = vsel %vm1768, %v3635, %v2973
        %v3668 = vsel %vm1768, %v3636, %v2975
        %v3669 = vsel %vm1768, %v3637, %v2977
        %v3670 = vsel %vm1768, %v3638, %v2979
        %v3671 = vsel %vm1768, %v3639, %v2981
        %v3672 = vsel %vm1768, %v3640, %v2983
        %v3673 = vsel %vm1768, %v3641, %v2985
        %v3674 = vsel %vm1768, %v3642, %v2987
        %v3675 = vsel %vm1768, %v3643, %v2989
        %v3676 = vsel %vm1768, %v3644, %v2991
        %v3677 = vsel %vm1768, %v3645, %v2993
        %v3678 = vsel %vm1768, %v3646, %v2995
        %v3679 = vsel %vm1768, %v3647, %v2997
        %v3680 = vsel %vm1768, %v3648, %v2999
        %v3681 = vsel %vm1768, %v3649, %v3001
        %v3682 = vsel %vm1768, %v3650, %v3003
        %v3683 = vsel %vm1768, %v3651, %v3005
        %v3684 = vsel %vm1768, %v3652, %v3007
        %v3685 = vsel %vm1768, %v3653, %v3009
        %v3686 = vsel %vm1768, %v3654, %v3011
        %v3687 = vsel %vm1768, %v3655, %v3013
        %v3688 = vsel %vm1768, %v3656, %v3015
        %v3689 = vsel %vm1768, %v3657, %v3017
        %vm3690 = vcmask 326656
        %v3691 = vsel %vm3690, %v3658, %v3083
        %v3692 = vsel %vm3690, %v3659, %v3085
        %v3693 = vsel %vm3690, %v3660, %v3087
        %v3694 = vsel %vm3690, %v3661, %v3089
        %v3695 = vsel %vm3690, %v3662, %v3091
        %v3696 = vsel %vm3690, %v3663, %v3093
        %v3697 = vsel %vm3690, %v3664, %v3095
        %v3698 = vsel %vm3690, %v3665, %v3097
        %v3699 = vsel %vm3690, %v3666, %v3099
        %v3700 = vsel %vm3690, %v3667, %v3101
        %v3701 = vsel %vm3690, %v3668, %v3103
        %v3702 = vsel %vm3690, %v3669, %v3105
        %v3703 = vsel %vm3690, %v3670, %v3107
        %v3704 = vsel %vm3690, %v3671, %v3109
        %v3705 = vsel %vm3690, %v3672, %v3111
        %v3706 = vsel %vm3690, %v3673, %v3113
        %v3707 = vsel %vm3690, %v3674, %v3115
        %v3708 = vsel %vm3690, %v3675, %v3117
        %v3709 = vsel %vm3690, %v3676, %v3119
        %v3710 = vsel %vm3690, %v3677, %v3121
        %v3711 = vsel %vm3690, %v3678, %v3123
        %v3712 = vsel %vm3690, %v3679, %v3125
        %v3713 = vsel %vm3690, %v3680, %v3127
        %v3714 = vsel %vm3690, %v3681, %v3129
        %v3715 = vsel %vm3690, %v3682, %v3131
        %v3716 = vsel %vm3690, %v3683, %v3133
        %v3717 = vsel %vm3690, %v3684, %v3135
        %v3718 = vsel %vm3690, %v3685, %v3137
        %v3719 = vsel %vm3690, %v3686, %v3139
        %v3720 = vsel %vm3690, %v3687, %v3141
        %v3721 = vsel %vm3690, %v3688, %v3143
        %v3722 = vsel %vm3690, %v3689, %v3145
        %vm3723 = vcmask 392192
        %v3724 = vsel %vm3723, %v3691, %v3211
        %v3725 = vsel %vm3723, %v3692, %v3213
        %v3726 = vsel %vm3723, %v3693, %v3215
        %v3727 = vsel %vm3723, %v3694, %v3217
        %v3728 = vsel %vm3723, %v3695, %v3219
        %v3729 = vsel %vm3723, %v3696, %v3221
        %v3730 = vsel %vm3723, %v3697, %v3223
        %v3731 = vsel %vm3723, %v3698, %v3225
        %v3732 = vsel %vm3723, %v3699, %v3227
        %v3733 = vsel %vm3723, %v3700, %v3229
        %v3734 = vsel %vm3723, %v3701, %v3231
        %v3735 = vsel %vm3723, %v3702, %v3233
        %v3736 = vsel %vm3723, %v3703, %v3235
        %v3737 = vsel %vm3723, %v3704, %v3237
        %v3738 = vsel %vm3723, %v3705, %v3239
        %v3739 = vsel %vm3723, %v3706, %v3241
        %v3740 = vsel %vm3723, %v3707, %v3243
        %v3741 = vsel %vm3723, %v3708, %v3245
        %v3742 = vsel %vm3723, %v3709, %v3247
        %v3743 = vsel %vm3723, %v3710, %v3249
        %v3744 = vsel %vm3723, %v3711, %v3251
        %v3745 = vsel %vm3723, %v3712, %v3253
        %v3746 = vsel %vm3723, %v3713, %v3255
        %v3747 = vsel %vm3723, %v3714, %v3257
        %v3748 = vsel %vm3723, %v3715, %v3259
        %v3749 = vsel %vm3723, %v3716, %v3261
        %v3750 = vsel %vm3723, %v3717, %v3263
        %v3751 = vsel %vm3723, %v3718, %v3265
        %v3752 = vsel %vm3723, %v3719, %v3267
        %v3753 = vsel %vm3723, %v3720, %v3269
        %v3754 = vsel %vm3723, %v3721, %v3271
        %v3755 = vsel %vm3723, %v3722, %v3273
        %vm3756 = vcmask 457728
        %v3757 = vsel %vm3756, %v3724, %v3339
        %v3758 = vsel %vm3756, %v3725, %v3341
        %v3759 = vsel %vm3756, %v3726, %v3343
        %v3760 = vsel %vm3756, %v3727, %v3345
        %v3761 = vsel %vm3756, %v3728, %v3347
        %v3762 = vsel %vm3756, %v3729, %v3349
        %v3763 = vsel %vm3756, %v3730, %v3351
        %v3764 = vsel %vm3756, %v3731, %v3353
        %v3765 = vsel %vm3756, %v3732, %v3355
        %v3766 = vsel %vm3756, %v3733, %v3357
        %v3767 = vsel %vm3756, %v3734, %v3359
        %v3768 = vsel %vm3756, %v3735, %v3361
        %v3769 = vsel %vm3756, %v3736, %v3363
        %v3770 = vsel %vm3756, %v3737, %v3365
        %v3771 = vsel %vm3756, %v3738, %v3367
        %v3772 = vsel %vm3756, %v3739, %v3369
        %v3773 = vsel %vm3756, %v3740, %v3371
        %v3774 = vsel %vm3756, %v3741, %v3373
        %v3775 = vsel %vm3756, %v3742, %v3375
        %v3776 = vsel %vm3756, %v3743, %v3377
        %v3777 = vsel %vm3756, %v3744, %v3379
        %v3778 = vsel %vm3756, %v3745, %v3381
        %v3779 = vsel %vm3756, %v3746, %v3383
        %v3780 = vsel %vm3756, %v3747, %v3385
        %v3781 = vsel %vm3756, %v3748, %v3387
        %v3782 = vsel %vm3756, %v3749, %v3389
        %v3783 = vsel %vm3756, %v3750, %v3391
        %v3784 = vsel %vm3756, %v3751, %v3393
        %v3785 = vsel %vm3756, %v3752, %v3395
        %v3786 = vsel %vm3756, %v3753, %v3397
        %v3787 = vsel %vm3756, %v3754, %v3399
        %v3788 = vsel %vm3756, %v3755, %v3401
        %vm3789 = vcmask 523264
        %v3790 = vsel %vm3789, %v3757, %v3467
        %v3791 = vsel %vm3789, %v3758, %v3469
        %v3792 = vsel %vm3789, %v3759, %v3471
        %v3793 = vsel %vm3789, %v3760, %v3473
        %v3794 = vsel %vm3789, %v3761, %v3475
        %v3795 = vsel %vm3789, %v3762, %v3477
        %v3796 = vsel %vm3789, %v3763, %v3479
        %v3797 = vsel %vm3789, %v3764, %v3481
        %v3798 = vsel %vm3789, %v3765, %v3483
        %v3799 = vsel %vm3789, %v3766, %v3485
        %v3800 = vsel %vm3789, %v3767, %v3487
        %v3801 = vsel %vm3789, %v3768, %v3489
        %v3802 = vsel %vm3789, %v3769, %v3491
        %v3803 = vsel %vm3789, %v3770, %v3493
        %v3804 = vsel %vm3789, %v3771, %v3495
        %v3805 = vsel %vm3789, %v3772, %v3497
        %v3806 = vsel %vm3789, %v3773, %v3499
        %v3807 = vsel %vm3789, %v3774, %v3501
        %v3808 = vsel %vm3789, %v3775, %v3503
        %v3809 = vsel %vm3789, %v3776, %v3505
        %v3810 = vsel %vm3789, %v3777, %v3507
        %v3811 = vsel %vm3789, %v3778, %v3509
        %v3812 = vsel %vm3789, %v3779, %v3511
        %v3813 = vsel %vm3789, %v3780, %v3513
        %v3814 = vsel %vm3789, %v3781, %v3515
        %v3815 = vsel %vm3789, %v3782, %v3517
        %v3816 = vsel %vm3789, %v3783, %v3519
        %v3817 = vsel %vm3789, %v3784, %v3521
        %v3818 = vsel %vm3789, %v3785, %v3523
        %v3819 = vsel %vm3789, %v3786, %v3525
        %v3820 = vsel %vm3789, %v3787, %v3527
        %v3821 = vsel %vm3789, %v3788, %v3529
        %v3822 = vld [vmem:[%s3] sm:$0xff]
        %v3823 = vld [vmem:[%s3 + $0x8] sm:$0xff]
        %v3824 = vld [vmem:[%s3 + $0x10] sm:$0xff]
        %v3825 = vld [vmem:[%s3 + $0x18] sm:$0xff]
        %v3826 = vld [vmem:[%s3 + $0x20] sm:$0xff]
        %v3827 = vld [vmem:[%s3 + $0x28] sm:$0xff]
        %v3828 = vld [vmem:[%s3 + $0x30] sm:$0xff]
        %v3829 = vld [vmem:[%s3 + $0x38] sm:$0xff]
        %v3830 = vld [vmem:[%s3 + $0x40] sm:$0xff]
        %v3831 = vld [vmem:[%s4] sm:$0x1]
        %v3833 = vlaneseq
        %v3834 = vshrl.u32 %v3833, 7
        %v3835 = vsub.s32 0, %v3834
        %v3836 = vrot.slane %v3831, %v3835
        %vm3838 = vcmask 588800
        %v3840 = vsel %vm3838, %v3790, 0
        %v3843 = vsel %vm3838, %v3791, 0
        %v3846 = vsel %vm3838, %v3792, 0
        %v3849 = vsel %vm3838, %v3793, 0
        %v3852 = vsel %vm3838, %v3794, 0
        %v3855 = vsel %vm3838, %v3795, 0
        %v3858 = vsel %vm3838, %v3796, 0
        %v3861 = vsel %vm3838, %v3797, 0
        %v3864 = vsel %vm3838, %v3798, 0
        %v3867 = vsel %vm3838, %v3799, 0
        %v3870 = vsel %vm3838, %v3800, 0
        %v3873 = vsel %vm3838, %v3801, 0
        %v3876 = vsel %vm3838, %v3802, 0
        %v3879 = vsel %vm3838, %v3803, 0
        %v3882 = vsel %vm3838, %v3804, 0
        %v3885 = vsel %vm3838, %v3805, 0
        %v3888 = vsel %vm3838, %v3806, 0
        %v3891 = vsel %vm3838, %v3807, 0
        %v3894 = vsel %vm3838, %v3808, 0
        %v3897 = vsel %vm3838, %v3809, 0
        %v3900 = vsel %vm3838, %v3810, 0
        %v3903 = vsel %vm3838, %v3811, 0
        %v3906 = vsel %vm3838, %v3812, 0
        %v3909 = vsel %vm3838, %v3813, 0
        %v3912 = vsel %vm3838, %v3814, 0
        %v3915 = vsel %vm3838, %v3815, 0
        %v3918 = vsel %vm3838, %v3816, 0
        %v3921 = vsel %vm3838, %v3817, 0
        %v3924 = vsel %vm3838, %v3818, 0
        %v3927 = vsel %vm3838, %v3819, 0
        %v3930 = vsel %vm3838, %v3820, 0
        %v3933 = vsel %vm3838, %v3821, 0
        %3935 = vmatprep.subr.mxu0 0.0
        %3936 = vmatpush1.msra.mxu0 %v3822
        %3937 = vmatprep.subr.mxu0 0.0
        %3938 = vmatpush1.msra.mxu0 %v3823
        %3939 = vmatprep.subr.mxu0 0.0
        %3940 = vmatpush1.msra.mxu0 %v3824
        %3941 = vmatprep.subr.mxu0 0.0
        %3942 = vmatpush1.msra.mxu0 %v3825
        %3943 = vmatprep.subr.mxu0 0.0
        %3944 = vmatpush1.msra.mxu0 %v3826
        %3945 = vmatprep.subr.mxu0 0.0
        %3946 = vmatpush1.msra.mxu0 %v3827
        %3947 = vmatprep.subr.mxu0 0.0
        %3948 = vmatpush1.msra.mxu0 %v3828
        %3949 = vmatprep.subr.mxu0 0.0
        %3950 = vmatpush1.msra.mxu0 %v3829
        %3951 = vmatprep.subr.mxu0 0.0
        %3952 = vmatpush1.msra.mxu0 %v3830
        %3953 = vmatprep.subr.mxu0 0.0
        %3954 = vmatpush1.msra.mxu0 0.0
        %3955 = vmatprep.subr.mxu0 0.0
        %3956 = vmatpush1.msra.mxu0 0.0
        %3957 = vmatprep.subr.mxu0 0.0
        %3958 = vmatpush1.msra.mxu0 0.0
        %3959 = vmatprep.subr.mxu0 0.0
        %3960 = vmatpush1.msra.mxu0 0.0
        %3961 = vmatprep.subr.mxu0 0.0
        %3962 = vmatpush1.msra.mxu0 0.0
        %3963 = vmatprep.subr.mxu0 0.0
        %3964 = vmatpush1.msra.mxu0 0.0
        %3965 = vmatprep.subr.mxu0 0.0
        %3966 = vmatpush1.msra.mxu0 0.0
        %3967 = vmatprep.subr.mxu0 0.0
        %3968 = vmatpush1.msra.mxu0 0.0
        %3969 = vmatprep.subr.mxu0 0.0
        %3970 = vmatpush1.msra.mxu0 0.0
        %3971 = vmatprep.subr.mxu0 0.0
        %3972 = vmatpush1.msra.mxu0 0.0
        %3973 = vmatprep.subr.mxu0 0.0
        %3974 = vmatpush1.msra.mxu0 0.0
        %3975 = vmatprep.subr.mxu0 0.0
        %3976 = vmatpush1.msra.mxu0 0.0
        %3977 = vmatprep.subr.mxu0 0.0
        %3978 = vmatpush1.msra.mxu0 0.0
        %3979 = vmatprep.subr.mxu0 0.0
        %3980 = vmatpush1.msra.mxu0 0.0
        %3981 = vmatprep.subr.mxu0 0.0
        %3982 = vmatpush1.msra.mxu0 0.0
        %3983 = vmatprep.subr.mxu0 0.0
        %3984 = vmatpush1.msra.mxu0 0.0
        %3985 = vmatprep.subr.mxu0 0.0
        %3986 = vmatpush1.msra.mxu0 0.0
        %3987 = vmatprep.subr.mxu0 0.0
        %3988 = vmatpush1.msra.mxu0 0.0
        %3989 = vmatprep.subr.mxu0 0.0
        %3990 = vmatpush1.msra.mxu0 0.0
        %3991 = vmatprep.subr.mxu0 0.0
        %3992 = vmatpush1.msra.mxu0 0.0
        %3993 = vmatprep.subr.mxu0 0.0
        %3994 = vmatpush1.msra.mxu0 0.0
        %3995 = vmatprep.subr.mxu0 0.0
        %3996 = vmatpush1.msra.mxu0 0.0
        %3997 = vmatprep.subr.mxu0 0.0
        %3998 = vmatpush1.msra.mxu0 0.0
        %3999 = vmatprep.mubr.f32.mxu0 0.0
        %4000 = vmatmul.mubr.f32.gmra.mrb[0].mxu0 %v3840
        %v4001 = vpop.f32.mrb[0].mxu0
        %v4002 = vadd.f32 %v3836, %v4001
        %v4003 = vpop.f32.mrb[0].mxu0
        %4004 = vmatprep.mubr.f32.mxu0 0.0
        %4005 = vmatmul.mubr.f32.gmra.mrb[0].mxu0 %v3843
        %v4006 = vpop.f32.mrb[0].mxu0
        %v4007 = vadd.f32 %v3836, %v4006
        %v4008 = vpop.f32.mrb[0].mxu0
        %4009 = vmatprep.mubr.f32.mxu0 0.0
        %4010 = vmatmul.mubr.f32.gmra.mrb[0].mxu0 %v3846
        %v4011 = vpop.f32.mrb[0].mxu0
        %v4012 = vadd.f32 %v3836, %v4011
        %v4013 = vpop.f32.mrb[0].mxu0
        %4014 = vmatprep.mubr.f32.mxu0 0.0
        %4015 = vmatmul.mubr.f32.gmra.mrb[0].mxu0 %v3849
        %v4016 = vpop.f32.mrb[0].mxu0
        %v4017 = vadd.f32 %v3836, %v4016
        %v4018 = vpop.f32.mrb[0].mxu0
        %4019 = vmatprep.mubr.f32.mxu0 0.0
        %4020 = vmatmul.mubr.f32.gmra.mrb[0].mxu0 %v3852
        %v4021 = vpop.f32.mrb[0].mxu0
        %v4022 = vadd.f32 %v3836, %v4021
        %v4023 = vpop.f32.mrb[0].mxu0
        %4024 = vmatprep.mubr.f32.mxu0 0.0
        %4025 = vmatmul.mubr.f32.gmra.mrb[0].mxu0 %v3855
        %v4026 = vpop.f32.mrb[0].mxu0
        %v4027 = vadd.f32 %v3836, %v4026
        %v4028 = vpop.f32.mrb[0].mxu0
        %4029 = vmatprep.mubr.f32.mxu0 0.0
        %4030 = vmatmul.mubr.f32.gmra.mrb[0].mxu0 %v3858
        %v4031 = vpop.f32.mrb[0].mxu0
        %v4032 = vadd.f32 %v3836, %v4031
        %v4033 = vpop.f32.mrb[0].mxu0
        %4034 = vmatprep.mubr.f32.mxu0 0.0
        %4035 = vmatmul.mubr.f32.gmra.mrb[0].mxu0 %v3861
        %v4036 = vpop.f32.mrb[0].mxu0
        %v4037 = vadd.f32 %v3836, %v4036
        %v4038 = vpop.f32.mrb[0].mxu0
        %4039 = vmatprep.mubr.f32.mxu0 0.0
        %4040 = vmatmul.mubr.f32.gmra.mrb[0].mxu0 %v3864
        %v4041 = vpop.f32.mrb[0].mxu0
        %v4042 = vadd.f32 %v3836, %v4041
        %v4043 = vpop.f32.mrb[0].mxu0
        %4044 = vmatprep.mubr.f32.mxu0 0.0
        %4045 = vmatmul.mubr.f32.gmra.mrb[0].mxu0 %v3867
        %v4046 = vpop.f32.mrb[0].mxu0
        %v4047 = vadd.f32 %v3836, %v4046
        %v4048 = vpop.f32.mrb[0].mxu0
        %4049 = vmatprep.mubr.f32.mxu0 0.0
        %4050 = vmatmul.mubr.f32.gmra.mrb[0].mxu0 %v3870
        %v4051 = vpop.f32.mrb[0].mxu0
        %v4052 = vadd.f32 %v3836, %v4051
        %v4053 = vpop.f32.mrb[0].mxu0
        %4054 = vmatprep.mubr.f32.mxu0 0.0
        %4055 = vmatmul.mubr.f32.gmra.mrb[0].mxu0 %v3873
        %v4056 = vpop.f32.mrb[0].mxu0
        %v4057 = vadd.f32 %v3836, %v4056
        %v4058 = vpop.f32.mrb[0].mxu0
        %4059 = vmatprep.mubr.f32.mxu0 0.0
        %4060 = vmatmul.mubr.f32.gmra.mrb[0].mxu0 %v3876
        %v4061 = vpop.f32.mrb[0].mxu0
        %v4062 = vadd.f32 %v3836, %v4061
        %v4063 = vpop.f32.mrb[0].mxu0
        %4064 = vmatprep.mubr.f32.mxu0 0.0
        %4065 = vmatmul.mubr.f32.gmra.mrb[0].mxu0 %v3879
        %v4066 = vpop.f32.mrb[0].mxu0
        %v4067 = vadd.f32 %v3836, %v4066
        %v4068 = vpop.f32.mrb[0].mxu0
        %4069 = vmatprep.mubr.f32.mxu0 0.0
        %4070 = vmatmul.mubr.f32.gmra.mrb[0].mxu0 %v3882
        %v4071 = vpop.f32.mrb[0].mxu0
        %v4072 = vadd.f32 %v3836, %v4071
        %v4073 = vpop.f32.mrb[0].mxu0
        %4074 = vmatprep.mubr.f32.mxu0 0.0
        %4075 = vmatmul.mubr.f32.gmra.mrb[0].mxu0 %v3885
        %v4076 = vpop.f32.mrb[0].mxu0
        %v4077 = vadd.f32 %v3836, %v4076
        %v4078 = vpop.f32.mrb[0].mxu0
        %4079 = vmatprep.mubr.f32.mxu0 0.0
        %4080 = vmatmul.mubr.f32.gmra.mrb[0].mxu0 %v3888
        %v4081 = vpop.f32.mrb[0].mxu0
        %v4082 = vadd.f32 %v3836, %v4081
        %v4083 = vpop.f32.mrb[0].mxu0
        %4084 = vmatprep.mubr.f32.mxu0 0.0
        %4085 = vmatmul.mubr.f32.gmra.mrb[0].mxu0 %v3891
        %v4086 = vpop.f32.mrb[0].mxu0
        %v4087 = vadd.f32 %v3836, %v4086
        %v4088 = vpop.f32.mrb[0].mxu0
        %4089 = vmatprep.mubr.f32.mxu0 0.0
        %4090 = vmatmul.mubr.f32.gmra.mrb[0].mxu0 %v3894
        %v4091 = vpop.f32.mrb[0].mxu0
        %v4092 = vadd.f32 %v3836, %v4091
        %v4093 = vpop.f32.mrb[0].mxu0
        %4094 = vmatprep.mubr.f32.mxu0 0.0
        %4095 = vmatmul.mubr.f32.gmra.mrb[0].mxu0 %v3897
        %v4096 = vpop.f32.mrb[0].mxu0
        %v4097 = vadd.f32 %v3836, %v4096
        %v4098 = vpop.f32.mrb[0].mxu0
        %4099 = vmatprep.mubr.f32.mxu0 0.0
        %4100 = vmatmul.mubr.f32.gmra.mrb[0].mxu0 %v3900
        %v4101 = vpop.f32.mrb[0].mxu0
        %v4102 = vadd.f32 %v3836, %v4101
        %v4103 = vpop.f32.mrb[0].mxu0
        %4104 = vmatprep.mubr.f32.mxu0 0.0
        %4105 = vmatmul.mubr.f32.gmra.mrb[0].mxu0 %v3903
        %v4106 = vpop.f32.mrb[0].mxu0
        %v4107 = vadd.f32 %v3836, %v4106
        %v4108 = vpop.f32.mrb[0].mxu0
        %4109 = vmatprep.mubr.f32.mxu0 0.0
        %4110 = vmatmul.mubr.f32.gmra.mrb[0].mxu0 %v3906
        %v4111 = vpop.f32.mrb[0].mxu0
        %v4112 = vadd.f32 %v3836, %v4111
        %v4113 = vpop.f32.mrb[0].mxu0
        %4114 = vmatprep.mubr.f32.mxu0 0.0
        %4115 = vmatmul.mubr.f32.gmra.mrb[0].mxu0 %v3909
        %v4116 = vpop.f32.mrb[0].mxu0
        %v4117 = vadd.f32 %v3836, %v4116
        %v4118 = vpop.f32.mrb[0].mxu0
        %4119 = vmatprep.mubr.f32.mxu0 0.0
        %4120 = vmatmul.mubr.f32.gmra.mrb[0].mxu0 %v3912
        %v4121 = vpop.f32.mrb[0].mxu0
        %v4122 = vadd.f32 %v3836, %v4121
        %v4123 = vpop.f32.mrb[0].mxu0
        %4124 = vmatprep.mubr.f32.mxu0 0.0
        %4125 = vmatmul.mubr.f32.gmra.mrb[0].mxu0 %v3915
        %v4126 = vpop.f32.mrb[0].mxu0
        %v4127 = vadd.f32 %v3836, %v4126
        %v4128 = vpop.f32.mrb[0].mxu0
        %4129 = vmatprep.mubr.f32.mxu0 0.0
        %4130 = vmatmul.mubr.f32.gmra.mrb[0].mxu0 %v3918
        %v4131 = vpop.f32.mrb[0].mxu0
        %v4132 = vadd.f32 %v3836, %v4131
        %v4133 = vpop.f32.mrb[0].mxu0
        %4134 = vmatprep.mubr.f32.mxu0 0.0
        %4135 = vmatmul.mubr.f32.gmra.mrb[0].mxu0 %v3921
        %v4136 = vpop.f32.mrb[0].mxu0
        %v4137 = vadd.f32 %v3836, %v4136
        %v4138 = vpop.f32.mrb[0].mxu0
        %4139 = vmatprep.mubr.f32.mxu0 0.0
        %4140 = vmatmul.mubr.f32.gmra.mrb[0].mxu0 %v3924
        %v4141 = vpop.f32.mrb[0].mxu0
        %v4142 = vadd.f32 %v3836, %v4141
        %v4143 = vpop.f32.mrb[0].mxu0
        %4144 = vmatprep.mubr.f32.mxu0 0.0
        %4145 = vmatmul.mubr.f32.gmra.mrb[0].mxu0 %v3927
        %v4146 = vpop.f32.mrb[0].mxu0
        %v4147 = vadd.f32 %v3836, %v4146
        %v4148 = vpop.f32.mrb[0].mxu0
        %4149 = vmatprep.mubr.f32.mxu0 0.0
        %4150 = vmatmul.mubr.f32.gmra.mrb[0].mxu0 %v3930
        %v4151 = vpop.f32.mrb[0].mxu0
        %v4152 = vadd.f32 %v3836, %v4151
        %v4153 = vpop.f32.mrb[0].mxu0
        %4154 = vmatprep.mubr.f32.mxu0 0.0
        %4155 = vmatmul.mubr.f32.gmra.mrb[0].mxu0 %v3933
        %v4156 = vpop.f32.mrb[0].mxu0
        %v4157 = vadd.f32 %v3836, %v4156
        %v4158 = vpop.f32.mrb[0].mxu0
        %4159 = vdwg.mxu0
        %v4160 = vmax.f32 %v4002, 0.0
        %v4161 = vmax.f32 %v4007, 0.0
        %v4162 = vmax.f32 %v4012, 0.0
        %v4163 = vmax.f32 %v4017, 0.0
        %v4164 = vmax.f32 %v4022, 0.0
        %v4165 = vmax.f32 %v4027, 0.0
        %v4166 = vmax.f32 %v4032, 0.0
        %v4167 = vmax.f32 %v4037, 0.0
        %v4168 = vmax.f32 %v4042, 0.0
        %v4169 = vmax.f32 %v4047, 0.0
        %v4170 = vmax.f32 %v4052, 0.0
        %v4171 = vmax.f32 %v4057, 0.0
        %v4172 = vmax.f32 %v4062, 0.0
        %v4173 = vmax.f32 %v4067, 0.0
        %v4174 = vmax.f32 %v4072, 0.0
        %v4175 = vmax.f32 %v4077, 0.0
        %v4176 = vmax.f32 %v4082, 0.0
        %v4177 = vmax.f32 %v4087, 0.0
        %v4178 = vmax.f32 %v4092, 0.0
        %v4179 = vmax.f32 %v4097, 0.0
        %v4180 = vmax.f32 %v4102, 0.0
        %v4181 = vmax.f32 %v4107, 0.0
        %v4182 = vmax.f32 %v4112, 0.0
        %v4183 = vmax.f32 %v4117, 0.0
        %v4184 = vmax.f32 %v4122, 0.0
        %v4185 = vmax.f32 %v4127, 0.0
        %v4186 = vmax.f32 %v4132, 0.0
        %v4187 = vmax.f32 %v4137, 0.0
        %v4188 = vmax.f32 %v4142, 0.0
        %v4189 = vmax.f32 %v4147, 0.0
        %v4190 = vmax.f32 %v4152, 0.0
        %v4191 = vmax.f32 %v4157, 0.0
        %v4192 = vmax.f32 %v4160, %v4162
        %v4193 = vmax.f32 %v4161, %v4163
        %v4194 = vmax.f32 %v4164, %v4166
        %v4195 = vmax.f32 %v4165, %v4167
        %v4196 = vmax.f32 %v4168, %v4170
        %v4197 = vmax.f32 %v4169, %v4171
        %v4198 = vmax.f32 %v4172, %v4174
        %v4199 = vmax.f32 %v4173, %v4175
        %v4200 = vmax.f32 %v4176, %v4178
        %v4201 = vmax.f32 %v4177, %v4179
        %v4202 = vmax.f32 %v4180, %v4182
        %v4203 = vmax.f32 %v4181, %v4183
        %v4204 = vmax.f32 %v4184, %v4186
        %v4205 = vmax.f32 %v4185, %v4187
        %v4206 = vmax.f32 %v4188, %v4190
        %v4207 = vmax.f32 %v4189, %v4191
        %v4224 = vcombine.high %v4192, %v4192
        %v4226 = vunpack.c.l.s4 1983009808
        %v4227 = vunpack.c.0.s8 %v4226
        %v4228 = vlaneseq
        %v4229 = vshrl.u32 %v4228, 7
        %v4230 = vsub.s32 %v4227, %v4229
        %v4231 = vrot.slane %v4192, %v4230
        %v4233 = vunpack.c.l.s4 1983009808
        %v4234 = vunpack.c.0.s8 %v4233
        %v4235 = vlaneseq
        %v4236 = vshrl.u32 %v4235, 7
        %v4237 = vsub.s32 %v4234, %v4236
        %v4238 = vrot.slane %v4224, %v4237
        %v4239 = vcombine.high %v4231, %v4231
        %v4240 = vcombine.high %v4238, %v4238
        %v4241 = vcombine.high %v4193, %v4193
        %v4243 = vunpack.c.l.s4 1983009808
        %v4244 = vunpack.c.0.s8 %v4243
        %v4245 = vlaneseq
        %v4246 = vshrl.u32 %v4245, 7
        %v4247 = vsub.s32 %v4244, %v4246
        %v4248 = vrot.slane %v4193, %v4247
        %v4250 = vunpack.c.l.s4 1983009808
        %v4251 = vunpack.c.0.s8 %v4250
        %v4252 = vlaneseq
        %v4253 = vshrl.u32 %v4252, 7
        %v4254 = vsub.s32 %v4251, %v4253
        %v4255 = vrot.slane %v4241, %v4254
        %v4256 = vcombine.high %v4248, %v4248
        %v4257 = vcombine.high %v4255, %v4255
        %v4258 = vcombine.high %v4194, %v4194
        %v4260 = vunpack.c.l.s4 1983009808
        %v4261 = vunpack.c.0.s8 %v4260
        %v4262 = vlaneseq
        %v4263 = vshrl.u32 %v4262, 7
        %v4264 = vsub.s32 %v4261, %v4263
        %v4265 = vrot.slane %v4194, %v4264
        %v4267 = vunpack.c.l.s4 1983009808
        %v4268 = vunpack.c.0.s8 %v4267
        %v4269 = vlaneseq
        %v4270 = vshrl.u32 %v4269, 7
        %v4271 = vsub.s32 %v4268, %v4270
        %v4272 = vrot.slane %v4258, %v4271
        %v4273 = vcombine.high %v4265, %v4265
        %v4274 = vcombine.high %v4272, %v4272
        %v4275 = vcombine.high %v4195, %v4195
        %v4277 = vunpack.c.l.s4 1983009808
        %v4278 = vunpack.c.0.s8 %v4277
        %v4279 = vlaneseq
        %v4280 = vshrl.u32 %v4279, 7
        %v4281 = vsub.s32 %v4278, %v4280
        %v4282 = vrot.slane %v4195, %v4281
        %v4284 = vunpack.c.l.s4 1983009808
        %v4285 = vunpack.c.0.s8 %v4284
        %v4286 = vlaneseq
        %v4287 = vshrl.u32 %v4286, 7
        %v4288 = vsub.s32 %v4285, %v4287
        %v4289 = vrot.slane %v4275, %v4288
        %v4290 = vcombine.high %v4282, %v4282
        %v4291 = vcombine.high %v4289, %v4289
        %v4292 = vcombine.high %v4196, %v4196
        %v4294 = vunpack.c.l.s4 1983009808
        %v4295 = vunpack.c.0.s8 %v4294
        %v4296 = vlaneseq
        %v4297 = vshrl.u32 %v4296, 7
        %v4298 = vsub.s32 %v4295, %v4297
        %v4299 = vrot.slane %v4196, %v4298
        %v4301 = vunpack.c.l.s4 1983009808
        %v4302 = vunpack.c.0.s8 %v4301
        %v4303 = vlaneseq
        %v4304 = vshrl.u32 %v4303, 7
        %v4305 = vsub.s32 %v4302, %v4304
        %v4306 = vrot.slane %v4292, %v4305
        %v4307 = vcombine.high %v4299, %v4299
        %v4308 = vcombine.high %v4306, %v4306
        %v4309 = vcombine.high %v4197, %v4197
        %v4311 = vunpack.c.l.s4 1983009808
        %v4312 = vunpack.c.0.s8 %v4311
        %v4313 = vlaneseq
        %v4314 = vshrl.u32 %v4313, 7
        %v4315 = vsub.s32 %v4312, %v4314
        %v4316 = vrot.slane %v4197, %v4315
        %v4318 = vunpack.c.l.s4 1983009808
        %v4319 = vunpack.c.0.s8 %v4318
        %v4320 = vlaneseq
        %v4321 = vshrl.u32 %v4320, 7
        %v4322 = vsub.s32 %v4319, %v4321
        %v4323 = vrot.slane %v4309, %v4322
        %v4324 = vcombine.high %v4316, %v4316
        %v4325 = vcombine.high %v4323, %v4323
        %v4326 = vcombine.high %v4198, %v4198
        %v4328 = vunpack.c.l.s4 1983009808
        %v4329 = vunpack.c.0.s8 %v4328
        %v4330 = vlaneseq
        %v4331 = vshrl.u32 %v4330, 7
        %v4332 = vsub.s32 %v4329, %v4331
        %v4333 = vrot.slane %v4198, %v4332
        %v4335 = vunpack.c.l.s4 1983009808
        %v4336 = vunpack.c.0.s8 %v4335
        %v4337 = vlaneseq
        %v4338 = vshrl.u32 %v4337, 7
        %v4339 = vsub.s32 %v4336, %v4338
        %v4340 = vrot.slane %v4326, %v4339
        %v4341 = vcombine.high %v4333, %v4333
        %v4342 = vcombine.high %v4340, %v4340
        %v4343 = vcombine.high %v4199, %v4199
        %v4345 = vunpack.c.l.s4 1983009808
        %v4346 = vunpack.c.0.s8 %v4345
        %v4347 = vlaneseq
        %v4348 = vshrl.u32 %v4347, 7
        %v4349 = vsub.s32 %v4346, %v4348
        %v4350 = vrot.slane %v4199, %v4349
        %v4352 = vunpack.c.l.s4 1983009808
        %v4353 = vunpack.c.0.s8 %v4352
        %v4354 = vlaneseq
        %v4355 = vshrl.u32 %v4354, 7
        %v4356 = vsub.s32 %v4353, %v4355
        %v4357 = vrot.slane %v4343, %v4356
        %v4358 = vcombine.high %v4350, %v4350
        %v4359 = vcombine.high %v4357, %v4357
        %v4360 = vcombine.high %v4200, %v4200
        %v4362 = vunpack.c.l.s4 1983009808
        %v4363 = vunpack.c.0.s8 %v4362
        %v4364 = vlaneseq
        %v4365 = vshrl.u32 %v4364, 7
        %v4366 = vsub.s32 %v4363, %v4365
        %v4367 = vrot.slane %v4200, %v4366
        %v4369 = vunpack.c.l.s4 1983009808
        %v4370 = vunpack.c.0.s8 %v4369
        %v4371 = vlaneseq
        %v4372 = vshrl.u32 %v4371, 7
        %v4373 = vsub.s32 %v4370, %v4372
        %v4374 = vrot.slane %v4360, %v4373
        %v4375 = vcombine.high %v4367, %v4367
        %v4376 = vcombine.high %v4374, %v4374
        %v4377 = vcombine.high %v4201, %v4201
        %v4379 = vunpack.c.l.s4 1983009808
        %v4380 = vunpack.c.0.s8 %v4379
        %v4381 = vlaneseq
        %v4382 = vshrl.u32 %v4381, 7
        %v4383 = vsub.s32 %v4380, %v4382
        %v4384 = vrot.slane %v4201, %v4383
        %v4386 = vunpack.c.l.s4 1983009808
        %v4387 = vunpack.c.0.s8 %v4386
        %v4388 = vlaneseq
        %v4389 = vshrl.u32 %v4388, 7
        %v4390 = vsub.s32 %v4387, %v4389
        %v4391 = vrot.slane %v4377, %v4390
        %v4392 = vcombine.high %v4384, %v4384
        %v4393 = vcombine.high %v4391, %v4391
        %v4394 = vcombine.high %v4202, %v4202
        %v4396 = vunpack.c.l.s4 1983009808
        %v4397 = vunpack.c.0.s8 %v4396
        %v4398 = vlaneseq
        %v4399 = vshrl.u32 %v4398, 7
        %v4400 = vsub.s32 %v4397, %v4399
        %v4401 = vrot.slane %v4202, %v4400
        %v4403 = vunpack.c.l.s4 1983009808
        %v4404 = vunpack.c.0.s8 %v4403
        %v4405 = vlaneseq
        %v4406 = vshrl.u32 %v4405, 7
        %v4407 = vsub.s32 %v4404, %v4406
        %v4408 = vrot.slane %v4394, %v4407
        %v4409 = vcombine.high %v4401, %v4401
        %v4410 = vcombine.high %v4408, %v4408
        %v4411 = vcombine.high %v4203, %v4203
        %v4413 = vunpack.c.l.s4 1983009808
        %v4414 = vunpack.c.0.s8 %v4413
        %v4415 = vlaneseq
        %v4416 = vshrl.u32 %v4415, 7
        %v4417 = vsub.s32 %v4414, %v4416
        %v4418 = vrot.slane %v4203, %v4417
        %v4420 = vunpack.c.l.s4 1983009808
        %v4421 = vunpack.c.0.s8 %v4420
        %v4422 = vlaneseq
        %v4423 = vshrl.u32 %v4422, 7
        %v4424 = vsub.s32 %v4421, %v4423
        %v4425 = vrot.slane %v4411, %v4424
        %v4426 = vcombine.high %v4418, %v4418
        %v4427 = vcombine.high %v4425, %v4425
        %v4428 = vcombine.high %v4204, %v4204
        %v4430 = vunpack.c.l.s4 1983009808
        %v4431 = vunpack.c.0.s8 %v4430
        %v4432 = vlaneseq
        %v4433 = vshrl.u32 %v4432, 7
        %v4434 = vsub.s32 %v4431, %v4433
        %v4435 = vrot.slane %v4204, %v4434
        %v4437 = vunpack.c.l.s4 1983009808
        %v4438 = vunpack.c.0.s8 %v4437
        %v4439 = vlaneseq
        %v4440 = vshrl.u32 %v4439, 7
        %v4441 = vsub.s32 %v4438, %v4440
        %v4442 = vrot.slane %v4428, %v4441
        %v4443 = vcombine.high %v4435, %v4435
        %v4444 = vcombine.high %v4442, %v4442
        %v4445 = vcombine.high %v4205, %v4205
        %v4447 = vunpack.c.l.s4 1983009808
        %v4448 = vunpack.c.0.s8 %v4447
        %v4449 = vlaneseq
        %v4450 = vshrl.u32 %v4449, 7
        %v4451 = vsub.s32 %v4448, %v4450
        %v4452 = vrot.slane %v4205, %v4451
        %v4454 = vunpack.c.l.s4 1983009808
        %v4455 = vunpack.c.0.s8 %v4454
        %v4456 = vlaneseq
        %v4457 = vshrl.u32 %v4456, 7
        %v4458 = vsub.s32 %v4455, %v4457
        %v4459 = vrot.slane %v4445, %v4458
        %v4460 = vcombine.high %v4452, %v4452
        %v4461 = vcombine.high %v4459, %v4459
        %v4462 = vcombine.high %v4206, %v4206
        %v4464 = vunpack.c.l.s4 1983009808
        %v4465 = vunpack.c.0.s8 %v4464
        %v4466 = vlaneseq
        %v4467 = vshrl.u32 %v4466, 7
        %v4468 = vsub.s32 %v4465, %v4467
        %v4469 = vrot.slane %v4206, %v4468
        %v4471 = vunpack.c.l.s4 1983009808
        %v4472 = vunpack.c.0.s8 %v4471
        %v4473 = vlaneseq
        %v4474 = vshrl.u32 %v4473, 7
        %v4475 = vsub.s32 %v4472, %v4474
        %v4476 = vrot.slane %v4462, %v4475
        %v4477 = vcombine.high %v4469, %v4469
        %v4478 = vcombine.high %v4476, %v4476
        %v4479 = vcombine.high %v4207, %v4207
        %v4481 = vunpack.c.l.s4 1983009808
        %v4482 = vunpack.c.0.s8 %v4481
        %v4483 = vlaneseq
        %v4484 = vshrl.u32 %v4483, 7
        %v4485 = vsub.s32 %v4482, %v4484
        %v4486 = vrot.slane %v4207, %v4485
        %v4488 = vunpack.c.l.s4 1983009808
        %v4489 = vunpack.c.0.s8 %v4488
        %v4490 = vlaneseq
        %v4491 = vshrl.u32 %v4490, 7
        %v4492 = vsub.s32 %v4489, %v4491
        %v4493 = vrot.slane %v4479, %v4492
        %v4494 = vcombine.high %v4486, %v4486
        %v4495 = vcombine.high %v4493, %v4493
        %v4560 = vrot.slane %v4231, 7
        %v4561 = vrot.slane %v4560, 2
        %v4562 = vrot.slane %v4239, 7
        %v4563 = vrot.slane %v4562, 2
        %v4564 = vrot.slane %v4238, 7
        %v4565 = vrot.slane %v4564, 2
        %v4566 = vrot.slane %v4240, 7
        %v4567 = vrot.slane %v4566, 2
        %v4568 = vrot.slane %v4248, 7
        %v4569 = vrot.slane %v4568, 2
        %v4570 = vrot.slane %v4256, 7
        %v4571 = vrot.slane %v4570, 2
        %v4572 = vrot.slane %v4255, 7
        %v4573 = vrot.slane %v4572, 2
        %v4574 = vrot.slane %v4257, 7
        %v4575 = vrot.slane %v4574, 2
        %v4576 = vrot.slane %v4265, 7
        %v4577 = vrot.slane %v4576, 2
        %v4578 = vrot.slane %v4273, 7
        %v4579 = vrot.slane %v4578, 2
        %v4580 = vrot.slane %v4272, 7
        %v4581 = vrot.slane %v4580, 2
        %v4582 = vrot.slane %v4274, 7
        %v4583 = vrot.slane %v4582, 2
        %v4584 = vrot.slane %v4282, 7
        %v4585 = vrot.slane %v4584, 2
        %v4586 = vrot.slane %v4290, 7
        %v4587 = vrot.slane %v4586, 2
        %v4588 = vrot.slane %v4289, 7
        %v4589 = vrot.slane %v4588, 2
        %v4590 = vrot.slane %v4291, 7
        %v4591 = vrot.slane %v4590, 2
        %v4592 = vrot.slane %v4299, 7
        %v4593 = vrot.slane %v4592, 2
        %v4594 = vrot.slane %v4307, 7
        %v4595 = vrot.slane %v4594, 2
        %v4596 = vrot.slane %v4306, 7
        %v4597 = vrot.slane %v4596, 2
        %v4598 = vrot.slane %v4308, 7
        %v4599 = vrot.slane %v4598, 2
        %v4600 = vrot.slane %v4316, 7
        %v4601 = vrot.slane %v4600, 2
        %v4602 = vrot.slane %v4324, 7
        %v4603 = vrot.slane %v4602, 2
        %v4604 = vrot.slane %v4323, 7
        %v4605 = vrot.slane %v4604, 2
        %v4606 = vrot.slane %v4325, 7
        %v4607 = vrot.slane %v4606, 2
        %v4608 = vrot.slane %v4333, 7
        %v4609 = vrot.slane %v4608, 2
        %v4610 = vrot.slane %v4341, 7
        %v4611 = vrot.slane %v4610, 2
        %v4612 = vrot.slane %v4340, 7
        %v4613 = vrot.slane %v4612, 2
        %v4614 = vrot.slane %v4342, 7
        %v4615 = vrot.slane %v4614, 2
        %v4616 = vrot.slane %v4350, 7
        %v4617 = vrot.slane %v4616, 2
        %v4618 = vrot.slane %v4358, 7
        %v4619 = vrot.slane %v4618, 2
        %v4620 = vrot.slane %v4357, 7
        %v4621 = vrot.slane %v4620, 2
        %v4622 = vrot.slane %v4359, 7
        %v4623 = vrot.slane %v4622, 2
        %v4624 = vrot.slane %v4367, 7
        %v4625 = vrot.slane %v4624, 2
        %v4626 = vrot.slane %v4375, 7
        %v4627 = vrot.slane %v4626, 2
        %v4628 = vrot.slane %v4374, 7
        %v4629 = vrot.slane %v4628, 2
        %v4630 = vrot.slane %v4376, 7
        %v4631 = vrot.slane %v4630, 2
        %v4632 = vrot.slane %v4384, 7
        %v4633 = vrot.slane %v4632, 2
        %v4634 = vrot.slane %v4392, 7
        %v4635 = vrot.slane %v4634, 2
        %v4636 = vrot.slane %v4391, 7
        %v4637 = vrot.slane %v4636, 2
        %v4638 = vrot.slane %v4393, 7
        %v4639 = vrot.slane %v4638, 2
        %v4640 = vrot.slane %v4401, 7
        %v4641 = vrot.slane %v4640, 2
        %v4642 = vrot.slane %v4409, 7
        %v4643 = vrot.slane %v4642, 2
        %v4644 = vrot.slane %v4408, 7
        %v4645 = vrot.slane %v4644, 2
        %v4646 = vrot.slane %v4410, 7
        %v4647 = vrot.slane %v4646, 2
        %v4648 = vrot.slane %v4418, 7
        %v4649 = vrot.slane %v4648, 2
        %v4650 = vrot.slane %v4426, 7
        %v4651 = vrot.slane %v4650, 2
        %v4652 = vrot.slane %v4425, 7
        %v4653 = vrot.slane %v4652, 2
        %v4654 = vrot.slane %v4427, 7
        %v4655 = vrot.slane %v4654, 2
        %v4656 = vrot.slane %v4435, 7
        %v4657 = vrot.slane %v4656, 2
        %v4658 = vrot.slane %v4443, 7
        %v4659 = vrot.slane %v4658, 2
        %v4660 = vrot.slane %v4442, 7
        %v4661 = vrot.slane %v4660, 2
        %v4662 = vrot.slane %v4444, 7
        %v4663 = vrot.slane %v4662, 2
        %v4664 = vrot.slane %v4452, 7
        %v4665 = vrot.slane %v4664, 2
        %v4666 = vrot.slane %v4460, 7
        %v4667 = vrot.slane %v4666, 2
        %v4668 = vrot.slane %v4459, 7
        %v4669 = vrot.slane %v4668, 2
        %v4670 = vrot.slane %v4461, 7
        %v4671 = vrot.slane %v4670, 2
        %v4672 = vrot.slane %v4469, 7
        %v4673 = vrot.slane %v4672, 2
        %v4674 = vrot.slane %v4477, 7
        %v4675 = vrot.slane %v4674, 2
        %v4676 = vrot.slane %v4476, 7
        %v4677 = vrot.slane %v4676, 2
        %v4678 = vrot.slane %v4478, 7
        %v4679 = vrot.slane %v4678, 2
        %v4680 = vrot.slane %v4486, 7
        %v4681 = vrot.slane %v4680, 2
        %v4682 = vrot.slane %v4494, 7
        %v4683 = vrot.slane %v4682, 2
        %v4684 = vrot.slane %v4493, 7
        %v4685 = vrot.slane %v4684, 2
        %v4686 = vrot.slane %v4495, 7
        %v4687 = vrot.slane %v4686, 2
        %v4752 = vmax.f32 %v4231, %v4561
        %v4753 = vmax.f32 %v4239, %v4563
        %v4754 = vmax.f32 %v4238, %v4565
        %v4755 = vmax.f32 %v4240, %v4567
        %v4756 = vmax.f32 %v4248, %v4569
        %v4757 = vmax.f32 %v4256, %v4571
        %v4758 = vmax.f32 %v4255, %v4573
        %v4759 = vmax.f32 %v4257, %v4575
        %v4760 = vmax.f32 %v4265, %v4577
        %v4761 = vmax.f32 %v4273, %v4579
        %v4762 = vmax.f32 %v4272, %v4581
        %v4763 = vmax.f32 %v4274, %v4583
        %v4764 = vmax.f32 %v4282, %v4585
        %v4765 = vmax.f32 %v4290, %v4587
        %v4766 = vmax.f32 %v4289, %v4589
        %v4767 = vmax.f32 %v4291, %v4591
        %v4768 = vmax.f32 %v4299, %v4593
        %v4769 = vmax.f32 %v4307, %v4595
        %v4770 = vmax.f32 %v4306, %v4597
        %v4771 = vmax.f32 %v4308, %v4599
        %v4772 = vmax.f32 %v4316, %v4601
        %v4773 = vmax.f32 %v4324, %v4603
        %v4774 = vmax.f32 %v4323, %v4605
        %v4775 = vmax.f32 %v4325, %v4607
        %v4776 = vmax.f32 %v4333, %v4609
        %v4777 = vmax.f32 %v4341, %v4611
        %v4778 = vmax.f32 %v4340, %v4613
        %v4779 = vmax.f32 %v4342, %v4615
        %v4780 = vmax.f32 %v4350, %v4617
        %v4781 = vmax.f32 %v4358, %v4619
        %v4782 = vmax.f32 %v4357, %v4621
        %v4783 = vmax.f32 %v4359, %v4623
        %v4784 = vmax.f32 %v4367, %v4625
        %v4785 = vmax.f32 %v4375, %v4627
        %v4786 = vmax.f32 %v4374, %v4629
        %v4787 = vmax.f32 %v4376, %v4631
        %v4788 = vmax.f32 %v4384, %v4633
        %v4789 = vmax.f32 %v4392, %v4635
        %v4790 = vmax.f32 %v4391, %v4637
        %v4791 = vmax.f32 %v4393, %v4639
        %v4792 = vmax.f32 %v4401, %v4641
        %v4793 = vmax.f32 %v4409, %v4643
        %v4794 = vmax.f32 %v4408, %v4645
        %v4795 = vmax.f32 %v4410, %v4647
        %v4796 = vmax.f32 %v4418, %v4649
        %v4797 = vmax.f32 %v4426, %v4651
        %v4798 = vmax.f32 %v4425, %v4653
        %v4799 = vmax.f32 %v4427, %v4655
        %v4800 = vmax.f32 %v4435, %v4657
        %v4801 = vmax.f32 %v4443, %v4659
        %v4802 = vmax.f32 %v4442, %v4661
        %v4803 = vmax.f32 %v4444, %v4663
        %v4804 = vmax.f32 %v4452, %v4665
        %v4805 = vmax.f32 %v4460, %v4667
        %v4806 = vmax.f32 %v4459, %v4669
        %v4807 = vmax.f32 %v4461, %v4671
        %v4808 = vmax.f32 %v4469, %v4673
        %v4809 = vmax.f32 %v4477, %v4675
        %v4810 = vmax.f32 %v4476, %v4677
        %v4811 = vmax.f32 %v4478, %v4679
        %v4812 = vmax.f32 %v4486, %v4681
        %v4813 = vmax.f32 %v4494, %v4683
        %v4814 = vmax.f32 %v4493, %v4685
        %v4815 = vmax.f32 %v4495, %v4687
        %v4824 = vlaneseq
        %v4825 = vshrl.u32 %v4824, 7
        %v4826 = vsub.s32 0, %v4825
        %v4827 = vrot.slane %v4752, %v4826
        %v4828 = vlaneseq
        %v4829 = vshrl.u32 %v4828, 7
        %v4830 = vsub.s32 0, %v4829
        %v4831 = vrot.slane %v4760, %v4830
        %v4832 = vlaneseq
        %v4833 = vshrl.u32 %v4832, 7
        %v4834 = vsub.s32 0, %v4833
        %v4835 = vrot.slane %v4768, %v4834
        %v4836 = vlaneseq
        %v4837 = vshrl.u32 %v4836, 7
        %v4838 = vsub.s32 0, %v4837
        %v4839 = vrot.slane %v4776, %v4838
        %v4840 = vlaneseq
        %v4841 = vshrl.u32 %v4840, 7
        %v4842 = vsub.s32 0, %v4841
        %v4843 = vrot.slane %v4784, %v4842
        %v4844 = vlaneseq
        %v4845 = vshrl.u32 %v4844, 7
        %v4846 = vsub.s32 0, %v4845
        %v4847 = vrot.slane %v4792, %v4846
        %v4848 = vlaneseq
        %v4849 = vshrl.u32 %v4848, 7
        %v4850 = vsub.s32 0, %v4849
        %v4851 = vrot.slane %v4800, %v4850
        %v4852 = vlaneseq
        %v4853 = vshrl.u32 %v4852, 7
        %v4854 = vsub.s32 0, %v4853
        %v4855 = vrot.slane %v4808, %v4854
        %vm4856 = vcmask 1041409
        %v4857 = vsel %vm4856, %v4831, %v4827
        %vm4858 = vcmask 1042434
        %v4859 = vsel %vm4858, %v4835, %v4857
        %vm4860 = vcmask 1043459
        %v4861 = vsel %vm4860, %v4839, %v4859
        %vm4862 = vcmask 1044484
        %v4863 = vsel %vm4862, %v4843, %v4861
        %vm4864 = vcmask 1045509
        %v4865 = vsel %vm4864, %v4847, %v4863
        %vm4866 = vcmask 1046534
        %v4867 = vsel %vm4866, %v4851, %v4865
        %vm4868 = vcmask 1047559
        %v4869 = vsel %vm4868, %v4855, %v4867
        %v4879 = vlaneseq
        %v4880 = vshrl.u32 %v4879, 7
        %v4881 = vsub.s32 0, %v4880
        %v4882 = vrot.slane %v4753, %v4881
        %v4883 = vlaneseq
        %v4884 = vshrl.u32 %v4883, 7
        %v4885 = vsub.s32 0, %v4884
        %v4886 = vrot.slane %v4761, %v4885
        %v4887 = vlaneseq
        %v4888 = vshrl.u32 %v4887, 7
        %v4889 = vsub.s32 0, %v4888
        %v4890 = vrot.slane %v4769, %v4889
        %v4891 = vlaneseq
        %v4892 = vshrl.u32 %v4891, 7
        %v4893 = vsub.s32 0, %v4892
        %v4894 = vrot.slane %v4777, %v4893
        %v4895 = vlaneseq
        %v4896 = vshrl.u32 %v4895, 7
        %v4897 = vsub.s32 0, %v4896
        %v4898 = vrot.slane %v4785, %v4897
        %v4899 = vlaneseq
        %v4900 = vshrl.u32 %v4899, 7
        %v4901 = vsub.s32 0, %v4900
        %v4902 = vrot.slane %v4793, %v4901
        %v4903 = vlaneseq
        %v4904 = vshrl.u32 %v4903, 7
        %v4905 = vsub.s32 0, %v4904
        %v4906 = vrot.slane %v4801, %v4905
        %v4907 = vlaneseq
        %v4908 = vshrl.u32 %v4907, 7
        %v4909 = vsub.s32 0, %v4908
        %v4910 = vrot.slane %v4809, %v4909
        %v4911 = vsel %vm4856, %v4886, %v4882
        %v4912 = vsel %vm4858, %v4890, %v4911
        %v4913 = vsel %vm4860, %v4894, %v4912
        %v4914 = vsel %vm4862, %v4898, %v4913
        %v4915 = vsel %vm4864, %v4902, %v4914
        %v4916 = vsel %vm4866, %v4906, %v4915
        %v4917 = vsel %vm4868, %v4910, %v4916
        %4918 = vrot.lane.b32.xlu0 %v4917, 8
        %v4919 = vpop.permute.xlu0 %4918
        %v4929 = vlaneseq
        %v4930 = vshrl.u32 %v4929, 7
        %v4931 = vsub.s32 0, %v4930
        %v4932 = vrot.slane %v4754, %v4931
        %v4933 = vlaneseq
        %v4934 = vshrl.u32 %v4933, 7
        %v4935 = vsub.s32 0, %v4934
        %v4936 = vrot.slane %v4762, %v4935
        %v4937 = vlaneseq
        %v4938 = vshrl.u32 %v4937, 7
        %v4939 = vsub.s32 0, %v4938
        %v4940 = vrot.slane %v4770, %v4939
        %v4941 = vlaneseq
        %v4942 = vshrl.u32 %v4941, 7
        %v4943 = vsub.s32 0, %v4942
        %v4944 = vrot.slane %v4778, %v4943
        %v4945 = vlaneseq
        %v4946 = vshrl.u32 %v4945, 7
        %v4947 = vsub.s32 0, %v4946
        %v4948 = vrot.slane %v4786, %v4947
        %v4949 = vlaneseq
        %v4950 = vshrl.u32 %v4949, 7
        %v4951 = vsub.s32 0, %v4950
        %v4952 = vrot.slane %v4794, %v4951
        %v4953 = vlaneseq
        %v4954 = vshrl.u32 %v4953, 7
        %v4955 = vsub.s32 0, %v4954
        %v4956 = vrot.slane %v4802, %v4955
        %v4957 = vlaneseq
        %v4958 = vshrl.u32 %v4957, 7
        %v4959 = vsub.s32 0, %v4958
        %v4960 = vrot.slane %v4810, %v4959
        %v4961 = vsel %vm4856, %v4936, %v4932
        %v4962 = vsel %vm4858, %v4940, %v4961
        %v4963 = vsel %vm4860, %v4944, %v4962
        %v4964 = vsel %vm4862, %v4948, %v4963
        %v4965 = vsel %vm4864, %v4952, %v4964
        %v4966 = vsel %vm4866, %v4956, %v4965
        %v4967 = vsel %vm4868, %v4960, %v4966
        %4968 = vrot.lane.b32.xlu0 %v4967, 16
        %v4969 = vpop.permute.xlu0 %4968
        %v4979 = vlaneseq
        %v4980 = vshrl.u32 %v4979, 7
        %v4981 = vsub.s32 0, %v4980
        %v4982 = vrot.slane %v4755, %v4981
        %v4983 = vlaneseq
        %v4984 = vshrl.u32 %v4983, 7
        %v4985 = vsub.s32 0, %v4984
        %v4986 = vrot.slane %v4763, %v4985
        %v4987 = vlaneseq
        %v4988 = vshrl.u32 %v4987, 7
        %v4989 = vsub.s32 0, %v4988
        %v4990 = vrot.slane %v4771, %v4989
        %v4991 = vlaneseq
        %v4992 = vshrl.u32 %v4991, 7
        %v4993 = vsub.s32 0, %v4992
        %v4994 = vrot.slane %v4779, %v4993
        %v4995 = vlaneseq
        %v4996 = vshrl.u32 %v4995, 7
        %v4997 = vsub.s32 0, %v4996
        %v4998 = vrot.slane %v4787, %v4997
        %v4999 = vlaneseq
        %v5000 = vshrl.u32 %v4999, 7
        %v5001 = vsub.s32 0, %v5000
        %v5002 = vrot.slane %v4795, %v5001
        %v5003 = vlaneseq
        %v5004 = vshrl.u32 %v5003, 7
        %v5005 = vsub.s32 0, %v5004
        %v5006 = vrot.slane %v4803, %v5005
        %v5007 = vlaneseq
        %v5008 = vshrl.u32 %v5007, 7
        %v5009 = vsub.s32 0, %v5008
        %v5010 = vrot.slane %v4811, %v5009
        %v5011 = vsel %vm4856, %v4986, %v4982
        %v5012 = vsel %vm4858, %v4990, %v5011
        %v5013 = vsel %vm4860, %v4994, %v5012
        %v5014 = vsel %vm4862, %v4998, %v5013
        %v5015 = vsel %vm4864, %v5002, %v5014
        %v5016 = vsel %vm4866, %v5006, %v5015
        %v5017 = vsel %vm4868, %v5010, %v5016
        %5018 = vrot.lane.b32.xlu0 %v5017, 24
        %v5019 = vpop.permute.xlu0 %5018
        %v5029 = vlaneseq
        %v5030 = vshrl.u32 %v5029, 7
        %v5031 = vsub.s32 0, %v5030
        %v5032 = vrot.slane %v4756, %v5031
        %v5033 = vlaneseq
        %v5034 = vshrl.u32 %v5033, 7
        %v5035 = vsub.s32 0, %v5034
        %v5036 = vrot.slane %v4764, %v5035
        %v5037 = vlaneseq
        %v5038 = vshrl.u32 %v5037, 7
        %v5039 = vsub.s32 0, %v5038
        %v5040 = vrot.slane %v4772, %v5039
        %v5041 = vlaneseq
        %v5042 = vshrl.u32 %v5041, 7
        %v5043 = vsub.s32 0, %v5042
        %v5044 = vrot.slane %v4780, %v5043
        %v5045 = vlaneseq
        %v5046 = vshrl.u32 %v5045, 7
        %v5047 = vsub.s32 0, %v5046
        %v5048 = vrot.slane %v4788, %v5047
        %v5049 = vlaneseq
        %v5050 = vshrl.u32 %v5049, 7
        %v5051 = vsub.s32 0, %v5050
        %v5052 = vrot.slane %v4796, %v5051
        %v5053 = vlaneseq
        %v5054 = vshrl.u32 %v5053, 7
        %v5055 = vsub.s32 0, %v5054
        %v5056 = vrot.slane %v4804, %v5055
        %v5057 = vlaneseq
        %v5058 = vshrl.u32 %v5057, 7
        %v5059 = vsub.s32 0, %v5058
        %v5060 = vrot.slane %v4812, %v5059
        %v5061 = vsel %vm4856, %v5036, %v5032
        %v5062 = vsel %vm4858, %v5040, %v5061
        %v5063 = vsel %vm4860, %v5044, %v5062
        %v5064 = vsel %vm4862, %v5048, %v5063
        %v5065 = vsel %vm4864, %v5052, %v5064
        %v5066 = vsel %vm4866, %v5056, %v5065
        %v5067 = vsel %vm4868, %v5060, %v5066
        %5068 = vrot.lane.b32.xlu0 %v5067, 32
        %v5069 = vpop.permute.xlu0 %5068
        %v5079 = vlaneseq
        %v5080 = vshrl.u32 %v5079, 7
        %v5081 = vsub.s32 0, %v5080
        %v5082 = vrot.slane %v4757, %v5081
        %v5083 = vlaneseq
        %v5084 = vshrl.u32 %v5083, 7
        %v5085 = vsub.s32 0, %v5084
        %v5086 = vrot.slane %v4765, %v5085
        %v5087 = vlaneseq
        %v5088 = vshrl.u32 %v5087, 7
        %v5089 = vsub.s32 0, %v5088
        %v5090 = vrot.slane %v4773, %v5089
        %v5091 = vlaneseq
        %v5092 = vshrl.u32 %v5091, 7
        %v5093 = vsub.s32 0, %v5092
        %v5094 = vrot.slane %v4781, %v5093
        %v5095 = vlaneseq
        %v5096 = vshrl.u32 %v5095, 7
        %v5097 = vsub.s32 0, %v5096
        %v5098 = vrot.slane %v4789, %v5097
        %v5099 = vlaneseq
        %v5100 = vshrl.u32 %v5099, 7
        %v5101 = vsub.s32 0, %v5100
        %v5102 = vrot.slane %v4797, %v5101
        %v5103 = vlaneseq
        %v5104 = vshrl.u32 %v5103, 7
        %v5105 = vsub.s32 0, %v5104
        %v5106 = vrot.slane %v4805, %v5105
        %v5107 = vlaneseq
        %v5108 = vshrl.u32 %v5107, 7
        %v5109 = vsub.s32 0, %v5108
        %v5110 = vrot.slane %v4813, %v5109
        %v5111 = vsel %vm4856, %v5086, %v5082
        %v5112 = vsel %vm4858, %v5090, %v5111
        %v5113 = vsel %vm4860, %v5094, %v5112
        %v5114 = vsel %vm4862, %v5098, %v5113
        %v5115 = vsel %vm4864, %v5102, %v5114
        %v5116 = vsel %vm4866, %v5106, %v5115
        %v5117 = vsel %vm4868, %v5110, %v5116
        %5118 = vrot.lane.b32.xlu0 %v5117, 40
        %v5119 = vpop.permute.xlu0 %5118
        %v5129 = vlaneseq
        %v5130 = vshrl.u32 %v5129, 7
        %v5131 = vsub.s32 0, %v5130
        %v5132 = vrot.slane %v4758, %v5131
        %v5133 = vlaneseq
        %v5134 = vshrl.u32 %v5133, 7
        %v5135 = vsub.s32 0, %v5134
        %v5136 = vrot.slane %v4766, %v5135
        %v5137 = vlaneseq
        %v5138 = vshrl.u32 %v5137, 7
        %v5139 = vsub.s32 0, %v5138
        %v5140 = vrot.slane %v4774, %v5139
        %v5141 = vlaneseq
        %v5142 = vshrl.u32 %v5141, 7
        %v5143 = vsub.s32 0, %v5142
        %v5144 = vrot.slane %v4782, %v5143
        %v5145 = vlaneseq
        %v5146 = vshrl.u32 %v5145, 7
        %v5147 = vsub.s32 0, %v5146
        %v5148 = vrot.slane %v4790, %v5147
        %v5149 = vlaneseq
        %v5150 = vshrl.u32 %v5149, 7
        %v5151 = vsub.s32 0, %v5150
        %v5152 = vrot.slane %v4798, %v5151
        %v5153 = vlaneseq
        %v5154 = vshrl.u32 %v5153, 7
        %v5155 = vsub.s32 0, %v5154
        %v5156 = vrot.slane %v4806, %v5155
        %v5157 = vlaneseq
        %v5158 = vshrl.u32 %v5157, 7
        %v5159 = vsub.s32 0, %v5158
        %v5160 = vrot.slane %v4814, %v5159
        %v5161 = vsel %vm4856, %v5136, %v5132
        %v5162 = vsel %vm4858, %v5140, %v5161
        %v5163 = vsel %vm4860, %v5144, %v5162
        %v5164 = vsel %vm4862, %v5148, %v5163
        %v5165 = vsel %vm4864, %v5152, %v5164
        %v5166 = vsel %vm4866, %v5156, %v5165
        %v5167 = vsel %vm4868, %v5160, %v5166
        %5168 = vrot.lane.b32.xlu0 %v5167, 48
        %v5169 = vpop.permute.xlu0 %5168
        %v5179 = vlaneseq
        %v5180 = vshrl.u32 %v5179, 7
        %v5181 = vsub.s32 0, %v5180
        %v5182 = vrot.slane %v4759, %v5181
        %v5183 = vlaneseq
        %v5184 = vshrl.u32 %v5183, 7
        %v5185 = vsub.s32 0, %v5184
        %v5186 = vrot.slane %v4767, %v5185
        %v5187 = vlaneseq
        %v5188 = vshrl.u32 %v5187, 7
        %v5189 = vsub.s32 0, %v5188
        %v5190 = vrot.slane %v4775, %v5189
        %v5191 = vlaneseq
        %v5192 = vshrl.u32 %v5191, 7
        %v5193 = vsub.s32 0, %v5192
        %v5194 = vrot.slane %v4783, %v5193
        %v5195 = vlaneseq
        %v5196 = vshrl.u32 %v5195, 7
        %v5197 = vsub.s32 0, %v5196
        %v5198 = vrot.slane %v4791, %v5197
        %v5199 = vlaneseq
        %v5200 = vshrl.u32 %v5199, 7
        %v5201 = vsub.s32 0, %v5200
        %v5202 = vrot.slane %v4799, %v5201
        %v5203 = vlaneseq
        %v5204 = vshrl.u32 %v5203, 7
        %v5205 = vsub.s32 0, %v5204
        %v5206 = vrot.slane %v4807, %v5205
        %v5207 = vlaneseq
        %v5208 = vshrl.u32 %v5207, 7
        %v5209 = vsub.s32 0, %v5208
        %v5210 = vrot.slane %v4815, %v5209
        %v5211 = vsel %vm4856, %v5186, %v5182
        %v5212 = vsel %vm4858, %v5190, %v5211
        %v5213 = vsel %vm4860, %v5194, %v5212
        %v5214 = vsel %vm4862, %v5198, %v5213
        %v5215 = vsel %vm4864, %v5202, %v5214
        %v5216 = vsel %vm4866, %v5206, %v5215
        %v5217 = vsel %vm4868, %v5210, %v5216
        %5218 = vrot.lane.b32.xlu0 %v5217, 56
        %v5219 = vpop.permute.xlu0 %5218
        %v5221 = vsel %vm1570, %v4869, %v4919
        %v5222 = vsel %vm1636, %v5221, %v4969
        %v5223 = vsel %vm1702, %v5222, %v5019
        %v5224 = vsel %vm1768, %v5223, %v5069
        %v5225 = vsel %vm3690, %v5224, %v5119
        %v5226 = vsel %vm3723, %v5225, %v5169
        %v5227 = vsel %vm3756, %v5226, %v5219
        %v5229 = vcombine.high %v5227, %v5227
        %v5231 = vunpack.c.l.s4 1983009808
        %v5232 = vunpack.c.0.s8 %v5231
        %v5233 = vlaneseq
        %v5234 = vshrl.u32 %v5233, 7
        %v5235 = vsub.s32 %v5232, %v5234
        %v5236 = vrot.slane %v5227, %v5235
        %v5238 = vunpack.c.l.s4 1983009808
        %v5239 = vunpack.c.0.s8 %v5238
        %v5240 = vlaneseq
        %v5241 = vshrl.u32 %v5240, 7
        %v5242 = vsub.s32 %v5239, %v5241
        %v5243 = vrot.slane %v5229, %v5242
        %v5244 = vcombine.high %v5236, %v5236
        %v5245 = vcombine.high %v5243, %v5243
        %v5246 = vlaneseq
        %v5247 = vshrl.u32 %v5246, 7
        %v5248 = vsub.s32 0, %v5247
        %v5249 = vrot.slane %v5236, %v5248
        %v5250 = vlaneseq
        %v5251 = vshrl.u32 %v5250, 7
        %v5252 = vsub.s32 0, %v5251
        %v5253 = vrot.slane %v5244, %v5252
        %v5254 = vlaneseq
        %v5255 = vshrl.u32 %v5254, 7
        %v5256 = vsub.s32 0, %v5255
        %v5257 = vrot.slane %v5243, %v5256
        %v5258 = vlaneseq
        %v5259 = vshrl.u32 %v5258, 7
        %v5260 = vsub.s32 0, %v5259
        %v5261 = vrot.slane %v5245, %v5260
        %v5262 = vsel %vm4856, %v5253, %v5249
        %v5263 = vsel %vm4858, %v5257, %v5262
        %v5264 = vsel %vm4860, %v5261, %v5263
        %v5266 = vlaneseq
        %v5267 = vshrl.u32 %v5266, 7
        %v5268 = vsub.s32 1, %v5267
        %v5269 = vrot.slane %v5236, %v5268
        %v5270 = vlaneseq
        %v5271 = vshrl.u32 %v5270, 7
        %v5272 = vsub.s32 1, %v5271
        %v5273 = vrot.slane %v5244, %v5272
        %v5274 = vlaneseq
        %v5275 = vshrl.u32 %v5274, 7
        %v5276 = vsub.s32 1, %v5275
        %v5277 = vrot.slane %v5243, %v5276
        %v5278 = vlaneseq
        %v5279 = vshrl.u32 %v5278, 7
        %v5280 = vsub.s32 1, %v5279
        %v5281 = vrot.slane %v5245, %v5280
        %v5282 = vsel %vm4856, %v5273, %v5269
        %v5283 = vsel %vm4858, %v5277, %v5282
        %v5284 = vsel %vm4860, %v5281, %v5283
        %5285 = vrot.lane.b32.xlu0 %v5284, 64
        %v5286 = vpop.permute.xlu0 %5285
        %v5288 = vsel %vm3789, %v5264, %v5286
        %5289 = vst [vmem:[%s217] sm:$0xf] %v5288
        %s5290 = sand.u32 %s137, 1
        %s5291 = scalar_lea.sflag [#allocation4], %s5290
        %s5292 = sand.u32 %s137, 1
        %s5293 = smul.addr %s5292, 4
        %s5294 = scalar_lea.vmem [#allocation3], %s5293
        // Predicated region
        $region41: #{tpu_custom_call.1} parent=39 // pred_check
          %p5295 = pneg %p147
        $region42: #{tpu_custom_call.1} parent=39 // pred_check_branch
          %5297 = sbr.rel (%p5295) target = $region44
        $region43: #{tpu_custom_call.1} parent=39 // pred_region
          %s5299 = ssub.s32 64, 64
          %5300 = vsyncadd %s5291, %s5299
          %s5301 = smul.addr %s19, 64
          %s5302 = scalar_lea.hbm %s5, %s5301
          %s5304 = sshll.u32 %s5294, 4
          %s5305 = int_to_ptr.vmem [resolvable:$true] %s5304
          %5307 = dma.vmem_to_hbm [thread:$0]  %s5305, 64, %s5302, %s5291
        $region44: #{tpu_custom_call.1} parent=39 // pred_fallthru
          _
      $region40: #{tpu_custom_call.1} parent=5 // pred_fallthru
        _
      %p5308 = scmp.le.s32.totalorder 2, %s14
      // Predicated region
      $region45: #{tpu_custom_call.1} parent=5 // pred_check
        %p5309 = pneg %p5308
      $region46: #{tpu_custom_call.1} parent=5 // pred_check_branch
        %5311 = sbr.rel (%p5309) target = $region48
      $region47: #{tpu_custom_call.1} parent=5 // pred_region
        %s5312 = ssub.s32 %s14, 2
        // Predicated region
        $region49: #{tpu_custom_call.1} parent=47 // pred_check
          %p5313 = pneg %p153
        $region50: #{tpu_custom_call.1} parent=47 // pred_check_branch
          %5315 = sbr.rel (%p5313) target = $region52
        $region51: #{tpu_custom_call.1} parent=47 // pred_region
          %s5316 = sand.u32 %s138, 1
          %s5317 = scalar_lea.sflag [#allocation4], %s5316
          %s5318 = sand.u32 %s138, 1
          %s5319 = smul.addr %s5318, 4
          %s5320 = scalar_lea.vmem [#allocation3], %s5319
          %5321 = dma.done %s5317, 64
        $region52: #{tpu_custom_call.1} parent=47 // pred_fallthru
          _
      $region48: #{tpu_custom_call.1} parent=5 // pred_fallthru
        _
    $region6: #{tpu_custom_call.1} parent=1 // loop_footer
      %s18 = sadd.s32 1, %s14
    $region7: #{tpu_custom_call.1} parent=1 // loop_footer_branch
      %13 = sbr.rel target = $region3
    $region8: #{tpu_custom_call.1} parent=1 // loop_exit
      _
    %5322 = vsyncpa [#allocation4], 1
    %s5323 = scalar_lea.sflag [#allocation4], 1
    %5324 = vsyncpa %s5323, 1

</llo_original>
